<compile_context>
chip_gen: v7x
topology: tpu7x:2x2x1
jax: 0.10.0
libtpu: 0.0.40
codegen_flags: <defaults>
</compile_context>

<pallas_src>
import math
import jax
import jax.numpy as jnp
from jax.experimental import pallas as pl
from jax.experimental.pallas import tpu as pltpu


# --------------------------------------------------------------------------
# Fused 2x-BiLSTM + FC kernel (PyTorch gate order: i, f, g, o)
# --------------------------------------------------------------------------
def _make_hybrid_kernel(num_layers):
    """Builds:  kernel(x_ref, *(per-layer wih, whh_f, whh_b, b),
                        fc_w, fc_b, o_ref, xbuf_scratch)."""

    def kernel(x_ref, *refs):
        n_w = 4 * num_layers
        layer_refs = [refs[4 * l: 4 * (l + 1)] for l in range(num_layers)]
        fcw_ref, fcb_ref, o_ref, xbuf_ref = refs[n_w:]

        S, B, D0 = x_ref.shape
        H = layer_refs[0][1].shape[0]

        def cell(gx, h, c, whh):
            # gx already contains x @ W_ih + (b_ih + b_hh)
            gates = gx + jnp.dot(h, whh, preferred_element_type=jnp.float32)
            i = jax.nn.sigmoid(gates[:, 0:H])
            f = jax.nn.sigmoid(gates[:, H:2 * H])
            g = jnp.tanh(gates[:, 2 * H:3 * H])
            o = jax.nn.sigmoid(gates[:, 3 * H:4 * H])
            c_new = f * c + i * g
            return o * jnp.tanh(c_new), c_new

        zeros = jnp.zeros((B, H), jnp.float32)
        x = x_ref[...].reshape(S * B, D0)          # time-major, flattened rows

        hf = zeros
        hb_last = zeros
        for l in range(num_layers):
            wih_ref, whhf_ref, whhb_ref, b_ref = layer_refs[l]
            whh_f = whhf_ref[...]

            # Hoisted input projection for BOTH directions (8H lanes), bias
            # folded in -> one MXU matmul per layer instead of 2*S tiny ones.
            gx = (jnp.dot(x, wih_ref[...], preferred_element_type=jnp.float32)
                  + b_ref[...])                    # [S*B, 8H]

            hf, cf = zeros, zeros
            if l != num_layers - 1:
                whh_b = whhb_ref[...]
                hb, cb = zeros, zeros
                # Interleaved, fully-unrolled time loop: the two independent
                # recurrences pipeline against each other; each step's outputs
                # are stored straight into the VMEM scratch (no concat tree).
                for t in range(S):
                    tb = S - 1 - t
                    hf, cf = cell(gx[t * B:(t + 1) * B, 0:4 * H],
                                  hf, cf, whh_f)
                    hb, cb = cell(gx[tb * B:(tb + 1) * B, 4 * H:8 * H],
                                  hb, cb, whh_b)
                    xbuf_ref[t * B:(t + 1) * B, 0:H] = hf
                    xbuf_ref[tb * B:(tb + 1) * B, H:2 * H] = hb
                x = xbuf_ref[...]                  # [S*B, 2H] next-layer input
            else:
                # Final layer: only out[:, -1, :] is consumed downstream.
                # Forward direction: full recurrence, keep last hidden state.
                for t in range(S):
                    hf, cf = cell(gx[t * B:(t + 1) * B, 0:4 * H],
                                  hf, cf, whh_f)
                # Backward direction at t = S-1 is its FIRST step (zero
                # initial state => h @ W_hh == 0, c == 0) -> one cell, no dot.
                gb = gx[(S - 1) * B:S * B, 4 * H:8 * H]
                i_b = jax.nn.sigmoid(gb[:, 0:H])
                g_b = jnp.tanh(gb[:, 2 * H:3 * H])
                o_b = jax.nn.sigmoid(gb[:, 3 * H:4 * H])
                hb_last = o_b * jnp.tanh(i_b * g_b)

        # Dropout is identity in eval mode; final linear classifier in-kernel.
        # FC weight split statically -> no concat of [hf, hb_last] needed.
        fcw = fcw_ref[...]
        o_ref[...] = (
            jnp.dot(hf, fcw[0:H, :], preferred_element_type=jnp.float32)
            + jnp.dot(hb_last, fcw[H:2 * H, :],
                      preferred_element_type=jnp.float32)
            + fcb_ref[...])

    return kernel


def hybrid_head(x_bsd, params):
    """x_bsd: [B, S, D0] BERT sequence output -> logits [B, C]."""
    B, S, D0 = x_bsd.shape
    layers = params["lstm"]
    H = layers[0]["whh_f"].shape[0]
    C = params["fc_w"].shape[1]

    x_sbd = jnp.transpose(x_bsd, (1, 0, 2))       # time-major, once, at entry

    args = [x_sbd]
    in_specs = [pl.BlockSpec((S, B, D0), lambda i: (0, 0, 0))]
    for layer in layers:
        for name in ("wih", "whh_f", "whh_b", "b"):
            a = layer[name]
            args.append(a)
            in_specs.append(pl.BlockSpec(a.shape, lambda i: (0, 0)))
    for name in ("fc_w", "fc_b"):
        a = params[name]
        args.append(a)
        in_specs.append(pl.BlockSpec(a.shape, lambda i: (0, 0)))

    return pl.pallas_call(
        _make_hybrid_kernel(len(layers)),
        out_shape=jax.ShapeDtypeStruct((B, C), jnp.float32),
        grid=(1,),
        in_specs=in_specs,
        out_specs=pl.BlockSpec((B, C), lambda i: (0, 0)),
        scratch_shapes=[pltpu.VMEM((S * B, 2 * H), jnp.float32)],
        compiler_params=pltpu.CompilerParams(
            dimension_semantics=("arbitrary",)),
    )(*args)


# --------------------------------------------------------------------------
# Parameter construction (matches module __init__ / init_weights semantics)
# --------------------------------------------------------------------------
def _xavier(key, shape):
    fan_in, fan_out = shape[0], shape[1]
    bound = math.sqrt(6.0 / (fan_in + fan_out))
    return jax.random.uniform(key, shape, jnp.float32, -bound, bound)


def make_params(key, vocab, bert_hidden, lstm_hidden, num_layers, num_classes):
    H = lstm_hidden
    keys = jax.random.split(key, 2 + 4 * num_layers)
    params = {}
    # Stand-in for the BERT encoder: token embedding table.
    params["emb"] = jax.random.normal(keys[0], (vocab, bert_hidden),
                                      jnp.float32) * 0.02
    layers = []
    for l in range(num_layers):
        D = bert_hidden if l == 0 else 2 * H
        kf_ih, kf_hh, kb_ih, kb_hh = keys[1 + 4 * l: 1 + 4 * (l + 1)]
        wih_f = _xavier(kf_ih, (D, 4 * H))        # stored pre-transposed
        wih_b = _xavier(kb_ih, (D, 4 * H))
        layers.append(dict(
            wih=jnp.concatenate([wih_f, wih_b], axis=1),    # [D, 8H] fused
            whh_f=_xavier(kf_hh, (H, 4 * H)),
            whh_b=_xavier(kb_hh, (H, 4 * H)),
            # (bias_ih + bias_hh) for fwd ++ bwd; zero-init per init_weights.
            b=jnp.zeros((1, 8 * H), jnp.float32),
        ))
    params["lstm"] = layers
    params["fc_w"] = _xavier(keys[-1], (2 * H, num_classes))
    params["fc_b"] = jnp.zeros((1, num_classes), jnp.float32)
    return params


# --------------------------------------------------------------------------
# Full forward pass
# --------------------------------------------------------------------------
def hybrid_forward(params, input_ids, attention_mask):
    # TODO(synk): pretrained BertModel replaced by a deterministic embedding
    # lookup masked by attention_mask (stands in for last_hidden_state).
    seq = params["emb"][input_ids] * attention_mask[..., None]   # [B, S, Hb]
    # Dropout: identity in eval mode -> omitted.
    return hybrid_head(seq, params)                              # [B, C]


if __name__ == "__main__":
    B, S = 8, 8
    vocab = 100
    bert_hidden = 32
    lstm_hidden = 16
    num_layers = 2
    num_classes = 4

    key = jax.random.PRNGKey(0)
    kp, kid = jax.random.split(key)
    params = make_params(kp, vocab, bert_hidden, lstm_hidden,
                         num_layers, num_classes)

    input_ids = jax.random.randint(kid, (B, S), 0, vocab, dtype=jnp.int32)
    attention_mask = jnp.ones((B, S), jnp.float32)

    out = hybrid_forward(params, input_ids, attention_mask)
    out = jax.block_until_ready(out)
    assert out.shape == (B, num_classes)
    print("KERNEL_OK")
</pallas_src>

<mosaic_0001>
module attributes {stable_mosaic.version = 11 : i64} {
  func.func @kernel(%arg0: i32, %arg1: memref<8x8x32xf32, #tpu.memory_space<vmem>>, %arg2: memref<32x128xf32, #tpu.memory_space<vmem>>, %arg3: memref<16x64xf32, #tpu.memory_space<vmem>>, %arg4: memref<16x64xf32, #tpu.memory_space<vmem>>, %arg5: memref<1x128xf32, #tpu.memory_space<vmem>>, %arg6: memref<32x128xf32, #tpu.memory_space<vmem>>, %arg7: memref<16x64xf32, #tpu.memory_space<vmem>>, %arg8: memref<16x64xf32, #tpu.memory_space<vmem>>, %arg9: memref<1x128xf32, #tpu.memory_space<vmem>>, %arg10: memref<32x4xf32, #tpu.memory_space<vmem>>, %arg11: memref<1x4xf32, #tpu.memory_space<vmem>>, %arg12: memref<8x4xf32, #tpu.memory_space<vmem>>, %arg13: memref<64x32xf32, #tpu.memory_space<vmem>>) attributes {dimension_semantics = [#tpu.dimension_semantics<arbitrary>], iteration_bounds = array<i64: 1>, scalar_prefetch = 0 : i64, scratch_operands = 1 : i64, tpu.core_type = #tpu.core_type<tc>, window_params = [{pipeline_mode = #tpu.pipeline_mode<synchronous>, transform_indices = @transform_0, window_bounds = array<i64: 8, 8, 32>}, {pipeline_mode = #tpu.pipeline_mode<synchronous>, transform_indices = @transform_1, window_bounds = array<i64: 32, 128>}, {pipeline_mode = #tpu.pipeline_mode<synchronous>, transform_indices = @transform_2, window_bounds = array<i64: 16, 64>}, {pipeline_mode = #tpu.pipeline_mode<synchronous>, transform_indices = @transform_3, window_bounds = array<i64: 16, 64>}, {pipeline_mode = #tpu.pipeline_mode<synchronous>, transform_indices = @transform_4, window_bounds = array<i64: 1, 128>}, {pipeline_mode = #tpu.pipeline_mode<synchronous>, transform_indices = @transform_5, window_bounds = array<i64: 32, 128>}, {pipeline_mode = #tpu.pipeline_mode<synchronous>, transform_indices = @transform_6, window_bounds = array<i64: 16, 64>}, {pipeline_mode = #tpu.pipeline_mode<synchronous>, transform_indices = @transform_7, window_bounds = array<i64: 16, 64>}, {pipeline_mode = #tpu.pipeline_mode<synchronous>, transform_indices = @transform_8, window_bounds = array<i64: 1, 128>}, {pipeline_mode = #tpu.pipeline_mode<synchronous>, transform_indices = @transform_9, window_bounds = array<i64: 32, 4>}, {pipeline_mode = #tpu.pipeline_mode<synchronous>, transform_indices = @transform_10, window_bounds = array<i64: 1, 4>}, {pipeline_mode = #tpu.pipeline_mode<synchronous>, transform_indices = @transform_11, window_bounds = array<i64: 8, 4>}]} {
    %cst = arith.constant 0.000000e+00 : f32
    %0 = vector.broadcast %cst : f32 to vector<8x16xf32>
    %c0 = arith.constant 0 : index
    %c0_0 = arith.constant 0 : index
    %c0_1 = arith.constant 0 : index
    %1 = vector.load %arg1[%c0, %c0_0, %c0_1] : memref<8x8x32xf32, #tpu.memory_space<vmem>>, vector<8x8x32xf32>
    %2 = vector.shape_cast %1 : vector<8x8x32xf32> to vector<64x32xf32>
    %c0_2 = arith.constant 0 : index
    %c0_3 = arith.constant 0 : index
    %3 = vector.load %arg3[%c0_2, %c0_3] : memref<16x64xf32, #tpu.memory_space<vmem>>, vector<16x64xf32>
    %c0_4 = arith.constant 0 : index
    %c0_5 = arith.constant 0 : index
    %4 = vector.load %arg2[%c0_4, %c0_5] : memref<32x128xf32, #tpu.memory_space<vmem>>, vector<32x128xf32>
    %cst_6 = arith.constant dense<0.000000e+00> : vector<64x128xf32>
    %5 = tpu.matmul %2, %4, %cst_6 {dimension_numbers = #tpu.dot_dimension_numbers<[1], [0], [0], [1], [0, 0, 1, 1], [], []>} : vector<64x32xf32>, vector<32x128xf32>, vector<64x128xf32> -> vector<64x128xf32>
    %c0_7 = arith.constant 0 : index
    %c0_8 = arith.constant 0 : index
    %6 = vector.load %arg5[%c0_7, %c0_8] : memref<1x128xf32, #tpu.memory_space<vmem>>, vector<1x128xf32>
    %7 = vector.broadcast %6 : vector<1x128xf32> to vector<64x128xf32>
    %8 = arith.addf %5, %7 : vector<64x128xf32>
    %c0_9 = arith.constant 0 : index
    %c0_10 = arith.constant 0 : index
    %9 = vector.load %arg4[%c0_9, %c0_10] : memref<16x64xf32, #tpu.memory_space<vmem>>, vector<16x64xf32>
    %10 = vector.extract_strided_slice %8 {offsets = [0, 0], sizes = [8, 64], strides = [1, 1]} : vector<64x128xf32> to vector<8x64xf32>
    %cst_11 = arith.constant dense<0.000000e+00> : vector<8x64xf32>
    %11 = tpu.matmul %0, %3, %cst_11 {dimension_numbers = #tpu.dot_dimension_numbers<[1], [0], [0], [1], [0, 0, 1, 1], [], []>} : vector<8x16xf32>, vector<16x64xf32>, vector<8x64xf32> -> vector<8x64xf32>
    %12 = arith.addf %10, %11 : vector<8x64xf32>
    %13 = vector.extract_strided_slice %12 {offsets = [0, 0], sizes = [8, 16], strides = [1, 1]} : vector<8x64xf32> to vector<8x16xf32>
    %14 = arith.negf %13 : vector<8x16xf32>
    %15 = math.exp %14 : vector<8x16xf32>
    %cst_12 = arith.constant 1.000000e+00 : f32
    %16 = vector.broadcast %cst_12 : f32 to vector<8x16xf32>
    %17 = arith.addf %16, %15 : vector<8x16xf32>
    %18 = arith.divf %16, %17 : vector<8x16xf32>
    %19 = vector.extract_strided_slice %12 {offsets = [0, 16], sizes = [8, 16], strides = [1, 1]} : vector<8x64xf32> to vector<8x16xf32>
    %20 = arith.negf %19 : vector<8x16xf32>
    %21 = math.exp %20 : vector<8x16xf32>
    %cst_13 = arith.constant 1.000000e+00 : f32
    %22 = vector.broadcast %cst_13 : f32 to vector<8x16xf32>
    %23 = arith.addf %22, %21 : vector<8x16xf32>
    %24 = arith.divf %22, %23 : vector<8x16xf32>
    %25 = vector.extract_strided_slice %12 {offsets = [0, 32], sizes = [8, 16], strides = [1, 1]} : vector<8x64xf32> to vector<8x16xf32>
    %26 = math.tanh %25 : vector<8x16xf32>
    %27 = vector.extract_strided_slice %12 {offsets = [0, 48], sizes = [8, 16], strides = [1, 1]} : vector<8x64xf32> to vector<8x16xf32>
    %28 = arith.negf %27 : vector<8x16xf32>
    %29 = math.exp %28 : vector<8x16xf32>
    %cst_14 = arith.constant 1.000000e+00 : f32
    %30 = vector.broadcast %cst_14 : f32 to vector<8x16xf32>
    %31 = arith.addf %30, %29 : vector<8x16xf32>
    %32 = arith.divf %30, %31 : vector<8x16xf32>
    %33 = arith.mulf %24, %0 : vector<8x16xf32>
    %34 = arith.mulf %18, %26 : vector<8x16xf32>
    %35 = arith.addf %33, %34 : vector<8x16xf32>
    %36 = math.tanh %35 : vector<8x16xf32>
    %37 = arith.mulf %32, %36 : vector<8x16xf32>
    %38 = vector.extract_strided_slice %8 {offsets = [56, 64], sizes = [8, 64], strides = [1, 1]} : vector<64x128xf32> to vector<8x64xf32>
    %cst_15 = arith.constant dense<0.000000e+00> : vector<8x64xf32>
    %39 = tpu.matmul %0, %9, %cst_15 {dimension_numbers = #tpu.dot_dimension_numbers<[1], [0], [0], [1], [0, 0, 1, 1], [], []>} : vector<8x16xf32>, vector<16x64xf32>, vector<8x64xf32> -> vector<8x64xf32>
    %40 = arith.addf %38, %39 : vector<8x64xf32>
    %41 = vector.extract_strided_slice %40 {offsets = [0, 0], sizes = [8, 16], strides = [1, 1]} : vector<8x64xf32> to vector<8x16xf32>
    %42 = arith.negf %41 : vector<8x16xf32>
    %43 = math.exp %42 : vector<8x16xf32>
    %cst_16 = arith.constant 1.000000e+00 : f32
    %44 = vector.broadcast %cst_16 : f32 to vector<8x16xf32>
    %45 = arith.addf %44, %43 : vector<8x16xf32>
    %46 = arith.divf %44, %45 : vector<8x16xf32>
    %47 = vector.extract_strided_slice %40 {offsets = [0, 16], sizes = [8, 16], strides = [1, 1]} : vector<8x64xf32> to vector<8x16xf32>
    %48 = arith.negf %47 : vector<8x16xf32>
    %49 = math.exp %48 : vector<8x16xf32>
    %cst_17 = arith.constant 1.000000e+00 : f32
    %50 = vector.broadcast %cst_17 : f32 to vector<8x16xf32>
    %51 = arith.addf %50, %49 : vector<8x16xf32>
    %52 = arith.divf %50, %51 : vector<8x16xf32>
    %53 = vector.extract_strided_slice %40 {offsets = [0, 32], sizes = [8, 16], strides = [1, 1]} : vector<8x64xf32> to vector<8x16xf32>
    %54 = math.tanh %53 : vector<8x16xf32>
    %55 = vector.extract_strided_slice %40 {offsets = [0, 48], sizes = [8, 16], strides = [1, 1]} : vector<8x64xf32> to vector<8x16xf32>
    %56 = arith.negf %55 : vector<8x16xf32>
    %57 = math.exp %56 : vector<8x16xf32>
    %cst_18 = arith.constant 1.000000e+00 : f32
    %58 = vector.broadcast %cst_18 : f32 to vector<8x16xf32>
    %59 = arith.addf %58, %57 : vector<8x16xf32>
    %60 = arith.divf %58, %59 : vector<8x16xf32>
    %61 = arith.mulf %52, %0 : vector<8x16xf32>
    %62 = arith.mulf %46, %54 : vector<8x16xf32>
    %63 = arith.addf %61, %62 : vector<8x16xf32>
    %64 = math.tanh %63 : vector<8x16xf32>
    %65 = arith.mulf %60, %64 : vector<8x16xf32>
    %c0_19 = arith.constant 0 : index
    %c0_20 = arith.constant 0 : index
    %66 = vector.load %arg13[%c0_19, %c0_20] : memref<64x32xf32, #tpu.memory_space<vmem>>, vector<8x16xf32>
    tpu.vector_store %arg13[%c0_19, %c0_20], %37 {strides = array<i32>} : memref<64x32xf32, #tpu.memory_space<vmem>>, vector<8x16xf32>,
    %c56 = arith.constant 56 : index
    %c16 = arith.constant 16 : index
    %67 = vector.load %arg13[%c56, %c16] : memref<64x32xf32, #tpu.memory_space<vmem>>, vector<8x16xf32>
    tpu.vector_store %arg13[%c56, %c16], %65 {strides = array<i32>} : memref<64x32xf32, #tpu.memory_space<vmem>>, vector<8x16xf32>,
    %68 = vector.extract_strided_slice %8 {offsets = [8, 0], sizes = [8, 64], strides = [1, 1]} : vector<64x128xf32> to vector<8x64xf32>
    %cst_21 = arith.constant dense<0.000000e+00> : vector<8x64xf32>
    %69 = tpu.matmul %37, %3, %cst_21 {dimension_numbers = #tpu.dot_dimension_numbers<[1], [0], [0], [1], [0, 0, 1, 1], [], []>} : vector<8x16xf32>, vector<16x64xf32>, vector<8x64xf32> -> vector<8x64xf32>
    %70 = arith.addf %68, %69 : vector<8x64xf32>
    %71 = vector.extract_strided_slice %70 {offsets = [0, 0], sizes = [8, 16], strides = [1, 1]} : vector<8x64xf32> to vector<8x16xf32>
    %72 = arith.negf %71 : vector<8x16xf32>
    %73 = math.exp %72 : vector<8x16xf32>
    %cst_22 = arith.constant 1.000000e+00 : f32
    %74 = vector.broadcast %cst_22 : f32 to vector<8x16xf32>
    %75 = arith.addf %74, %73 : vector<8x16xf32>
    %76 = arith.divf %74, %75 : vector<8x16xf32>
    %77 = vector.extract_strided_slice %70 {offsets = [0, 16], sizes = [8, 16], strides = [1, 1]} : vector<8x64xf32> to vector<8x16xf32>
    %78 = arith.negf %77 : vector<8x16xf32>
    %79 = math.exp %78 : vector<8x16xf32>
    %cst_23 = arith.constant 1.000000e+00 : f32
    %80 = vector.broadcast %cst_23 : f32 to vector<8x16xf32>
    %81 = arith.addf %80, %79 : vector<8x16xf32>
    %82 = arith.divf %80, %81 : vector<8x16xf32>
    %83 = vector.extract_strided_slice %70 {offsets = [0, 32], sizes = [8, 16], strides = [1, 1]} : vector<8x64xf32> to vector<8x16xf32>
    %84 = math.tanh %83 : vector<8x16xf32>
    %85 = vector.extract_strided_slice %70 {offsets = [0, 48], sizes = [8, 16], strides = [1, 1]} : vector<8x64xf32> to vector<8x16xf32>
    %86 = arith.negf %85 : vector<8x16xf32>
    %87 = math.exp %86 : vector<8x16xf32>
    %cst_24 = arith.constant 1.000000e+00 : f32
    %88 = vector.broadcast %cst_24 : f32 to vector<8x16xf32>
    %89 = arith.addf %88, %87 : vector<8x16xf32>
    %90 = arith.divf %88, %89 : vector<8x16xf32>
    %91 = arith.mulf %82, %35 : vector<8x16xf32>
    %92 = arith.mulf %76, %84 : vector<8x16xf32>
    %93 = arith.addf %91, %92 : vector<8x16xf32>
    %94 = math.tanh %93 : vector<8x16xf32>
    %95 = arith.mulf %90, %94 : vector<8x16xf32>
    %96 = vector.extract_strided_slice %8 {offsets = [48, 64], sizes = [8, 64], strides = [1, 1]} : vector<64x128xf32> to vector<8x64xf32>
    %cst_25 = arith.constant dense<0.000000e+00> : vector<8x64xf32>
    %97 = tpu.matmul %65, %9, %cst_25 {dimension_numbers = #tpu.dot_dimension_numbers<[1], [0], [0], [1], [0, 0, 1, 1], [], []>} : vector<8x16xf32>, vector<16x64xf32>, vector<8x64xf32> -> vector<8x64xf32>
    %98 = arith.addf %96, %97 : vector<8x64xf32>
    %99 = vector.extract_strided_slice %98 {offsets = [0, 0], sizes = [8, 16], strides = [1, 1]} : vector<8x64xf32> to vector<8x16xf32>
    %100 = arith.negf %99 : vector<8x16xf32>
    %101 = math.exp %100 : vector<8x16xf32>
    %cst_26 = arith.constant 1.000000e+00 : f32
    %102 = vector.broadcast %cst_26 : f32 to vector<8x16xf32>
    %103 = arith.addf %102, %101 : vector<8x16xf32>
    %104 = arith.divf %102, %103 : vector<8x16xf32>
    %105 = vector.extract_strided_slice %98 {offsets = [0, 16], sizes = [8, 16], strides = [1, 1]} : vector<8x64xf32> to vector<8x16xf32>
    %106 = arith.negf %105 : vector<8x16xf32>
    %107 = math.exp %106 : vector<8x16xf32>
    %cst_27 = arith.constant 1.000000e+00 : f32
    %108 = vector.broadcast %cst_27 : f32 to vector<8x16xf32>
    %109 = arith.addf %108, %107 : vector<8x16xf32>
    %110 = arith.divf %108, %109 : vector<8x16xf32>
    %111 = vector.extract_strided_slice %98 {offsets = [0, 32], sizes = [8, 16], strides = [1, 1]} : vector<8x64xf32> to vector<8x16xf32>
    %112 = math.tanh %111 : vector<8x16xf32>
    %113 = vector.extract_strided_slice %98 {offsets = [0, 48], sizes = [8, 16], strides = [1, 1]} : vector<8x64xf32> to vector<8x16xf32>
    %114 = arith.negf %113 : vector<8x16xf32>
    %115 = math.exp %114 : vector<8x16xf32>
    %cst_28 = arith.constant 1.000000e+00 : f32
    %116 = vector.broadcast %cst_28 : f32 to vector<8x16xf32>
    %117 = arith.addf %116, %115 : vector<8x16xf32>
    %118 = arith.divf %116, %117 : vector<8x16xf32>
    %119 = arith.mulf %110, %63 : vector<8x16xf32>
    %120 = arith.mulf %104, %112 : vector<8x16xf32>
    %121 = arith.addf %119, %120 : vector<8x16xf32>
    %122 = math.tanh %121 : vector<8x16xf32>
    %123 = arith.mulf %118, %122 : vector<8x16xf32>
    %c8 = arith.constant 8 : index
    %c0_29 = arith.constant 0 : index
    %124 = vector.load %arg13[%c8, %c0_29] : memref<64x32xf32, #tpu.memory_space<vmem>>, vector<8x16xf32>
    tpu.vector_store %arg13[%c8, %c0_29], %95 {strides = array<i32>} : memref<64x32xf32, #tpu.memory_space<vmem>>, vector<8x16xf32>,
    %c48 = arith.constant 48 : index
    %c16_30 = arith.constant 16 : index
    %125 = vector.load %arg13[%c48, %c16_30] : memref<64x32xf32, #tpu.memory_space<vmem>>, vector<8x16xf32>
    tpu.vector_store %arg13[%c48, %c16_30], %123 {strides = array<i32>} : memref<64x32xf32, #tpu.memory_space<vmem>>, vector<8x16xf32>,
    %126 = vector.extract_strided_slice %8 {offsets = [16, 0], sizes = [8, 64], strides = [1, 1]} : vector<64x128xf32> to vector<8x64xf32>
    %cst_31 = arith.constant dense<0.000000e+00> : vector<8x64xf32>
    %127 = tpu.matmul %95, %3, %cst_31 {dimension_numbers = #tpu.dot_dimension_numbers<[1], [0], [0], [1], [0, 0, 1, 1], [], []>} : vector<8x16xf32>, vector<16x64xf32>, vector<8x64xf32> -> vector<8x64xf32>
    %128 = arith.addf %126, %127 : vector<8x64xf32>
    %129 = vector.extract_strided_slice %128 {offsets = [0, 0], sizes = [8, 16], strides = [1, 1]} : vector<8x64xf32> to vector<8x16xf32>
    %130 = arith.negf %129 : vector<8x16xf32>
    %131 = math.exp %130 : vector<8x16xf32>
    %cst_32 = arith.constant 1.000000e+00 : f32
    %132 = vector.broadcast %cst_32 : f32 to vector<8x16xf32>
    %133 = arith.addf %132, %131 : vector<8x16xf32>
    %134 = arith.divf %132, %133 : vector<8x16xf32>
    %135 = vector.extract_strided_slice %128 {offsets = [0, 16], sizes = [8, 16], strides = [1, 1]} : vector<8x64xf32> to vector<8x16xf32>
    %136 = arith.negf %135 : vector<8x16xf32>
    %137 = math.exp %136 : vector<8x16xf32>
    %cst_33 = arith.constant 1.000000e+00 : f32
    %138 = vector.broadcast %cst_33 : f32 to vector<8x16xf32>
    %139 = arith.addf %138, %137 : vector<8x16xf32>
    %140 = arith.divf %138, %139 : vector<8x16xf32>
    %141 = vector.extract_strided_slice %128 {offsets = [0, 32], sizes = [8, 16], strides = [1, 1]} : vector<8x64xf32> to vector<8x16xf32>
    %142 = math.tanh %141 : vector<8x16xf32>
    %143 = vector.extract_strided_slice %128 {offsets = [0, 48], sizes = [8, 16], strides = [1, 1]} : vector<8x64xf32> to vector<8x16xf32>
    %144 = arith.negf %143 : vector<8x16xf32>
    %145 = math.exp %144 : vector<8x16xf32>
    %cst_34 = arith.constant 1.000000e+00 : f32
    %146 = vector.broadcast %cst_34 : f32 to vector<8x16xf32>
    %147 = arith.addf %146, %145 : vector<8x16xf32>
    %148 = arith.divf %146, %147 : vector<8x16xf32>
    %149 = arith.mulf %140, %93 : vector<8x16xf32>
    %150 = arith.mulf %134, %142 : vector<8x16xf32>
    %151 = arith.addf %149, %150 : vector<8x16xf32>
    %152 = math.tanh %151 : vector<8x16xf32>
    %153 = arith.mulf %148, %152 : vector<8x16xf32>
    %154 = vector.extract_strided_slice %8 {offsets = [40, 64], sizes = [8, 64], strides = [1, 1]} : vector<64x128xf32> to vector<8x64xf32>
    %cst_35 = arith.constant dense<0.000000e+00> : vector<8x64xf32>
    %155 = tpu.matmul %123, %9, %cst_35 {dimension_numbers = #tpu.dot_dimension_numbers<[1], [0], [0], [1], [0, 0, 1, 1], [], []>} : vector<8x16xf32>, vector<16x64xf32>, vector<8x64xf32> -> vector<8x64xf32>
    %156 = arith.addf %154, %155 : vector<8x64xf32>
    %157 = vector.extract_strided_slice %156 {offsets = [0, 0], sizes = [8, 16], strides = [1, 1]} : vector<8x64xf32> to vector<8x16xf32>
    %158 = arith.negf %157 : vector<8x16xf32>
    %159 = math.exp %158 : vector<8x16xf32>
    %cst_36 = arith.constant 1.000000e+00 : f32
    %160 = vector.broadcast %cst_36 : f32 to vector<8x16xf32>
    %161 = arith.addf %160, %159 : vector<8x16xf32>
    %162 = arith.divf %160, %161 : vector<8x16xf32>
    %163 = vector.extract_strided_slice %156 {offsets = [0, 16], sizes = [8, 16], strides = [1, 1]} : vector<8x64xf32> to vector<8x16xf32>
    %164 = arith.negf %163 : vector<8x16xf32>
    %165 = math.exp %164 : vector<8x16xf32>
    %cst_37 = arith.constant 1.000000e+00 : f32
    %166 = vector.broadcast %cst_37 : f32 to vector<8x16xf32>
    %167 = arith.addf %166, %165 : vector<8x16xf32>
    %168 = arith.divf %166, %167 : vector<8x16xf32>
    %169 = vector.extract_strided_slice %156 {offsets = [0, 32], sizes = [8, 16], strides = [1, 1]} : vector<8x64xf32> to vector<8x16xf32>
    %170 = math.tanh %169 : vector<8x16xf32>
    %171 = vector.extract_strided_slice %156 {offsets = [0, 48], sizes = [8, 16], strides = [1, 1]} : vector<8x64xf32> to vector<8x16xf32>
    %172 = arith.negf %171 : vector<8x16xf32>
    %173 = math.exp %172 : vector<8x16xf32>
    %cst_38 = arith.constant 1.000000e+00 : f32
    %174 = vector.broadcast %cst_38 : f32 to vector<8x16xf32>
    %175 = arith.addf %174, %173 : vector<8x16xf32>
    %176 = arith.divf %174, %175 : vector<8x16xf32>
    %177 = arith.mulf %168, %121 : vector<8x16xf32>
    %178 = arith.mulf %162, %170 : vector<8x16xf32>
    %179 = arith.addf %177, %178 : vector<8x16xf32>
    %180 = math.tanh %179 : vector<8x16xf32>
    %181 = arith.mulf %176, %180 : vector<8x16xf32>
    %c16_39 = arith.constant 16 : index
    %c0_40 = arith.constant 0 : index
    %182 = vector.load %arg13[%c16_39, %c0_40] : memref<64x32xf32, #tpu.memory_space<vmem>>, vector<8x16xf32>
    tpu.vector_store %arg13[%c16_39, %c0_40], %153 {strides = array<i32>} : memref<64x32xf32, #tpu.memory_space<vmem>>, vector<8x16xf32>,
    %c40 = arith.constant 40 : index
    %c16_41 = arith.constant 16 : index
    %183 = vector.load %arg13[%c40, %c16_41] : memref<64x32xf32, #tpu.memory_space<vmem>>, vector<8x16xf32>
    tpu.vector_store %arg13[%c40, %c16_41], %181 {strides = array<i32>} : memref<64x32xf32, #tpu.memory_space<vmem>>, vector<8x16xf32>,
    %184 = vector.extract_strided_slice %8 {offsets = [24, 0], sizes = [8, 64], strides = [1, 1]} : vector<64x128xf32> to vector<8x64xf32>
    %cst_42 = arith.constant dense<0.000000e+00> : vector<8x64xf32>
    %185 = tpu.matmul %153, %3, %cst_42 {dimension_numbers = #tpu.dot_dimension_numbers<[1], [0], [0], [1], [0, 0, 1, 1], [], []>} : vector<8x16xf32>, vector<16x64xf32>, vector<8x64xf32> -> vector<8x64xf32>
    %186 = arith.addf %184, %185 : vector<8x64xf32>
    %187 = vector.extract_strided_slice %186 {offsets = [0, 0], sizes = [8, 16], strides = [1, 1]} : vector<8x64xf32> to vector<8x16xf32>
    %188 = arith.negf %187 : vector<8x16xf32>
    %189 = math.exp %188 : vector<8x16xf32>
    %cst_43 = arith.constant 1.000000e+00 : f32
    %190 = vector.broadcast %cst_43 : f32 to vector<8x16xf32>
    %191 = arith.addf %190, %189 : vector<8x16xf32>
    %192 = arith.divf %190, %191 : vector<8x16xf32>
    %193 = vector.extract_strided_slice %186 {offsets = [0, 16], sizes = [8, 16], strides = [1, 1]} : vector<8x64xf32> to vector<8x16xf32>
    %194 = arith.negf %193 : vector<8x16xf32>
    %195 = math.exp %194 : vector<8x16xf32>
    %cst_44 = arith.constant 1.000000e+00 : f32
    %196 = vector.broadcast %cst_44 : f32 to vector<8x16xf32>
    %197 = arith.addf %196, %195 : vector<8x16xf32>
    %198 = arith.divf %196, %197 : vector<8x16xf32>
    %199 = vector.extract_strided_slice %186 {offsets = [0, 32], sizes = [8, 16], strides = [1, 1]} : vector<8x64xf32> to vector<8x16xf32>
    %200 = math.tanh %199 : vector<8x16xf32>
    %201 = vector.extract_strided_slice %186 {offsets = [0, 48], sizes = [8, 16], strides = [1, 1]} : vector<8x64xf32> to vector<8x16xf32>
    %202 = arith.negf %201 : vector<8x16xf32>
    %203 = math.exp %202 : vector<8x16xf32>
    %cst_45 = arith.constant 1.000000e+00 : f32
    %204 = vector.broadcast %cst_45 : f32 to vector<8x16xf32>
    %205 = arith.addf %204, %203 : vector<8x16xf32>
    %206 = arith.divf %204, %205 : vector<8x16xf32>
    %207 = arith.mulf %198, %151 : vector<8x16xf32>
    %208 = arith.mulf %192, %200 : vector<8x16xf32>
    %209 = arith.addf %207, %208 : vector<8x16xf32>
    %210 = math.tanh %209 : vector<8x16xf32>
    %211 = arith.mulf %206, %210 : vector<8x16xf32>
    %212 = vector.extract_strided_slice %8 {offsets = [32, 64], sizes = [8, 64], strides = [1, 1]} : vector<64x128xf32> to vector<8x64xf32>
    %cst_46 = arith.constant dense<0.000000e+00> : vector<8x64xf32>
    %213 = tpu.matmul %181, %9, %cst_46 {dimension_numbers = #tpu.dot_dimension_numbers<[1], [0], [0], [1], [0, 0, 1, 1], [], []>} : vector<8x16xf32>, vector<16x64xf32>, vector<8x64xf32> -> vector<8x64xf32>
    %214 = arith.addf %212, %213 : vector<8x64xf32>
    %215 = vector.extract_strided_slice %214 {offsets = [0, 0], sizes = [8, 16], strides = [1, 1]} : vector<8x64xf32> to vector<8x16xf32>
    %216 = arith.negf %215 : vector<8x16xf32>
    %217 = math.exp %216 : vector<8x16xf32>
    %cst_47 = arith.constant 1.000000e+00 : f32
    %218 = vector.broadcast %cst_47 : f32 to vector<8x16xf32>
    %219 = arith.addf %218, %217 : vector<8x16xf32>
    %220 = arith.divf %218, %219 : vector<8x16xf32>
    %221 = vector.extract_strided_slice %214 {offsets = [0, 16], sizes = [8, 16], strides = [1, 1]} : vector<8x64xf32> to vector<8x16xf32>
    %222 = arith.negf %221 : vector<8x16xf32>
    %223 = math.exp %222 : vector<8x16xf32>
    %cst_48 = arith.constant 1.000000e+00 : f32
    %224 = vector.broadcast %cst_48 : f32 to vector<8x16xf32>
    %225 = arith.addf %224, %223 : vector<8x16xf32>
    %226 = arith.divf %224, %225 : vector<8x16xf32>
    %227 = vector.extract_strided_slice %214 {offsets = [0, 32], sizes = [8, 16], strides = [1, 1]} : vector<8x64xf32> to vector<8x16xf32>
    %228 = math.tanh %227 : vector<8x16xf32>
    %229 = vector.extract_strided_slice %214 {offsets = [0, 48], sizes = [8, 16], strides = [1, 1]} : vector<8x64xf32> to vector<8x16xf32>
    %230 = arith.negf %229 : vector<8x16xf32>
    %231 = math.exp %230 : vector<8x16xf32>
    %cst_49 = arith.constant 1.000000e+00 : f32
    %232 = vector.broadcast %cst_49 : f32 to vector<8x16xf32>
    %233 = arith.addf %232, %231 : vector<8x16xf32>
    %234 = arith.divf %232, %233 : vector<8x16xf32>
    %235 = arith.mulf %226, %179 : vector<8x16xf32>
    %236 = arith.mulf %220, %228 : vector<8x16xf32>
    %237 = arith.addf %235, %236 : vector<8x16xf32>
    %238 = math.tanh %237 : vector<8x16xf32>
    %239 = arith.mulf %234, %238 : vector<8x16xf32>
    %c24 = arith.constant 24 : index
    %c0_50 = arith.constant 0 : index
    %240 = vector.load %arg13[%c24, %c0_50] : memref<64x32xf32, #tpu.memory_space<vmem>>, vector<8x16xf32>
    tpu.vector_store %arg13[%c24, %c0_50], %211 {strides = array<i32>} : memref<64x32xf32, #tpu.memory_space<vmem>>, vector<8x16xf32>,
    %c32 = arith.constant 32 : index
    %c16_51 = arith.constant 16 : index
    %241 = vector.load %arg13[%c32, %c16_51] : memref<64x32xf32, #tpu.memory_space<vmem>>, vector<8x16xf32>
    tpu.vector_store %arg13[%c32, %c16_51], %239 {strides = array<i32>} : memref<64x32xf32, #tpu.memory_space<vmem>>, vector<8x16xf32>,
    %242 = vector.extract_strided_slice %8 {offsets = [32, 0], sizes = [8, 64], strides = [1, 1]} : vector<64x128xf32> to vector<8x64xf32>
    %cst_52 = arith.constant dense<0.000000e+00> : vector<8x64xf32>
    %243 = tpu.matmul %211, %3, %cst_52 {dimension_numbers = #tpu.dot_dimension_numbers<[1], [0], [0], [1], [0, 0, 1, 1], [], []>} : vector<8x16xf32>, vector<16x64xf32>, vector<8x64xf32> -> vector<8x64xf32>
    %244 = arith.addf %242, %243 : vector<8x64xf32>
    %245 = vector.extract_strided_slice %244 {offsets = [0, 0], sizes = [8, 16], strides = [1, 1]} : vector<8x64xf32> to vector<8x16xf32>
    %246 = arith.negf %245 : vector<8x16xf32>
    %247 = math.exp %246 : vector<8x16xf32>
    %cst_53 = arith.constant 1.000000e+00 : f32
    %248 = vector.broadcast %cst_53 : f32 to vector<8x16xf32>
    %249 = arith.addf %248, %247 : vector<8x16xf32>
    %250 = arith.divf %248, %249 : vector<8x16xf32>
    %251 = vector.extract_strided_slice %244 {offsets = [0, 16], sizes = [8, 16], strides = [1, 1]} : vector<8x64xf32> to vector<8x16xf32>
    %252 = arith.negf %251 : vector<8x16xf32>
    %253 = math.exp %252 : vector<8x16xf32>
    %cst_54 = arith.constant 1.000000e+00 : f32
    %254 = vector.broadcast %cst_54 : f32 to vector<8x16xf32>
    %255 = arith.addf %254, %253 : vector<8x16xf32>
    %256 = arith.divf %254, %255 : vector<8x16xf32>
    %257 = vector.extract_strided_slice %244 {offsets = [0, 32], sizes = [8, 16], strides = [1, 1]} : vector<8x64xf32> to vector<8x16xf32>
    %258 = math.tanh %257 : vector<8x16xf32>
    %259 = vector.extract_strided_slice %244 {offsets = [0, 48], sizes = [8, 16], strides = [1, 1]} : vector<8x64xf32> to vector<8x16xf32>
    %260 = arith.negf %259 : vector<8x16xf32>
    %261 = math.exp %260 : vector<8x16xf32>
    %cst_55 = arith.constant 1.000000e+00 : f32
    %262 = vector.broadcast %cst_55 : f32 to vector<8x16xf32>
    %263 = arith.addf %262, %261 : vector<8x16xf32>
    %264 = arith.divf %262, %263 : vector<8x16xf32>
    %265 = arith.mulf %256, %209 : vector<8x16xf32>
    %266 = arith.mulf %250, %258 : vector<8x16xf32>
    %267 = arith.addf %265, %266 : vector<8x16xf32>
    %268 = math.tanh %267 : vector<8x16xf32>
    %269 = arith.mulf %264, %268 : vector<8x16xf32>
    %270 = vector.extract_strided_slice %8 {offsets = [24, 64], sizes = [8, 64], strides = [1, 1]} : vector<64x128xf32> to vector<8x64xf32>
    %cst_56 = arith.constant dense<0.000000e+00> : vector<8x64xf32>
    %271 = tpu.matmul %239, %9, %cst_56 {dimension_numbers = #tpu.dot_dimension_numbers<[1], [0], [0], [1], [0, 0, 1, 1], [], []>} : vector<8x16xf32>, vector<16x64xf32>, vector<8x64xf32> -> vector<8x64xf32>
    %272 = arith.addf %270, %271 : vector<8x64xf32>
    %273 = vector.extract_strided_slice %272 {offsets = [0, 0], sizes = [8, 16], strides = [1, 1]} : vector<8x64xf32> to vector<8x16xf32>
    %274 = arith.negf %273 : vector<8x16xf32>
    %275 = math.exp %274 : vector<8x16xf32>
    %cst_57 = arith.constant 1.000000e+00 : f32
    %276 = vector.broadcast %cst_57 : f32 to vector<8x16xf32>
    %277 = arith.addf %276, %275 : vector<8x16xf32>
    %278 = arith.divf %276, %277 : vector<8x16xf32>
    %279 = vector.extract_strided_slice %272 {offsets = [0, 16], sizes = [8, 16], strides = [1, 1]} : vector<8x64xf32> to vector<8x16xf32>
    %280 = arith.negf %279 : vector<8x16xf32>
    %281 = math.exp %280 : vector<8x16xf32>
    %cst_58 = arith.constant 1.000000e+00 : f32
    %282 = vector.broadcast %cst_58 : f32 to vector<8x16xf32>
    %283 = arith.addf %282, %281 : vector<8x16xf32>
    %284 = arith.divf %282, %283 : vector<8x16xf32>
    %285 = vector.extract_strided_slice %272 {offsets = [0, 32], sizes = [8, 16], strides = [1, 1]} : vector<8x64xf32> to vector<8x16xf32>
    %286 = math.tanh %285 : vector<8x16xf32>
    %287 = vector.extract_strided_slice %272 {offsets = [0, 48], sizes = [8, 16], strides = [1, 1]} : vector<8x64xf32> to vector<8x16xf32>
    %288 = arith.negf %287 : vector<8x16xf32>
    %289 = math.exp %288 : vector<8x16xf32>
    %cst_59 = arith.constant 1.000000e+00 : f32
    %290 = vector.broadcast %cst_59 : f32 to vector<8x16xf32>
    %291 = arith.addf %290, %289 : vector<8x16xf32>
    %292 = arith.divf %290, %291 : vector<8x16xf32>
    %293 = arith.mulf %284, %237 : vector<8x16xf32>
    %294 = arith.mulf %278, %286 : vector<8x16xf32>
    %295 = arith.addf %293, %294 : vector<8x16xf32>
    %296 = math.tanh %295 : vector<8x16xf32>
    %297 = arith.mulf %292, %296 : vector<8x16xf32>
    %c32_60 = arith.constant 32 : index
    %c0_61 = arith.constant 0 : index
    %298 = vector.load %arg13[%c32_60, %c0_61] : memref<64x32xf32, #tpu.memory_space<vmem>>, vector<8x16xf32>
    tpu.vector_store %arg13[%c32_60, %c0_61], %269 {strides = array<i32>} : memref<64x32xf32, #tpu.memory_space<vmem>>, vector<8x16xf32>,
    %c24_62 = arith.constant 24 : index
    %c16_63 = arith.constant 16 : index
    %299 = vector.load %arg13[%c24_62, %c16_63] : memref<64x32xf32, #tpu.memory_space<vmem>>, vector<8x16xf32>
    tpu.vector_store %arg13[%c24_62, %c16_63], %297 {strides = array<i32>} : memref<64x32xf32, #tpu.memory_space<vmem>>, vector<8x16xf32>,
    %300 = vector.extract_strided_slice %8 {offsets = [40, 0], sizes = [8, 64], strides = [1, 1]} : vector<64x128xf32> to vector<8x64xf32>
    %cst_64 = arith.constant dense<0.000000e+00> : vector<8x64xf32>
    %301 = tpu.matmul %269, %3, %cst_64 {dimension_numbers = #tpu.dot_dimension_numbers<[1], [0], [0], [1], [0, 0, 1, 1], [], []>} : vector<8x16xf32>, vector<16x64xf32>, vector<8x64xf32> -> vector<8x64xf32>
    %302 = arith.addf %300, %301 : vector<8x64xf32>
    %303 = vector.extract_strided_slice %302 {offsets = [0, 0], sizes = [8, 16], strides = [1, 1]} : vector<8x64xf32> to vector<8x16xf32>
    %304 = arith.negf %303 : vector<8x16xf32>
    %305 = math.exp %304 : vector<8x16xf32>
    %cst_65 = arith.constant 1.000000e+00 : f32
    %306 = vector.broadcast %cst_65 : f32 to vector<8x16xf32>
    %307 = arith.addf %306, %305 : vector<8x16xf32>
    %308 = arith.divf %306, %307 : vector<8x16xf32>
    %309 = vector.extract_strided_slice %302 {offsets = [0, 16], sizes = [8, 16], strides = [1, 1]} : vector<8x64xf32> to vector<8x16xf32>
    %310 = arith.negf %309 : vector<8x16xf32>
    %311 = math.exp %310 : vector<8x16xf32>
    %cst_66 = arith.constant 1.000000e+00 : f32
    %312 = vector.broadcast %cst_66 : f32 to vector<8x16xf32>
    %313 = arith.addf %312, %311 : vector<8x16xf32>
    %314 = arith.divf %312, %313 : vector<8x16xf32>
    %315 = vector.extract_strided_slice %302 {offsets = [0, 32], sizes = [8, 16], strides = [1, 1]} : vector<8x64xf32> to vector<8x16xf32>
    %316 = math.tanh %315 : vector<8x16xf32>
    %317 = vector.extract_strided_slice %302 {offsets = [0, 48], sizes = [8, 16], strides = [1, 1]} : vector<8x64xf32> to vector<8x16xf32>
    %318 = arith.negf %317 : vector<8x16xf32>
    %319 = math.exp %318 : vector<8x16xf32>
    %cst_67 = arith.constant 1.000000e+00 : f32
    %320 = vector.broadcast %cst_67 : f32 to vector<8x16xf32>
    %321 = arith.addf %320, %319 : vector<8x16xf32>
    %322 = arith.divf %320, %321 : vector<8x16xf32>
    %323 = arith.mulf %314, %267 : vector<8x16xf32>
    %324 = arith.mulf %308, %316 : vector<8x16xf32>
    %325 = arith.addf %323, %324 : vector<8x16xf32>
    %326 = math.tanh %325 : vector<8x16xf32>
    %327 = arith.mulf %322, %326 : vector<8x16xf32>
    %328 = vector.extract_strided_slice %8 {offsets = [16, 64], sizes = [8, 64], strides = [1, 1]} : vector<64x128xf32> to vector<8x64xf32>
    %cst_68 = arith.constant dense<0.000000e+00> : vector<8x64xf32>
    %329 = tpu.matmul %297, %9, %cst_68 {dimension_numbers = #tpu.dot_dimension_numbers<[1], [0], [0], [1], [0, 0, 1, 1], [], []>} : vector<8x16xf32>, vector<16x64xf32>, vector<8x64xf32> -> vector<8x64xf32>
    %330 = arith.addf %328, %329 : vector<8x64xf32>
    %331 = vector.extract_strided_slice %330 {offsets = [0, 0], sizes = [8, 16], strides = [1, 1]} : vector<8x64xf32> to vector<8x16xf32>
    %332 = arith.negf %331 : vector<8x16xf32>
    %333 = math.exp %332 : vector<8x16xf32>
    %cst_69 = arith.constant 1.000000e+00 : f32
    %334 = vector.broadcast %cst_69 : f32 to vector<8x16xf32>
    %335 = arith.addf %334, %333 : vector<8x16xf32>
    %336 = arith.divf %334, %335 : vector<8x16xf32>
    %337 = vector.extract_strided_slice %330 {offsets = [0, 16], sizes = [8, 16], strides = [1, 1]} : vector<8x64xf32> to vector<8x16xf32>
    %338 = arith.negf %337 : vector<8x16xf32>
    %339 = math.exp %338 : vector<8x16xf32>
    %cst_70 = arith.constant 1.000000e+00 : f32
    %340 = vector.broadcast %cst_70 : f32 to vector<8x16xf32>
    %341 = arith.addf %340, %339 : vector<8x16xf32>
    %342 = arith.divf %340, %341 : vector<8x16xf32>
    %343 = vector.extract_strided_slice %330 {offsets = [0, 32], sizes = [8, 16], strides = [1, 1]} : vector<8x64xf32> to vector<8x16xf32>
    %344 = math.tanh %343 : vector<8x16xf32>
    %345 = vector.extract_strided_slice %330 {offsets = [0, 48], sizes = [8, 16], strides = [1, 1]} : vector<8x64xf32> to vector<8x16xf32>
    %346 = arith.negf %345 : vector<8x16xf32>
    %347 = math.exp %346 : vector<8x16xf32>
    %cst_71 = arith.constant 1.000000e+00 : f32
    %348 = vector.broadcast %cst_71 : f32 to vector<8x16xf32>
    %349 = arith.addf %348, %347 : vector<8x16xf32>
    %350 = arith.divf %348, %349 : vector<8x16xf32>
    %351 = arith.mulf %342, %295 : vector<8x16xf32>
    %352 = arith.mulf %336, %344 : vector<8x16xf32>
    %353 = arith.addf %351, %352 : vector<8x16xf32>
    %354 = math.tanh %353 : vector<8x16xf32>
    %355 = arith.mulf %350, %354 : vector<8x16xf32>
    %c40_72 = arith.constant 40 : index
    %c0_73 = arith.constant 0 : index
    %356 = vector.load %arg13[%c40_72, %c0_73] : memref<64x32xf32, #tpu.memory_space<vmem>>, vector<8x16xf32>
    tpu.vector_store %arg13[%c40_72, %c0_73], %327 {strides = array<i32>} : memref<64x32xf32, #tpu.memory_space<vmem>>, vector<8x16xf32>,
    %c16_74 = arith.constant 16 : index
    %c16_75 = arith.constant 16 : index
    %357 = vector.load %arg13[%c16_74, %c16_75] : memref<64x32xf32, #tpu.memory_space<vmem>>, vector<8x16xf32>
    tpu.vector_store %arg13[%c16_74, %c16_75], %355 {strides = array<i32>} : memref<64x32xf32, #tpu.memory_space<vmem>>, vector<8x16xf32>,
    %358 = vector.extract_strided_slice %8 {offsets = [48, 0], sizes = [8, 64], strides = [1, 1]} : vector<64x128xf32> to vector<8x64xf32>
    %cst_76 = arith.constant dense<0.000000e+00> : vector<8x64xf32>
    %359 = tpu.matmul %327, %3, %cst_76 {dimension_numbers = #tpu.dot_dimension_numbers<[1], [0], [0], [1], [0, 0, 1, 1], [], []>} : vector<8x16xf32>, vector<16x64xf32>, vector<8x64xf32> -> vector<8x64xf32>
    %360 = arith.addf %358, %359 : vector<8x64xf32>
    %361 = vector.extract_strided_slice %360 {offsets = [0, 0], sizes = [8, 16], strides = [1, 1]} : vector<8x64xf32> to vector<8x16xf32>
    %362 = arith.negf %361 : vector<8x16xf32>
    %363 = math.exp %362 : vector<8x16xf32>
    %cst_77 = arith.constant 1.000000e+00 : f32
    %364 = vector.broadcast %cst_77 : f32 to vector<8x16xf32>
    %365 = arith.addf %364, %363 : vector<8x16xf32>
    %366 = arith.divf %364, %365 : vector<8x16xf32>
    %367 = vector.extract_strided_slice %360 {offsets = [0, 16], sizes = [8, 16], strides = [1, 1]} : vector<8x64xf32> to vector<8x16xf32>
    %368 = arith.negf %367 : vector<8x16xf32>
    %369 = math.exp %368 : vector<8x16xf32>
    %cst_78 = arith.constant 1.000000e+00 : f32
    %370 = vector.broadcast %cst_78 : f32 to vector<8x16xf32>
    %371 = arith.addf %370, %369 : vector<8x16xf32>
    %372 = arith.divf %370, %371 : vector<8x16xf32>
    %373 = vector.extract_strided_slice %360 {offsets = [0, 32], sizes = [8, 16], strides = [1, 1]} : vector<8x64xf32> to vector<8x16xf32>
    %374 = math.tanh %373 : vector<8x16xf32>
    %375 = vector.extract_strided_slice %360 {offsets = [0, 48], sizes = [8, 16], strides = [1, 1]} : vector<8x64xf32> to vector<8x16xf32>
    %376 = arith.negf %375 : vector<8x16xf32>
    %377 = math.exp %376 : vector<8x16xf32>
    %cst_79 = arith.constant 1.000000e+00 : f32
    %378 = vector.broadcast %cst_79 : f32 to vector<8x16xf32>
    %379 = arith.addf %378, %377 : vector<8x16xf32>
    %380 = arith.divf %378, %379 : vector<8x16xf32>
    %381 = arith.mulf %372, %325 : vector<8x16xf32>
    %382 = arith.mulf %366, %374 : vector<8x16xf32>
    %383 = arith.addf %381, %382 : vector<8x16xf32>
    %384 = math.tanh %383 : vector<8x16xf32>
    %385 = arith.mulf %380, %384 : vector<8x16xf32>
    %386 = vector.extract_strided_slice %8 {offsets = [8, 64], sizes = [8, 64], strides = [1, 1]} : vector<64x128xf32> to vector<8x64xf32>
    %cst_80 = arith.constant dense<0.000000e+00> : vector<8x64xf32>
    %387 = tpu.matmul %355, %9, %cst_80 {dimension_numbers = #tpu.dot_dimension_numbers<[1], [0], [0], [1], [0, 0, 1, 1], [], []>} : vector<8x16xf32>, vector<16x64xf32>, vector<8x64xf32> -> vector<8x64xf32>
    %388 = arith.addf %386, %387 : vector<8x64xf32>
    %389 = vector.extract_strided_slice %388 {offsets = [0, 0], sizes = [8, 16], strides = [1, 1]} : vector<8x64xf32> to vector<8x16xf32>
    %390 = arith.negf %389 : vector<8x16xf32>
    %391 = math.exp %390 : vector<8x16xf32>
    %cst_81 = arith.constant 1.000000e+00 : f32
    %392 = vector.broadcast %cst_81 : f32 to vector<8x16xf32>
    %393 = arith.addf %392, %391 : vector<8x16xf32>
    %394 = arith.divf %392, %393 : vector<8x16xf32>
    %395 = vector.extract_strided_slice %388 {offsets = [0, 16], sizes = [8, 16], strides = [1, 1]} : vector<8x64xf32> to vector<8x16xf32>
    %396 = arith.negf %395 : vector<8x16xf32>
    %397 = math.exp %396 : vector<8x16xf32>
    %cst_82 = arith.constant 1.000000e+00 : f32
    %398 = vector.broadcast %cst_82 : f32 to vector<8x16xf32>
    %399 = arith.addf %398, %397 : vector<8x16xf32>
    %400 = arith.divf %398, %399 : vector<8x16xf32>
    %401 = vector.extract_strided_slice %388 {offsets = [0, 32], sizes = [8, 16], strides = [1, 1]} : vector<8x64xf32> to vector<8x16xf32>
    %402 = math.tanh %401 : vector<8x16xf32>
    %403 = vector.extract_strided_slice %388 {offsets = [0, 48], sizes = [8, 16], strides = [1, 1]} : vector<8x64xf32> to vector<8x16xf32>
    %404 = arith.negf %403 : vector<8x16xf32>
    %405 = math.exp %404 : vector<8x16xf32>
    %cst_83 = arith.constant 1.000000e+00 : f32
    %406 = vector.broadcast %cst_83 : f32 to vector<8x16xf32>
    %407 = arith.addf %406, %405 : vector<8x16xf32>
    %408 = arith.divf %406, %407 : vector<8x16xf32>
    %409 = arith.mulf %400, %353 : vector<8x16xf32>
    %410 = arith.mulf %394, %402 : vector<8x16xf32>
    %411 = arith.addf %409, %410 : vector<8x16xf32>
    %412 = math.tanh %411 : vector<8x16xf32>
    %413 = arith.mulf %408, %412 : vector<8x16xf32>
    %c48_84 = arith.constant 48 : index
    %c0_85 = arith.constant 0 : index
    %414 = vector.load %arg13[%c48_84, %c0_85] : memref<64x32xf32, #tpu.memory_space<vmem>>, vector<8x16xf32>
    tpu.vector_store %arg13[%c48_84, %c0_85], %385 {strides = array<i32>} : memref<64x32xf32, #tpu.memory_space<vmem>>, vector<8x16xf32>,
    %c8_86 = arith.constant 8 : index
    %c16_87 = arith.constant 16 : index
    %415 = vector.load %arg13[%c8_86, %c16_87] : memref<64x32xf32, #tpu.memory_space<vmem>>, vector<8x16xf32>
    tpu.vector_store %arg13[%c8_86, %c16_87], %413 {strides = array<i32>} : memref<64x32xf32, #tpu.memory_space<vmem>>, vector<8x16xf32>,
    %416 = vector.extract_strided_slice %8 {offsets = [56, 0], sizes = [8, 64], strides = [1, 1]} : vector<64x128xf32> to vector<8x64xf32>
    %cst_88 = arith.constant dense<0.000000e+00> : vector<8x64xf32>
    %417 = tpu.matmul %385, %3, %cst_88 {dimension_numbers = #tpu.dot_dimension_numbers<[1], [0], [0], [1], [0, 0, 1, 1], [], []>} : vector<8x16xf32>, vector<16x64xf32>, vector<8x64xf32> -> vector<8x64xf32>
    %418 = arith.addf %416, %417 : vector<8x64xf32>
    %419 = vector.extract_strided_slice %418 {offsets = [0, 0], sizes = [8, 16], strides = [1, 1]} : vector<8x64xf32> to vector<8x16xf32>
    %420 = arith.negf %419 : vector<8x16xf32>
    %421 = math.exp %420 : vector<8x16xf32>
    %cst_89 = arith.constant 1.000000e+00 : f32
    %422 = vector.broadcast %cst_89 : f32 to vector<8x16xf32>
    %423 = arith.addf %422, %421 : vector<8x16xf32>
    %424 = arith.divf %422, %423 : vector<8x16xf32>
    %425 = vector.extract_strided_slice %418 {offsets = [0, 16], sizes = [8, 16], strides = [1, 1]} : vector<8x64xf32> to vector<8x16xf32>
    %426 = arith.negf %425 : vector<8x16xf32>
    %427 = math.exp %426 : vector<8x16xf32>
    %cst_90 = arith.constant 1.000000e+00 : f32
    %428 = vector.broadcast %cst_90 : f32 to vector<8x16xf32>
    %429 = arith.addf %428, %427 : vector<8x16xf32>
    %430 = arith.divf %428, %429 : vector<8x16xf32>
    %431 = vector.extract_strided_slice %418 {offsets = [0, 32], sizes = [8, 16], strides = [1, 1]} : vector<8x64xf32> to vector<8x16xf32>
    %432 = math.tanh %431 : vector<8x16xf32>
    %433 = vector.extract_strided_slice %418 {offsets = [0, 48], sizes = [8, 16], strides = [1, 1]} : vector<8x64xf32> to vector<8x16xf32>
    %434 = arith.negf %433 : vector<8x16xf32>
    %435 = math.exp %434 : vector<8x16xf32>
    %cst_91 = arith.constant 1.000000e+00 : f32
    %436 = vector.broadcast %cst_91 : f32 to vector<8x16xf32>
    %437 = arith.addf %436, %435 : vector<8x16xf32>
    %438 = arith.divf %436, %437 : vector<8x16xf32>
    %439 = arith.mulf %430, %383 : vector<8x16xf32>
    %440 = arith.mulf %424, %432 : vector<8x16xf32>
    %441 = arith.addf %439, %440 : vector<8x16xf32>
    %442 = math.tanh %441 : vector<8x16xf32>
    %443 = arith.mulf %438, %442 : vector<8x16xf32>
    %444 = vector.extract_strided_slice %8 {offsets = [0, 64], sizes = [8, 64], strides = [1, 1]} : vector<64x128xf32> to vector<8x64xf32>
    %cst_92 = arith.constant dense<0.000000e+00> : vector<8x64xf32>
    %445 = tpu.matmul %413, %9, %cst_92 {dimension_numbers = #tpu.dot_dimension_numbers<[1], [0], [0], [1], [0, 0, 1, 1], [], []>} : vector<8x16xf32>, vector<16x64xf32>, vector<8x64xf32> -> vector<8x64xf32>
    %446 = arith.addf %444, %445 : vector<8x64xf32>
    %447 = vector.extract_strided_slice %446 {offsets = [0, 0], sizes = [8, 16], strides = [1, 1]} : vector<8x64xf32> to vector<8x16xf32>
    %448 = arith.negf %447 : vector<8x16xf32>
    %449 = math.exp %448 : vector<8x16xf32>
    %cst_93 = arith.constant 1.000000e+00 : f32
    %450 = vector.broadcast %cst_93 : f32 to vector<8x16xf32>
    %451 = arith.addf %450, %449 : vector<8x16xf32>
    %452 = arith.divf %450, %451 : vector<8x16xf32>
    %453 = vector.extract_strided_slice %446 {offsets = [0, 16], sizes = [8, 16], strides = [1, 1]} : vector<8x64xf32> to vector<8x16xf32>
    %454 = arith.negf %453 : vector<8x16xf32>
    %455 = math.exp %454 : vector<8x16xf32>
    %cst_94 = arith.constant 1.000000e+00 : f32
    %456 = vector.broadcast %cst_94 : f32 to vector<8x16xf32>
    %457 = arith.addf %456, %455 : vector<8x16xf32>
    %458 = arith.divf %456, %457 : vector<8x16xf32>
    %459 = vector.extract_strided_slice %446 {offsets = [0, 32], sizes = [8, 16], strides = [1, 1]} : vector<8x64xf32> to vector<8x16xf32>
    %460 = math.tanh %459 : vector<8x16xf32>
    %461 = vector.extract_strided_slice %446 {offsets = [0, 48], sizes = [8, 16], strides = [1, 1]} : vector<8x64xf32> to vector<8x16xf32>
    %462 = arith.negf %461 : vector<8x16xf32>
    %463 = math.exp %462 : vector<8x16xf32>
    %cst_95 = arith.constant 1.000000e+00 : f32
    %464 = vector.broadcast %cst_95 : f32 to vector<8x16xf32>
    %465 = arith.addf %464, %463 : vector<8x16xf32>
    %466 = arith.divf %464, %465 : vector<8x16xf32>
    %467 = arith.mulf %458, %411 : vector<8x16xf32>
    %468 = arith.mulf %452, %460 : vector<8x16xf32>
    %469 = arith.addf %467, %468 : vector<8x16xf32>
    %470 = math.tanh %469 : vector<8x16xf32>
    %471 = arith.mulf %466, %470 : vector<8x16xf32>
    %c56_96 = arith.constant 56 : index
    %c0_97 = arith.constant 0 : index
    %472 = vector.load %arg13[%c56_96, %c0_97] : memref<64x32xf32, #tpu.memory_space<vmem>>, vector<8x16xf32>
    tpu.vector_store %arg13[%c56_96, %c0_97], %443 {strides = array<i32>} : memref<64x32xf32, #tpu.memory_space<vmem>>, vector<8x16xf32>,
    %c0_98 = arith.constant 0 : index
    %c16_99 = arith.constant 16 : index
    %473 = vector.load %arg13[%c0_98, %c16_99] : memref<64x32xf32, #tpu.memory_space<vmem>>, vector<8x16xf32>
    tpu.vector_store %arg13[%c0_98, %c16_99], %471 {strides = array<i32>} : memref<64x32xf32, #tpu.memory_space<vmem>>, vector<8x16xf32>,
    %c0_100 = arith.constant 0 : index
    %c0_101 = arith.constant 0 : index
    %474 = vector.load %arg13[%c0_100, %c0_101] : memref<64x32xf32, #tpu.memory_space<vmem>>, vector<64x32xf32>
    %c0_102 = arith.constant 0 : index
    %c0_103 = arith.constant 0 : index
    %475 = vector.load %arg7[%c0_102, %c0_103] : memref<16x64xf32, #tpu.memory_space<vmem>>, vector<16x64xf32>
    %c0_104 = arith.constant 0 : index
    %c0_105 = arith.constant 0 : index
    %476 = vector.load %arg6[%c0_104, %c0_105] : memref<32x128xf32, #tpu.memory_space<vmem>>, vector<32x128xf32>
    %cst_106 = arith.constant dense<0.000000e+00> : vector<64x128xf32>
    %477 = tpu.matmul %474, %476, %cst_106 {dimension_numbers = #tpu.dot_dimension_numbers<[1], [0], [0], [1], [0, 0, 1, 1], [], []>} : vector<64x32xf32>, vector<32x128xf32>, vector<64x128xf32> -> vector<64x128xf32>
    %c0_107 = arith.constant 0 : index
    %c0_108 = arith.constant 0 : index
    %478 = vector.load %arg9[%c0_107, %c0_108] : memref<1x128xf32, #tpu.memory_space<vmem>>, vector<1x128xf32>
    %479 = vector.broadcast %478 : vector<1x128xf32> to vector<64x128xf32>
    %480 = arith.addf %477, %479 : vector<64x128xf32>
    %481 = vector.extract_strided_slice %480 {offsets = [0, 0], sizes = [8, 64], strides = [1, 1]} : vector<64x128xf32> to vector<8x64xf32>
    %cst_109 = arith.constant dense<0.000000e+00> : vector<8x64xf32>
    %482 = tpu.matmul %0, %475, %cst_109 {dimension_numbers = #tpu.dot_dimension_numbers<[1], [0], [0], [1], [0, 0, 1, 1], [], []>} : vector<8x16xf32>, vector<16x64xf32>, vector<8x64xf32> -> vector<8x64xf32>
    %483 = arith.addf %481, %482 : vector<8x64xf32>
    %484 = vector.extract_strided_slice %483 {offsets = [0, 0], sizes = [8, 16], strides = [1, 1]} : vector<8x64xf32> to vector<8x16xf32>
    %485 = arith.negf %484 : vector<8x16xf32>
    %486 = math.exp %485 : vector<8x16xf32>
    %cst_110 = arith.constant 1.000000e+00 : f32
    %487 = vector.broadcast %cst_110 : f32 to vector<8x16xf32>
    %488 = arith.addf %487, %486 : vector<8x16xf32>
    %489 = arith.divf %487, %488 : vector<8x16xf32>
    %490 = vector.extract_strided_slice %483 {offsets = [0, 16], sizes = [8, 16], strides = [1, 1]} : vector<8x64xf32> to vector<8x16xf32>
    %491 = arith.negf %490 : vector<8x16xf32>
    %492 = math.exp %491 : vector<8x16xf32>
    %cst_111 = arith.constant 1.000000e+00 : f32
    %493 = vector.broadcast %cst_111 : f32 to vector<8x16xf32>
    %494 = arith.addf %493, %492 : vector<8x16xf32>
    %495 = arith.divf %493, %494 : vector<8x16xf32>
    %496 = vector.extract_strided_slice %483 {offsets = [0, 32], sizes = [8, 16], strides = [1, 1]} : vector<8x64xf32> to vector<8x16xf32>
    %497 = math.tanh %496 : vector<8x16xf32>
    %498 = vector.extract_strided_slice %483 {offsets = [0, 48], sizes = [8, 16], strides = [1, 1]} : vector<8x64xf32> to vector<8x16xf32>
    %499 = arith.negf %498 : vector<8x16xf32>
    %500 = math.exp %499 : vector<8x16xf32>
    %cst_112 = arith.constant 1.000000e+00 : f32
    %501 = vector.broadcast %cst_112 : f32 to vector<8x16xf32>
    %502 = arith.addf %501, %500 : vector<8x16xf32>
    %503 = arith.divf %501, %502 : vector<8x16xf32>
    %504 = arith.mulf %495, %0 : vector<8x16xf32>
    %505 = arith.mulf %489, %497 : vector<8x16xf32>
    %506 = arith.addf %504, %505 : vector<8x16xf32>
    %507 = math.tanh %506 : vector<8x16xf32>
    %508 = arith.mulf %503, %507 : vector<8x16xf32>
    %509 = vector.extract_strided_slice %480 {offsets = [8, 0], sizes = [8, 64], strides = [1, 1]} : vector<64x128xf32> to vector<8x64xf32>
    %cst_113 = arith.constant dense<0.000000e+00> : vector<8x64xf32>
    %510 = tpu.matmul %508, %475, %cst_113 {dimension_numbers = #tpu.dot_dimension_numbers<[1], [0], [0], [1], [0, 0, 1, 1], [], []>} : vector<8x16xf32>, vector<16x64xf32>, vector<8x64xf32> -> vector<8x64xf32>
    %511 = arith.addf %509, %510 : vector<8x64xf32>
    %512 = vector.extract_strided_slice %511 {offsets = [0, 0], sizes = [8, 16], strides = [1, 1]} : vector<8x64xf32> to vector<8x16xf32>
    %513 = arith.negf %512 : vector<8x16xf32>
    %514 = math.exp %513 : vector<8x16xf32>
    %cst_114 = arith.constant 1.000000e+00 : f32
    %515 = vector.broadcast %cst_114 : f32 to vector<8x16xf32>
    %516 = arith.addf %515, %514 : vector<8x16xf32>
    %517 = arith.divf %515, %516 : vector<8x16xf32>
    %518 = vector.extract_strided_slice %511 {offsets = [0, 16], sizes = [8, 16], strides = [1, 1]} : vector<8x64xf32> to vector<8x16xf32>
    %519 = arith.negf %518 : vector<8x16xf32>
    %520 = math.exp %519 : vector<8x16xf32>
    %cst_115 = arith.constant 1.000000e+00 : f32
    %521 = vector.broadcast %cst_115 : f32 to vector<8x16xf32>
    %522 = arith.addf %521, %520 : vector<8x16xf32>
    %523 = arith.divf %521, %522 : vector<8x16xf32>
    %524 = vector.extract_strided_slice %511 {offsets = [0, 32], sizes = [8, 16], strides = [1, 1]} : vector<8x64xf32> to vector<8x16xf32>
    %525 = math.tanh %524 : vector<8x16xf32>
    %526 = vector.extract_strided_slice %511 {offsets = [0, 48], sizes = [8, 16], strides = [1, 1]} : vector<8x64xf32> to vector<8x16xf32>
    %527 = arith.negf %526 : vector<8x16xf32>
    %528 = math.exp %527 : vector<8x16xf32>
    %cst_116 = arith.constant 1.000000e+00 : f32
    %529 = vector.broadcast %cst_116 : f32 to vector<8x16xf32>
    %530 = arith.addf %529, %528 : vector<8x16xf32>
    %531 = arith.divf %529, %530 : vector<8x16xf32>
    %532 = arith.mulf %523, %506 : vector<8x16xf32>
    %533 = arith.mulf %517, %525 : vector<8x16xf32>
    %534 = arith.addf %532, %533 : vector<8x16xf32>
    %535 = math.tanh %534 : vector<8x16xf32>
    %536 = arith.mulf %531, %535 : vector<8x16xf32>
    %537 = vector.extract_strided_slice %480 {offsets = [16, 0], sizes = [8, 64], strides = [1, 1]} : vector<64x128xf32> to vector<8x64xf32>
    %cst_117 = arith.constant dense<0.000000e+00> : vector<8x64xf32>
    %538 = tpu.matmul %536, %475, %cst_117 {dimension_numbers = #tpu.dot_dimension_numbers<[1], [0], [0], [1], [0, 0, 1, 1], [], []>} : vector<8x16xf32>, vector<16x64xf32>, vector<8x64xf32> -> vector<8x64xf32>
    %539 = arith.addf %537, %538 : vector<8x64xf32>
    %540 = vector.extract_strided_slice %539 {offsets = [0, 0], sizes = [8, 16], strides = [1, 1]} : vector<8x64xf32> to vector<8x16xf32>
    %541 = arith.negf %540 : vector<8x16xf32>
    %542 = math.exp %541 : vector<8x16xf32>
    %cst_118 = arith.constant 1.000000e+00 : f32
    %543 = vector.broadcast %cst_118 : f32 to vector<8x16xf32>
    %544 = arith.addf %543, %542 : vector<8x16xf32>
    %545 = arith.divf %543, %544 : vector<8x16xf32>
    %546 = vector.extract_strided_slice %539 {offsets = [0, 16], sizes = [8, 16], strides = [1, 1]} : vector<8x64xf32> to vector<8x16xf32>
    %547 = arith.negf %546 : vector<8x16xf32>
    %548 = math.exp %547 : vector<8x16xf32>
    %cst_119 = arith.constant 1.000000e+00 : f32
    %549 = vector.broadcast %cst_119 : f32 to vector<8x16xf32>
    %550 = arith.addf %549, %548 : vector<8x16xf32>
    %551 = arith.divf %549, %550 : vector<8x16xf32>
    %552 = vector.extract_strided_slice %539 {offsets = [0, 32], sizes = [8, 16], strides = [1, 1]} : vector<8x64xf32> to vector<8x16xf32>
    %553 = math.tanh %552 : vector<8x16xf32>
    %554 = vector.extract_strided_slice %539 {offsets = [0, 48], sizes = [8, 16], strides = [1, 1]} : vector<8x64xf32> to vector<8x16xf32>
    %555 = arith.negf %554 : vector<8x16xf32>
    %556 = math.exp %555 : vector<8x16xf32>
    %cst_120 = arith.constant 1.000000e+00 : f32
    %557 = vector.broadcast %cst_120 : f32 to vector<8x16xf32>
    %558 = arith.addf %557, %556 : vector<8x16xf32>
    %559 = arith.divf %557, %558 : vector<8x16xf32>
    %560 = arith.mulf %551, %534 : vector<8x16xf32>
    %561 = arith.mulf %545, %553 : vector<8x16xf32>
    %562 = arith.addf %560, %561 : vector<8x16xf32>
    %563 = math.tanh %562 : vector<8x16xf32>
    %564 = arith.mulf %559, %563 : vector<8x16xf32>
    %565 = vector.extract_strided_slice %480 {offsets = [24, 0], sizes = [8, 64], strides = [1, 1]} : vector<64x128xf32> to vector<8x64xf32>
    %cst_121 = arith.constant dense<0.000000e+00> : vector<8x64xf32>
    %566 = tpu.matmul %564, %475, %cst_121 {dimension_numbers = #tpu.dot_dimension_numbers<[1], [0], [0], [1], [0, 0, 1, 1], [], []>} : vector<8x16xf32>, vector<16x64xf32>, vector<8x64xf32> -> vector<8x64xf32>
    %567 = arith.addf %565, %566 : vector<8x64xf32>
    %568 = vector.extract_strided_slice %567 {offsets = [0, 0], sizes = [8, 16], strides = [1, 1]} : vector<8x64xf32> to vector<8x16xf32>
    %569 = arith.negf %568 : vector<8x16xf32>
    %570 = math.exp %569 : vector<8x16xf32>
    %cst_122 = arith.constant 1.000000e+00 : f32
    %571 = vector.broadcast %cst_122 : f32 to vector<8x16xf32>
    %572 = arith.addf %571, %570 : vector<8x16xf32>
    %573 = arith.divf %571, %572 : vector<8x16xf32>
    %574 = vector.extract_strided_slice %567 {offsets = [0, 16], sizes = [8, 16], strides = [1, 1]} : vector<8x64xf32> to vector<8x16xf32>
    %575 = arith.negf %574 : vector<8x16xf32>
    %576 = math.exp %575 : vector<8x16xf32>
    %cst_123 = arith.constant 1.000000e+00 : f32
    %577 = vector.broadcast %cst_123 : f32 to vector<8x16xf32>
    %578 = arith.addf %577, %576 : vector<8x16xf32>
    %579 = arith.divf %577, %578 : vector<8x16xf32>
    %580 = vector.extract_strided_slice %567 {offsets = [0, 32], sizes = [8, 16], strides = [1, 1]} : vector<8x64xf32> to vector<8x16xf32>
    %581 = math.tanh %580 : vector<8x16xf32>
    %582 = vector.extract_strided_slice %567 {offsets = [0, 48], sizes = [8, 16], strides = [1, 1]} : vector<8x64xf32> to vector<8x16xf32>
    %583 = arith.negf %582 : vector<8x16xf32>
    %584 = math.exp %583 : vector<8x16xf32>
    %cst_124 = arith.constant 1.000000e+00 : f32
    %585 = vector.broadcast %cst_124 : f32 to vector<8x16xf32>
    %586 = arith.addf %585, %584 : vector<8x16xf32>
    %587 = arith.divf %585, %586 : vector<8x16xf32>
    %588 = arith.mulf %579, %562 : vector<8x16xf32>
    %589 = arith.mulf %573, %581 : vector<8x16xf32>
    %590 = arith.addf %588, %589 : vector<8x16xf32>
    %591 = math.tanh %590 : vector<8x16xf32>
    %592 = arith.mulf %587, %591 : vector<8x16xf32>
    %593 = vector.extract_strided_slice %480 {offsets = [32, 0], sizes = [8, 64], strides = [1, 1]} : vector<64x128xf32> to vector<8x64xf32>
    %cst_125 = arith.constant dense<0.000000e+00> : vector<8x64xf32>
    %594 = tpu.matmul %592, %475, %cst_125 {dimension_numbers = #tpu.dot_dimension_numbers<[1], [0], [0], [1], [0, 0, 1, 1], [], []>} : vector<8x16xf32>, vector<16x64xf32>, vector<8x64xf32> -> vector<8x64xf32>
    %595 = arith.addf %593, %594 : vector<8x64xf32>
    %596 = vector.extract_strided_slice %595 {offsets = [0, 0], sizes = [8, 16], strides = [1, 1]} : vector<8x64xf32> to vector<8x16xf32>
    %597 = arith.negf %596 : vector<8x16xf32>
    %598 = math.exp %597 : vector<8x16xf32>
    %cst_126 = arith.constant 1.000000e+00 : f32
    %599 = vector.broadcast %cst_126 : f32 to vector<8x16xf32>
    %600 = arith.addf %599, %598 : vector<8x16xf32>
    %601 = arith.divf %599, %600 : vector<8x16xf32>
    %602 = vector.extract_strided_slice %595 {offsets = [0, 16], sizes = [8, 16], strides = [1, 1]} : vector<8x64xf32> to vector<8x16xf32>
    %603 = arith.negf %602 : vector<8x16xf32>
    %604 = math.exp %603 : vector<8x16xf32>
    %cst_127 = arith.constant 1.000000e+00 : f32
    %605 = vector.broadcast %cst_127 : f32 to vector<8x16xf32>
    %606 = arith.addf %605, %604 : vector<8x16xf32>
    %607 = arith.divf %605, %606 : vector<8x16xf32>
    %608 = vector.extract_strided_slice %595 {offsets = [0, 32], sizes = [8, 16], strides = [1, 1]} : vector<8x64xf32> to vector<8x16xf32>
    %609 = math.tanh %608 : vector<8x16xf32>
    %610 = vector.extract_strided_slice %595 {offsets = [0, 48], sizes = [8, 16], strides = [1, 1]} : vector<8x64xf32> to vector<8x16xf32>
    %611 = arith.negf %610 : vector<8x16xf32>
    %612 = math.exp %611 : vector<8x16xf32>
    %cst_128 = arith.constant 1.000000e+00 : f32
    %613 = vector.broadcast %cst_128 : f32 to vector<8x16xf32>
    %614 = arith.addf %613, %612 : vector<8x16xf32>
    %615 = arith.divf %613, %614 : vector<8x16xf32>
    %616 = arith.mulf %607, %590 : vector<8x16xf32>
    %617 = arith.mulf %601, %609 : vector<8x16xf32>
    %618 = arith.addf %616, %617 : vector<8x16xf32>
    %619 = math.tanh %618 : vector<8x16xf32>
    %620 = arith.mulf %615, %619 : vector<8x16xf32>
    %621 = vector.extract_strided_slice %480 {offsets = [40, 0], sizes = [8, 64], strides = [1, 1]} : vector<64x128xf32> to vector<8x64xf32>
    %cst_129 = arith.constant dense<0.000000e+00> : vector<8x64xf32>
    %622 = tpu.matmul %620, %475, %cst_129 {dimension_numbers = #tpu.dot_dimension_numbers<[1], [0], [0], [1], [0, 0, 1, 1], [], []>} : vector<8x16xf32>, vector<16x64xf32>, vector<8x64xf32> -> vector<8x64xf32>
    %623 = arith.addf %621, %622 : vector<8x64xf32>
    %624 = vector.extract_strided_slice %623 {offsets = [0, 0], sizes = [8, 16], strides = [1, 1]} : vector<8x64xf32> to vector<8x16xf32>
    %625 = arith.negf %624 : vector<8x16xf32>
    %626 = math.exp %625 : vector<8x16xf32>
    %cst_130 = arith.constant 1.000000e+00 : f32
    %627 = vector.broadcast %cst_130 : f32 to vector<8x16xf32>
    %628 = arith.addf %627, %626 : vector<8x16xf32>
    %629 = arith.divf %627, %628 : vector<8x16xf32>
    %630 = vector.extract_strided_slice %623 {offsets = [0, 16], sizes = [8, 16], strides = [1, 1]} : vector<8x64xf32> to vector<8x16xf32>
    %631 = arith.negf %630 : vector<8x16xf32>
    %632 = math.exp %631 : vector<8x16xf32>
    %cst_131 = arith.constant 1.000000e+00 : f32
    %633 = vector.broadcast %cst_131 : f32 to vector<8x16xf32>
    %634 = arith.addf %633, %632 : vector<8x16xf32>
    %635 = arith.divf %633, %634 : vector<8x16xf32>
    %636 = vector.extract_strided_slice %623 {offsets = [0, 32], sizes = [8, 16], strides = [1, 1]} : vector<8x64xf32> to vector<8x16xf32>
    %637 = math.tanh %636 : vector<8x16xf32>
    %638 = vector.extract_strided_slice %623 {offsets = [0, 48], sizes = [8, 16], strides = [1, 1]} : vector<8x64xf32> to vector<8x16xf32>
    %639 = arith.negf %638 : vector<8x16xf32>
    %640 = math.exp %639 : vector<8x16xf32>
    %cst_132 = arith.constant 1.000000e+00 : f32
    %641 = vector.broadcast %cst_132 : f32 to vector<8x16xf32>
    %642 = arith.addf %641, %640 : vector<8x16xf32>
    %643 = arith.divf %641, %642 : vector<8x16xf32>
    %644 = arith.mulf %635, %618 : vector<8x16xf32>
    %645 = arith.mulf %629, %637 : vector<8x16xf32>
    %646 = arith.addf %644, %645 : vector<8x16xf32>
    %647 = math.tanh %646 : vector<8x16xf32>
    %648 = arith.mulf %643, %647 : vector<8x16xf32>
    %649 = vector.extract_strided_slice %480 {offsets = [48, 0], sizes = [8, 64], strides = [1, 1]} : vector<64x128xf32> to vector<8x64xf32>
    %cst_133 = arith.constant dense<0.000000e+00> : vector<8x64xf32>
    %650 = tpu.matmul %648, %475, %cst_133 {dimension_numbers = #tpu.dot_dimension_numbers<[1], [0], [0], [1], [0, 0, 1, 1], [], []>} : vector<8x16xf32>, vector<16x64xf32>, vector<8x64xf32> -> vector<8x64xf32>
    %651 = arith.addf %649, %650 : vector<8x64xf32>
    %652 = vector.extract_strided_slice %651 {offsets = [0, 0], sizes = [8, 16], strides = [1, 1]} : vector<8x64xf32> to vector<8x16xf32>
    %653 = arith.negf %652 : vector<8x16xf32>
    %654 = math.exp %653 : vector<8x16xf32>
    %cst_134 = arith.constant 1.000000e+00 : f32
    %655 = vector.broadcast %cst_134 : f32 to vector<8x16xf32>
    %656 = arith.addf %655, %654 : vector<8x16xf32>
    %657 = arith.divf %655, %656 : vector<8x16xf32>
    %658 = vector.extract_strided_slice %651 {offsets = [0, 16], sizes = [8, 16], strides = [1, 1]} : vector<8x64xf32> to vector<8x16xf32>
    %659 = arith.negf %658 : vector<8x16xf32>
    %660 = math.exp %659 : vector<8x16xf32>
    %cst_135 = arith.constant 1.000000e+00 : f32
    %661 = vector.broadcast %cst_135 : f32 to vector<8x16xf32>
    %662 = arith.addf %661, %660 : vector<8x16xf32>
    %663 = arith.divf %661, %662 : vector<8x16xf32>
    %664 = vector.extract_strided_slice %651 {offsets = [0, 32], sizes = [8, 16], strides = [1, 1]} : vector<8x64xf32> to vector<8x16xf32>
    %665 = math.tanh %664 : vector<8x16xf32>
    %666 = vector.extract_strided_slice %651 {offsets = [0, 48], sizes = [8, 16], strides = [1, 1]} : vector<8x64xf32> to vector<8x16xf32>
    %667 = arith.negf %666 : vector<8x16xf32>
    %668 = math.exp %667 : vector<8x16xf32>
    %cst_136 = arith.constant 1.000000e+00 : f32
    %669 = vector.broadcast %cst_136 : f32 to vector<8x16xf32>
    %670 = arith.addf %669, %668 : vector<8x16xf32>
    %671 = arith.divf %669, %670 : vector<8x16xf32>
    %672 = arith.mulf %663, %646 : vector<8x16xf32>
    %673 = arith.mulf %657, %665 : vector<8x16xf32>
    %674 = arith.addf %672, %673 : vector<8x16xf32>
    %675 = math.tanh %674 : vector<8x16xf32>
    %676 = arith.mulf %671, %675 : vector<8x16xf32>
    %677 = vector.extract_strided_slice %480 {offsets = [56, 0], sizes = [8, 64], strides = [1, 1]} : vector<64x128xf32> to vector<8x64xf32>
    %cst_137 = arith.constant dense<0.000000e+00> : vector<8x64xf32>
    %678 = tpu.matmul %676, %475, %cst_137 {dimension_numbers = #tpu.dot_dimension_numbers<[1], [0], [0], [1], [0, 0, 1, 1], [], []>} : vector<8x16xf32>, vector<16x64xf32>, vector<8x64xf32> -> vector<8x64xf32>
    %679 = arith.addf %677, %678 : vector<8x64xf32>
    %680 = vector.extract_strided_slice %679 {offsets = [0, 0], sizes = [8, 16], strides = [1, 1]} : vector<8x64xf32> to vector<8x16xf32>
    %681 = arith.negf %680 : vector<8x16xf32>
    %682 = math.exp %681 : vector<8x16xf32>
    %cst_138 = arith.constant 1.000000e+00 : f32
    %683 = vector.broadcast %cst_138 : f32 to vector<8x16xf32>
    %684 = arith.addf %683, %682 : vector<8x16xf32>
    %685 = arith.divf %683, %684 : vector<8x16xf32>
    %686 = vector.extract_strided_slice %679 {offsets = [0, 16], sizes = [8, 16], strides = [1, 1]} : vector<8x64xf32> to vector<8x16xf32>
    %687 = arith.negf %686 : vector<8x16xf32>
    %688 = math.exp %687 : vector<8x16xf32>
    %cst_139 = arith.constant 1.000000e+00 : f32
    %689 = vector.broadcast %cst_139 : f32 to vector<8x16xf32>
    %690 = arith.addf %689, %688 : vector<8x16xf32>
    %691 = arith.divf %689, %690 : vector<8x16xf32>
    %692 = vector.extract_strided_slice %679 {offsets = [0, 32], sizes = [8, 16], strides = [1, 1]} : vector<8x64xf32> to vector<8x16xf32>
    %693 = math.tanh %692 : vector<8x16xf32>
    %694 = vector.extract_strided_slice %679 {offsets = [0, 48], sizes = [8, 16], strides = [1, 1]} : vector<8x64xf32> to vector<8x16xf32>
    %695 = arith.negf %694 : vector<8x16xf32>
    %696 = math.exp %695 : vector<8x16xf32>
    %cst_140 = arith.constant 1.000000e+00 : f32
    %697 = vector.broadcast %cst_140 : f32 to vector<8x16xf32>
    %698 = arith.addf %697, %696 : vector<8x16xf32>
    %699 = arith.divf %697, %698 : vector<8x16xf32>
    %700 = arith.mulf %691, %674 : vector<8x16xf32>
    %701 = arith.mulf %685, %693 : vector<8x16xf32>
    %702 = arith.addf %700, %701 : vector<8x16xf32>
    %703 = math.tanh %702 : vector<8x16xf32>
    %704 = arith.mulf %699, %703 : vector<8x16xf32>
    %705 = vector.extract_strided_slice %480 {offsets = [56, 64], sizes = [8, 64], strides = [1, 1]} : vector<64x128xf32> to vector<8x64xf32>
    %706 = vector.extract_strided_slice %705 {offsets = [0, 0], sizes = [8, 16], strides = [1, 1]} : vector<8x64xf32> to vector<8x16xf32>
    %707 = arith.negf %706 : vector<8x16xf32>
    %708 = math.exp %707 : vector<8x16xf32>
    %cst_141 = arith.constant 1.000000e+00 : f32
    %709 = vector.broadcast %cst_141 : f32 to vector<8x16xf32>
    %710 = arith.addf %709, %708 : vector<8x16xf32>
    %711 = arith.divf %709, %710 : vector<8x16xf32>
    %712 = vector.extract_strided_slice %705 {offsets = [0, 32], sizes = [8, 16], strides = [1, 1]} : vector<8x64xf32> to vector<8x16xf32>
    %713 = math.tanh %712 : vector<8x16xf32>
    %714 = vector.extract_strided_slice %705 {offsets = [0, 48], sizes = [8, 16], strides = [1, 1]} : vector<8x64xf32> to vector<8x16xf32>
    %715 = arith.negf %714 : vector<8x16xf32>
    %716 = math.exp %715 : vector<8x16xf32>
    %cst_142 = arith.constant 1.000000e+00 : f32
    %717 = vector.broadcast %cst_142 : f32 to vector<8x16xf32>
    %718 = arith.addf %717, %716 : vector<8x16xf32>
    %719 = arith.divf %717, %718 : vector<8x16xf32>
    %720 = arith.mulf %711, %713 : vector<8x16xf32>
    %721 = math.tanh %720 : vector<8x16xf32>
    %722 = arith.mulf %719, %721 : vector<8x16xf32>
    %c0_143 = arith.constant 0 : index
    %c0_144 = arith.constant 0 : index
    %723 = vector.load %arg10[%c0_143, %c0_144] : memref<32x4xf32, #tpu.memory_space<vmem>>, vector<32x4xf32>
    %724 = vector.extract_strided_slice %723 {offsets = [0, 0], sizes = [16, 4], strides = [1, 1]} : vector<32x4xf32> to vector<16x4xf32>
    %cst_145 = arith.constant dense<0.000000e+00> : vector<8x4xf32>
    %725 = tpu.matmul %704, %724, %cst_145 {dimension_numbers = #tpu.dot_dimension_numbers<[1], [0], [0], [1], [0, 0, 1, 1], [], []>} : vector<8x16xf32>, vector<16x4xf32>, vector<8x4xf32> -> vector<8x4xf32>
    %726 = vector.extract_strided_slice %723 {offsets = [16, 0], sizes = [16, 4], strides = [1, 1]} : vector<32x4xf32> to vector<16x4xf32>
    %cst_146 = arith.constant dense<0.000000e+00> : vector<8x4xf32>
    %727 = tpu.matmul %722, %726, %cst_146 {dimension_numbers = #tpu.dot_dimension_numbers<[1], [0], [0], [1], [0, 0, 1, 1], [], []>} : vector<8x16xf32>, vector<16x4xf32>, vector<8x4xf32> -> vector<8x4xf32>
    %728 = arith.addf %725, %727 : vector<8x4xf32>
    %c0_147 = arith.constant 0 : index
    %c0_148 = arith.constant 0 : index
    %729 = vector.load %arg11[%c0_147, %c0_148] : memref<1x4xf32, #tpu.memory_space<vmem>>, vector<1x4xf32>
    %730 = vector.broadcast %729 : vector<1x4xf32> to vector<8x4xf32>
    %731 = arith.addf %728, %730 : vector<8x4xf32>
    %c0_149 = arith.constant 0 : index
    %c0_150 = arith.constant 0 : index
    %732 = vector.load %arg12[%c0_149, %c0_150] : memref<8x4xf32, #tpu.memory_space<vmem>>, vector<8x4xf32>
    tpu.vector_store %arg12[%c0_149, %c0_150], %731 {strides = array<i32>} : memref<8x4xf32, #tpu.memory_space<vmem>>, vector<8x4xf32>,
    return
  }
  func.func @transform_0(%arg0: i32) -> (i32, i32, i32) {
    %c0_i32 = arith.constant 0 : i32
    %c0_i32_0 = arith.constant 0 : i32
    %c0_i32_1 = arith.constant 0 : i32
    %c0_i32_2 = arith.constant 0 : i32
    return %c0_i32, %c0_i32_0, %c0_i32_1 : i32, i32, i32
  }
  func.func @transform_1(%arg0: i32) -> (i32, i32) {
    %c0_i32 = arith.constant 0 : i32
    %c0_i32_0 = arith.constant 0 : i32
    %c0_i32_1 = arith.constant 0 : i32
    return %c0_i32, %c0_i32_0 : i32, i32
  }
  func.func @transform_2(%arg0: i32) -> (i32, i32) {
    %c0_i32 = arith.constant 0 : i32
    %c0_i32_0 = arith.constant 0 : i32
    %c0_i32_1 = arith.constant 0 : i32
    return %c0_i32, %c0_i32_0 : i32, i32
  }
  func.func @transform_3(%arg0: i32) -> (i32, i32) {
    %c0_i32 = arith.constant 0 : i32
    %c0_i32_0 = arith.constant 0 : i32
    %c0_i32_1 = arith.constant 0 : i32
    return %c0_i32, %c0_i32_0 : i32, i32
  }
  func.func @transform_4(%arg0: i32) -> (i32, i32) {
    %c0_i32 = arith.constant 0 : i32
    %c0_i32_0 = arith.constant 0 : i32
    %c0_i32_1 = arith.constant 0 : i32
    return %c0_i32, %c0_i32_0 : i32, i32
  }
  func.func @transform_5(%arg0: i32) -> (i32, i32) {
    %c0_i32 = arith.constant 0 : i32
    %c0_i32_0 = arith.constant 0 : i32
    %c0_i32_1 = arith.constant 0 : i32
    return %c0_i32, %c0_i32_0 : i32, i32
  }
  func.func @transform_6(%arg0: i32) -> (i32, i32) {
    %c0_i32 = arith.constant 0 : i32
    %c0_i32_0 = arith.constant 0 : i32
    %c0_i32_1 = arith.constant 0 : i32
    return %c0_i32, %c0_i32_0 : i32, i32
  }
  func.func @transform_7(%arg0: i32) -> (i32, i32) {
    %c0_i32 = arith.constant 0 : i32
    %c0_i32_0 = arith.constant 0 : i32
    %c0_i32_1 = arith.constant 0 : i32
    return %c0_i32, %c0_i32_0 : i32, i32
  }
  func.func @transform_8(%arg0: i32) -> (i32, i32) {
    %c0_i32 = arith.constant 0 : i32
    %c0_i32_0 = arith.constant 0 : i32
    %c0_i32_1 = arith.constant 0 : i32
    return %c0_i32, %c0_i32_0 : i32, i32
  }
  func.func @transform_9(%arg0: i32) -> (i32, i32) {
    %c0_i32 = arith.constant 0 : i32
    %c0_i32_0 = arith.constant 0 : i32
    %c0_i32_1 = arith.constant 0 : i32
    return %c0_i32, %c0_i32_0 : i32, i32
  }
  func.func @transform_10(%arg0: i32) -> (i32, i32) {
    %c0_i32 = arith.constant 0 : i32
    %c0_i32_0 = arith.constant 0 : i32
    %c0_i32_1 = arith.constant 0 : i32
    return %c0_i32, %c0_i32_0 : i32, i32
  }
  func.func @transform_11(%arg0: i32) -> (i32, i32) {
    %c0_i32 = arith.constant 0 : i32
    %c0_i32_0 = arith.constant 0 : i32
    %c0_i32_1 = arith.constant 0 : i32
    return %c0_i32, %c0_i32_0 : i32, i32
  }
}

</mosaic_0001>

<llo_original>
// kernel: tpu_custom_call.1
$region0: #{tpu_custom_call.1}
  #allocation0 [shape = 'u32[]', space=smem, size = 0x4, offset = 0x4, fixed_abs, tag = 'smem constant byte address 0x4 - core index']
  #allocation1 [shape = 'u32[144,128]{1,0:T(1,128)}', space=vmem, size = 0x12000, scoped, tag = 'internal scratch']
  #allocation2 [shape = 'f32[64,32]{1,0:T(8,128)}', space=vmem, size = 0x8000, scoped, tag = 'scratch operand']
  %s0 = inlined_call_operand.hbm [shape: f32[8,8,32], index: 0, kind: input, shape index: {}]
  %s1 = inlined_call_operand.vmem [shape: f32[32,128], index: 1, kind: input, shape index: {}]
  %s2 = inlined_call_operand.hbm [shape: f32[16,64], index: 2, kind: input, shape index: {}]
  %s3 = inlined_call_operand.hbm [shape: f32[16,64], index: 3, kind: input, shape index: {}]
  %s4 = inlined_call_operand.vmem [shape: f32[1,128], index: 4, kind: input, shape index: {}]
  %s5 = inlined_call_operand.hbm [shape: f32[32,128], index: 5, kind: input, shape index: {}]
  %s6 = inlined_call_operand.vmem [shape: f32[16,64], index: 6, kind: input, shape index: {}]
  %s7 = inlined_call_operand.hbm [shape: f32[16,64], index: 7, kind: input, shape index: {}]
  %s8 = inlined_call_operand.vmem [shape: f32[1,128], index: 8, kind: input, shape index: {}]
  %s9 = inlined_call_operand.vmem [shape: f32[32,4], index: 9, kind: input, shape index: {}]
  %s10 = inlined_call_operand.vmem [shape: f32[1,4], index: 10, kind: input, shape index: {}]
  %s11 = inlined_call_operand.vmem [shape: f32[8,4], index: 11, kind: output, shape index: {}]
  %s12 = sld [smem:[#allocation0]]
  $region74: #{tpu_custom_call.1} parent=0
    _
  %s14 = ssub.s32 1, %s12
  %s15 = scalar_select 0, %s14, %s12
  $region1: #{tpu_custom_call.1} parent=0
    #allocation3 [shape = 'u8[32768]{0}', space=vmem, size = 0x8000, scoped, tag = 'input window, operand 0, single buffered']
    #allocation4 [shape = 's32[1]{0}', space=sflag, size = 0x4, scoped, tag = 'scoped memory for tpu_custom_call.1']
    #allocation5 [shape = 'u8[8192]{0}', space=vmem, size = 0x2000, scoped, tag = 'input window, operand 2, single buffered']
    #allocation6 [shape = 's32[1]{0}', space=sflag, size = 0x4, scoped, tag = 'scoped memory for tpu_custom_call.1']
    #allocation7 [shape = 'u8[8192]{0}', space=vmem, size = 0x2000, scoped, tag = 'input window, operand 3, single buffered']
    #allocation8 [shape = 'u8[16384]{0}', space=vmem, size = 0x4000, scoped, tag = 'input window, operand 5, single buffered']
    #allocation9 [shape = 's32[1]{0}', space=sflag, size = 0x4, scoped, tag = 'scoped memory for tpu_custom_call.1']
    #allocation10 [shape = 'u8[8192]{0}', space=vmem, size = 0x2000, scoped, tag = 'input window, operand 7, single buffered']
    %16 = vsyncpa [#allocation4], 0
    %17 = vsyncpa [#allocation6], 0
    %18 = vsyncpa [#allocation9], 0
    // Predicated region
    $region2: #{tpu_custom_call.1} parent=1 // pred_check
      _
    $region3: #{tpu_custom_call.1} parent=1 // pred_check_branch
      %20 = sbr.rel (0) target = $region5
    $region4: #{tpu_custom_call.1} parent=1 // pred_region
      %s22 = ssub.s32 1024, 1024
      %23 = vsyncadd [#allocation4], %s22
      %s24 = sshll.u32 [#allocation3], 4
      %s25 = int_to_ptr.vmem [resolvable:$true] %s24
      %30 = dma.hbm_to_vmem [thread:$0]  %s0, 1024, %s25, [#allocation4], 128, 128, 8
    $region5: #{tpu_custom_call.1} parent=1 // pred_fallthru
      _
    // Predicated region
    $region6: #{tpu_custom_call.1} parent=1 // pred_check
      _
    $region7: #{tpu_custom_call.1} parent=1 // pred_check_branch
      %32 = sbr.rel (0) target = $region9
    $region8: #{tpu_custom_call.1} parent=1 // pred_region
      _
    $region9: #{tpu_custom_call.1} parent=1 // pred_fallthru
      _
    // Predicated region
    $region10: #{tpu_custom_call.1} parent=1 // pred_check
      _
    $region11: #{tpu_custom_call.1} parent=1 // pred_check_branch
      %34 = sbr.rel (0) target = $region13
    $region12: #{tpu_custom_call.1} parent=1 // pred_region
      %s36 = ssub.s32 256, 256
      %37 = vsyncadd [#allocation6], %s36
      %s38 = sshll.u32 [#allocation5], 4
      %s39 = int_to_ptr.vmem [resolvable:$true] %s38
      %44 = dma.hbm_to_vmem [thread:$0]  %s2, 256, %s39, [#allocation6], 128, 128, 8
    $region13: #{tpu_custom_call.1} parent=1 // pred_fallthru
      _
    // Predicated region
    $region14: #{tpu_custom_call.1} parent=1 // pred_check
      _
    $region15: #{tpu_custom_call.1} parent=1 // pred_check_branch
      %46 = sbr.rel (0) target = $region17
    $region16: #{tpu_custom_call.1} parent=1 // pred_region
      %s48 = ssub.s32 256, 256
      %49 = vsyncadd [#allocation6], %s48
      %s50 = sshll.u32 [#allocation7], 4
      %s51 = int_to_ptr.vmem [resolvable:$true] %s50
      %56 = dma.hbm_to_vmem [thread:$0]  %s3, 256, %s51, [#allocation6], 128, 128, 8
    $region17: #{tpu_custom_call.1} parent=1 // pred_fallthru
      _
    // Predicated region
    $region18: #{tpu_custom_call.1} parent=1 // pred_check
      _
    $region19: #{tpu_custom_call.1} parent=1 // pred_check_branch
      %58 = sbr.rel (0) target = $region21
    $region20: #{tpu_custom_call.1} parent=1 // pred_region
      _
    $region21: #{tpu_custom_call.1} parent=1 // pred_fallthru
      _
    // Predicated region
    $region22: #{tpu_custom_call.1} parent=1 // pred_check
      _
    $region23: #{tpu_custom_call.1} parent=1 // pred_check_branch
      %60 = sbr.rel (0) target = $region25
    $region24: #{tpu_custom_call.1} parent=1 // pred_region
      %s62 = ssub.s32 512, 512
      %63 = vsyncadd [#allocation9], %s62
      %s64 = sshll.u32 [#allocation8], 4
      %s65 = int_to_ptr.vmem [resolvable:$true] %s64
      %70 = dma.hbm_to_vmem [thread:$0]  %s5, 512, %s65, [#allocation9], 128, 128, 8
    $region25: #{tpu_custom_call.1} parent=1 // pred_fallthru
      _
    // Predicated region
    $region26: #{tpu_custom_call.1} parent=1 // pred_check
      _
    $region27: #{tpu_custom_call.1} parent=1 // pred_check_branch
      %72 = sbr.rel (0) target = $region29
    $region28: #{tpu_custom_call.1} parent=1 // pred_region
      _
    $region29: #{tpu_custom_call.1} parent=1 // pred_fallthru
      _
    // Predicated region
    $region30: #{tpu_custom_call.1} parent=1 // pred_check
      _
    $region31: #{tpu_custom_call.1} parent=1 // pred_check_branch
      %74 = sbr.rel (0) target = $region33
    $region32: #{tpu_custom_call.1} parent=1 // pred_region
      %s76 = ssub.s32 256, 256
      %77 = vsyncadd [#allocation9], %s76
      %s78 = sshll.u32 [#allocation10], 4
      %s79 = int_to_ptr.vmem [resolvable:$true] %s78
      %84 = dma.hbm_to_vmem [thread:$0]  %s7, 256, %s79, [#allocation9], 128, 128, 8
    $region33: #{tpu_custom_call.1} parent=1 // pred_fallthru
      _
    // Predicated region
    $region34: #{tpu_custom_call.1} parent=1 // pred_check
      _
    $region35: #{tpu_custom_call.1} parent=1 // pred_check_branch
      %86 = sbr.rel (0) target = $region37
    $region36: #{tpu_custom_call.1} parent=1 // pred_region
      _
    $region37: #{tpu_custom_call.1} parent=1 // pred_fallthru
      _
    // Predicated region
    $region38: #{tpu_custom_call.1} parent=1 // pred_check
      _
    $region39: #{tpu_custom_call.1} parent=1 // pred_check_branch
      %88 = sbr.rel (0) target = $region41
    $region40: #{tpu_custom_call.1} parent=1 // pred_region
      _
    $region41: #{tpu_custom_call.1} parent=1 // pred_fallthru
      _
    // Predicated region
    $region42: #{tpu_custom_call.1} parent=1 // pred_check
      _
    $region43: #{tpu_custom_call.1} parent=1 // pred_check_branch
      %90 = sbr.rel (0) target = $region45
    $region44: #{tpu_custom_call.1} parent=1 // pred_region
      _
    $region45: #{tpu_custom_call.1} parent=1 // pred_fallthru
      _
    // Predicated region
    $region46: #{tpu_custom_call.1} parent=1 // pred_check
      _
    $region47: #{tpu_custom_call.1} parent=1 // pred_check_branch
      %92 = sbr.rel (0) target = $region49
    $region48: #{tpu_custom_call.1} parent=1 // pred_region
      %93 = dma.done [#allocation4], 1024
    $region49: #{tpu_custom_call.1} parent=1 // pred_fallthru
      _
    // Predicated region
    $region50: #{tpu_custom_call.1} parent=1 // pred_check
      _
    $region51: #{tpu_custom_call.1} parent=1 // pred_check_branch
      %95 = sbr.rel (0) target = $region53
    $region52: #{tpu_custom_call.1} parent=1 // pred_region
      %96 = dma.done [#allocation6], 256
    $region53: #{tpu_custom_call.1} parent=1 // pred_fallthru
      _
    // Predicated region
    $region54: #{tpu_custom_call.1} parent=1 // pred_check
      _
    $region55: #{tpu_custom_call.1} parent=1 // pred_check_branch
      %98 = sbr.rel (0) target = $region57
    $region56: #{tpu_custom_call.1} parent=1 // pred_region
      %99 = dma.done [#allocation6], 256
    $region57: #{tpu_custom_call.1} parent=1 // pred_fallthru
      _
    // Predicated region
    $region58: #{tpu_custom_call.1} parent=1 // pred_check
      _
    $region59: #{tpu_custom_call.1} parent=1 // pred_check_branch
      %101 = sbr.rel (0) target = $region61
    $region60: #{tpu_custom_call.1} parent=1 // pred_region
      %102 = dma.done [#allocation9], 512
    $region61: #{tpu_custom_call.1} parent=1 // pred_fallthru
      _
    // Predicated region
    $region62: #{tpu_custom_call.1} parent=1 // pred_check
      _
    $region63: #{tpu_custom_call.1} parent=1 // pred_check_branch
      %104 = sbr.rel (0) target = $region65
    $region64: #{tpu_custom_call.1} parent=1 // pred_region
      %105 = dma.done [#allocation9], 256
    $region65: #{tpu_custom_call.1} parent=1 // pred_fallthru
      _
    %v106 = vld [vmem:[#allocation3] sm:$0xff]
    %v107 = vld [vmem:[#allocation3 + $0x8] sm:$0xff]
    %v108 = vld [vmem:[#allocation3 + $0x10] sm:$0xff]
    %v109 = vld [vmem:[#allocation3 + $0x18] sm:$0xff]
    %v110 = vld [vmem:[#allocation3 + $0x20] sm:$0xff]
    %v111 = vld [vmem:[#allocation3 + $0x28] sm:$0xff]
    %v112 = vld [vmem:[#allocation3 + $0x30] sm:$0xff]
    %v113 = vld [vmem:[#allocation3 + $0x38] sm:$0xff]
    %v114 = vld [vmem:[#allocation5] sm:$0xff]
    %v115 = vld [vmem:[#allocation5 + $0x8] sm:$0xff]
    %v116 = vld [vmem:[%s1] sm:$0xff]
    %v117 = vld [vmem:[%s1 + $0x8] sm:$0xff]
    %v118 = vld [vmem:[%s1 + $0x10] sm:$0xff]
    %v119 = vld [vmem:[%s1 + $0x18] sm:$0xff]
    %v120 = vld [vmem:[%s4] sm:$0x1]
    %v122 = vlaneseq
    %v123 = vshrl.u32 %v122, 7
    %v124 = vsub.s32 0, %v123
    %v125 = vrot.slane %v120, %v124
    %vm127 = vcmask 261120
    %v129 = vsel %vm127, %v106, 0
    %v132 = vsel %vm127, %v107, 0
    %v135 = vsel %vm127, %v108, 0
    %v138 = vsel %vm127, %v109, 0
    %v141 = vsel %vm127, %v110, 0
    %v144 = vsel %vm127, %v111, 0
    %v147 = vsel %vm127, %v112, 0
    %v150 = vsel %vm127, %v113, 0
    %152 = vmatprep.subr.mxu0 0.0
    %153 = vmatpush1.msra.mxu0 %v116
    %154 = vmatprep.subr.mxu0 0.0
    %155 = vmatpush1.msra.mxu0 %v117
    %156 = vmatprep.subr.mxu0 0.0
    %157 = vmatpush1.msra.mxu0 %v118
    %158 = vmatprep.subr.mxu0 0.0
    %159 = vmatpush1.msra.mxu0 %v119
    %160 = vmatprep.subr.mxu0 0.0
    %161 = vmatpush1.msra.mxu0 0.0
    %162 = vmatprep.subr.mxu0 0.0
    %163 = vmatpush1.msra.mxu0 0.0
    %164 = vmatprep.subr.mxu0 0.0
    %165 = vmatpush1.msra.mxu0 0.0
    %166 = vmatprep.subr.mxu0 0.0
    %167 = vmatpush1.msra.mxu0 0.0
    %168 = vmatprep.subr.mxu0 0.0
    %169 = vmatpush1.msra.mxu0 0.0
    %170 = vmatprep.subr.mxu0 0.0
    %171 = vmatpush1.msra.mxu0 0.0
    %172 = vmatprep.subr.mxu0 0.0
    %173 = vmatpush1.msra.mxu0 0.0
    %174 = vmatprep.subr.mxu0 0.0
    %175 = vmatpush1.msra.mxu0 0.0
    %176 = vmatprep.subr.mxu0 0.0
    %177 = vmatpush1.msra.mxu0 0.0
    %178 = vmatprep.subr.mxu0 0.0
    %179 = vmatpush1.msra.mxu0 0.0
    %180 = vmatprep.subr.mxu0 0.0
    %181 = vmatpush1.msra.mxu0 0.0
    %182 = vmatprep.subr.mxu0 0.0
    %183 = vmatpush1.msra.mxu0 0.0
    %184 = vmatprep.subr.mxu0 0.0
    %185 = vmatpush1.msra.mxu0 0.0
    %186 = vmatprep.subr.mxu0 0.0
    %187 = vmatpush1.msra.mxu0 0.0
    %188 = vmatprep.subr.mxu0 0.0
    %189 = vmatpush1.msra.mxu0 0.0
    %190 = vmatprep.subr.mxu0 0.0
    %191 = vmatpush1.msra.mxu0 0.0
    %192 = vmatprep.subr.mxu0 0.0
    %193 = vmatpush1.msra.mxu0 0.0
    %194 = vmatprep.subr.mxu0 0.0
    %195 = vmatpush1.msra.mxu0 0.0
    %196 = vmatprep.subr.mxu0 0.0
    %197 = vmatpush1.msra.mxu0 0.0
    %198 = vmatprep.subr.mxu0 0.0
    %199 = vmatpush1.msra.mxu0 0.0
    %200 = vmatprep.subr.mxu0 0.0
    %201 = vmatpush1.msra.mxu0 0.0
    %202 = vmatprep.subr.mxu0 0.0
    %203 = vmatpush1.msra.mxu0 0.0
    %204 = vmatprep.subr.mxu0 0.0
    %205 = vmatpush1.msra.mxu0 0.0
    %206 = vmatprep.subr.mxu0 0.0
    %207 = vmatpush1.msra.mxu0 0.0
    %208 = vmatprep.subr.mxu0 0.0
    %209 = vmatpush1.msra.mxu0 0.0
    %210 = vmatprep.subr.mxu0 0.0
    %211 = vmatpush1.msra.mxu0 0.0
    %212 = vmatprep.subr.mxu0 0.0
    %213 = vmatpush1.msra.mxu0 0.0
    %214 = vmatprep.subr.mxu0 0.0
    %215 = vmatpush1.msra.mxu0 0.0
    %216 = vmatprep.mubr.f32.mxu0 0.0
    %217 = vmatmul.mubr.f32.gmra.mrb[0].mxu0 %v129
    %v218 = vpop.f32.mrb[0].mxu0
    %v219 = vadd.f32 %v125, %v218
    %v220 = vpop.f32.mrb[0].mxu0
    %221 = vmatprep.mubr.f32.mxu0 0.0
    %222 = vmatmul.mubr.f32.gmra.mrb[0].mxu0 %v132
    %v223 = vpop.f32.mrb[0].mxu0
    %v224 = vadd.f32 %v125, %v223
    %v225 = vpop.f32.mrb[0].mxu0
    %226 = vmatprep.mubr.f32.mxu0 0.0
    %227 = vmatmul.mubr.f32.gmra.mrb[0].mxu0 %v135
    %v228 = vpop.f32.mrb[0].mxu0
    %v229 = vadd.f32 %v125, %v228
    %v230 = vpop.f32.mrb[0].mxu0
    %231 = vmatprep.mubr.f32.mxu0 0.0
    %232 = vmatmul.mubr.f32.gmra.mrb[0].mxu0 %v138
    %v233 = vpop.f32.mrb[0].mxu0
    %v234 = vadd.f32 %v125, %v233
    %v235 = vpop.f32.mrb[0].mxu0
    %236 = vmatprep.mubr.f32.mxu0 0.0
    %237 = vmatmul.mubr.f32.gmra.mrb[0].mxu0 %v141
    %v238 = vpop.f32.mrb[0].mxu0
    %v239 = vadd.f32 %v125, %v238
    %v240 = vpop.f32.mrb[0].mxu0
    %241 = vmatprep.mubr.f32.mxu0 0.0
    %242 = vmatmul.mubr.f32.gmra.mrb[0].mxu0 %v144
    %v243 = vpop.f32.mrb[0].mxu0
    %v244 = vadd.f32 %v125, %v243
    %v245 = vpop.f32.mrb[0].mxu0
    %246 = vmatprep.mubr.f32.mxu0 0.0
    %247 = vmatmul.mubr.f32.gmra.mrb[0].mxu0 %v147
    %v248 = vpop.f32.mrb[0].mxu0
    %v249 = vadd.f32 %v125, %v248
    %v250 = vpop.f32.mrb[0].mxu0
    %251 = vmatprep.mubr.f32.mxu0 0.0
    %252 = vmatmul.mubr.f32.gmra.mrb[0].mxu0 %v150
    %v253 = vpop.f32.mrb[0].mxu0
    %v254 = vadd.f32 %v125, %v253
    %v255 = vpop.f32.mrb[0].mxu0
    %256 = vdwg.mxu0
    %v257 = vld [vmem:[#allocation7] sm:$0xff]
    %v258 = vld [vmem:[#allocation7 + $0x8] sm:$0xff]
    %vm259 = vcmask 130048
    %v261 = vsel %vm259, 0.0, 0
    %263 = vmatprep.subr.mxu0 0.0
    %264 = vmatpush1.msra.mxu0 %v114
    %265 = vmatprep.subr.mxu0 0.0
    %266 = vmatpush1.msra.mxu0 %v115
    %267 = vmatprep.subr.mxu0 0.0
    %268 = vmatpush1.msra.mxu0 0.0
    %269 = vmatprep.subr.mxu0 0.0
    %270 = vmatpush1.msra.mxu0 0.0
    %271 = vmatprep.subr.mxu0 0.0
    %272 = vmatpush1.msra.mxu0 0.0
    %273 = vmatprep.subr.mxu0 0.0
    %274 = vmatpush1.msra.mxu0 0.0
    %275 = vmatprep.subr.mxu0 0.0
    %276 = vmatpush1.msra.mxu0 0.0
    %277 = vmatprep.subr.mxu0 0.0
    %278 = vmatpush1.msra.mxu0 0.0
    %279 = vmatprep.subr.mxu0 0.0
    %280 = vmatpush1.msra.mxu0 0.0
    %281 = vmatprep.subr.mxu0 0.0
    %282 = vmatpush1.msra.mxu0 0.0
    %283 = vmatprep.subr.mxu0 0.0
    %284 = vmatpush1.msra.mxu0 0.0
    %285 = vmatprep.subr.mxu0 0.0
    %286 = vmatpush1.msra.mxu0 0.0
    %287 = vmatprep.subr.mxu0 0.0
    %288 = vmatpush1.msra.mxu0 0.0
    %289 = vmatprep.subr.mxu0 0.0
    %290 = vmatpush1.msra.mxu0 0.0
    %291 = vmatprep.subr.mxu0 0.0
    %292 = vmatpush1.msra.mxu0 0.0
    %293 = vmatprep.subr.mxu0 0.0
    %294 = vmatpush1.msra.mxu0 0.0
    %295 = vmatprep.subr.mxu0 0.0
    %296 = vmatpush1.msra.mxu0 0.0
    %297 = vmatprep.subr.mxu0 0.0
    %298 = vmatpush1.msra.mxu0 0.0
    %299 = vmatprep.subr.mxu0 0.0
    %300 = vmatpush1.msra.mxu0 0.0
    %301 = vmatprep.subr.mxu0 0.0
    %302 = vmatpush1.msra.mxu0 0.0
    %303 = vmatprep.subr.mxu0 0.0
    %304 = vmatpush1.msra.mxu0 0.0
    %305 = vmatprep.subr.mxu0 0.0
    %306 = vmatpush1.msra.mxu0 0.0
    %307 = vmatprep.subr.mxu0 0.0
    %308 = vmatpush1.msra.mxu0 0.0
    %309 = vmatprep.subr.mxu0 0.0
    %310 = vmatpush1.msra.mxu0 0.0
    %311 = vmatprep.subr.mxu0 0.0
    %312 = vmatpush1.msra.mxu0 0.0
    %313 = vmatprep.subr.mxu0 0.0
    %314 = vmatpush1.msra.mxu0 0.0
    %315 = vmatprep.subr.mxu0 0.0
    %316 = vmatpush1.msra.mxu0 0.0
    %317 = vmatprep.subr.mxu0 0.0
    %318 = vmatpush1.msra.mxu0 0.0
    %319 = vmatprep.subr.mxu0 0.0
    %320 = vmatpush1.msra.mxu0 0.0
    %321 = vmatprep.subr.mxu0 0.0
    %322 = vmatpush1.msra.mxu0 0.0
    %323 = vmatprep.subr.mxu0 0.0
    %324 = vmatpush1.msra.mxu0 0.0
    %325 = vmatprep.subr.mxu0 0.0
    %326 = vmatpush1.msra.mxu0 0.0
    %327 = vmatprep.mubr.f32.mxu0 0.0
    %328 = vmatmul.mubr.f32.gmra.mrb[0].mxu0 %v261
    %v329 = vpop.f32.mrb[0].mxu0
    %v330 = vadd.f32 0.0, %v329
    %v331 = vpop.f32.mrb[0].mxu0
    %332 = vdwg.mxu0
    %v333 = vadd.f32 %v219, %v330
    %v334 = vxor.u32 %v333, 2147483648
    %v335 = vmul.f32 %v334, 1.442695
    %v336 = vpow.pop %v335
    %v337 = vadd.f32 %v336, 1.0
    %v338 = vrcp.pop %v337
    %v339 = vmul.f32 1.0, %v338
    %v340 = vtanh.pop %v333
    %v341 = vmul.f32 %v339, 0.0
    %343 = vrot.lane.b32.xlu0 %v340, 96
    %v344 = vpop.permute.xlu0 %343
    %v346 = vmul.f32 %v339, %v344
    %348 = vrot.lane.b32.xlu0 %v346, 16
    %v349 = vpop.permute.xlu0 %348
    %v351 = vadd.f32 %v341, %v349
    %v352 = vtanh.pop %v351
    %354 = vrot.lane.b32.xlu0 %v352, 32
    %v355 = vpop.permute.xlu0 %354
    %v357 = vmul.f32 %v339, %v355
    %358 = vmatprep.subr.mxu0 0.0
    %359 = vmatpush1.msra.mxu0 %v257
    %360 = vmatprep.subr.mxu0 0.0
    %361 = vmatpush1.msra.mxu0 %v258
    %362 = vmatprep.subr.mxu0 0.0
    %363 = vmatpush1.msra.mxu0 0.0
    %364 = vmatprep.subr.mxu0 0.0
    %365 = vmatpush1.msra.mxu0 0.0
    %366 = vmatprep.subr.mxu0 0.0
    %367 = vmatpush1.msra.mxu0 0.0
    %368 = vmatprep.subr.mxu0 0.0
    %369 = vmatpush1.msra.mxu0 0.0
    %370 = vmatprep.subr.mxu0 0.0
    %371 = vmatpush1.msra.mxu0 0.0
    %372 = vmatprep.subr.mxu0 0.0
    %373 = vmatpush1.msra.mxu0 0.0
    %374 = vmatprep.subr.mxu0 0.0
    %375 = vmatpush1.msra.mxu0 0.0
    %376 = vmatprep.subr.mxu0 0.0
    %377 = vmatpush1.msra.mxu0 0.0
    %378 = vmatprep.subr.mxu0 0.0
    %379 = vmatpush1.msra.mxu0 0.0
    %380 = vmatprep.subr.mxu0 0.0
    %381 = vmatpush1.msra.mxu0 0.0
    %382 = vmatprep.subr.mxu0 0.0
    %383 = vmatpush1.msra.mxu0 0.0
    %384 = vmatprep.subr.mxu0 0.0
    %385 = vmatpush1.msra.mxu0 0.0
    %386 = vmatprep.subr.mxu0 0.0
    %387 = vmatpush1.msra.mxu0 0.0
    %388 = vmatprep.subr.mxu0 0.0
    %389 = vmatpush1.msra.mxu0 0.0
    %390 = vmatprep.subr.mxu0 0.0
    %391 = vmatpush1.msra.mxu0 0.0
    %392 = vmatprep.subr.mxu0 0.0
    %393 = vmatpush1.msra.mxu0 0.0
    %394 = vmatprep.subr.mxu0 0.0
    %395 = vmatpush1.msra.mxu0 0.0
    %396 = vmatprep.subr.mxu0 0.0
    %397 = vmatpush1.msra.mxu0 0.0
    %398 = vmatprep.subr.mxu0 0.0
    %399 = vmatpush1.msra.mxu0 0.0
    %400 = vmatprep.subr.mxu0 0.0
    %401 = vmatpush1.msra.mxu0 0.0
    %402 = vmatprep.subr.mxu0 0.0
    %403 = vmatpush1.msra.mxu0 0.0
    %404 = vmatprep.subr.mxu0 0.0
    %405 = vmatpush1.msra.mxu0 0.0
    %406 = vmatprep.subr.mxu0 0.0
    %407 = vmatpush1.msra.mxu0 0.0
    %408 = vmatprep.subr.mxu0 0.0
    %409 = vmatpush1.msra.mxu0 0.0
    %410 = vmatprep.subr.mxu0 0.0
    %411 = vmatpush1.msra.mxu0 0.0
    %412 = vmatprep.subr.mxu0 0.0
    %413 = vmatpush1.msra.mxu0 0.0
    %414 = vmatprep.subr.mxu0 0.0
    %415 = vmatpush1.msra.mxu0 0.0
    %416 = vmatprep.subr.mxu0 0.0
    %417 = vmatpush1.msra.mxu0 0.0
    %418 = vmatprep.subr.mxu0 0.0
    %419 = vmatpush1.msra.mxu0 0.0
    %420 = vmatprep.subr.mxu0 0.0
    %421 = vmatpush1.msra.mxu0 0.0
    %422 = vmatprep.mubr.f32.mxu0 0.0
    %423 = vmatmul.mubr.f32.gmra.mrb[0].mxu0 %v261
    %v424 = vpop.f32.mrb[0].mxu0
    %v425 = vadd.f32 0.0, %v424
    %v426 = vpop.f32.mrb[0].mxu0
    %427 = vdwg.mxu0
    %429 = vrot.lane.b32.xlu0 %v425, 64
    %v430 = vpop.permute.xlu0 %429
    %v432 = vadd.f32 %v254, %v430
    %v433 = vxor.u32 %v432, 2147483648
    %v434 = vmul.f32 %v433, 1.442695
    %v435 = vpow.pop %v434
    %v436 = vadd.f32 %v435, 1.0
    %v437 = vrcp.pop %v436
    %v438 = vmul.f32 1.0, %v437
    %v439 = vtanh.pop %v432
    %v440 = vmul.f32 %v438, 0.0
    %442 = vrot.lane.b32.xlu0 %v439, 96
    %v443 = vpop.permute.xlu0 %442
    %v445 = vmul.f32 %v438, %v443
    %447 = vrot.lane.b32.xlu0 %v445, 16
    %v448 = vpop.permute.xlu0 %447
    %v450 = vadd.f32 %v440, %v448
    %v451 = vtanh.pop %v450
    %453 = vrot.lane.b32.xlu0 %v451, 32
    %v454 = vpop.permute.xlu0 %453
    %v456 = vmul.f32 %v438, %v454
    %458 = vrot.lane.b32.xlu0 %v357, 80
    %v459 = vpop.permute.xlu0 %458
    %461 = vst.msk [vmem:[#allocation2] sm:$0xff] %vm259, %v459
    %463 = vrot.lane.b32.xlu0 %v456, 32
    %v464 = vpop.permute.xlu0 %463
    %vm466 = vcmask 261248
    %467 = vst.msk [vmem:[#allocation2 + $0x38] sm:$0xff] %vm466, %v464
    %v468 = vsel %vm259, %v459, 0
    %470 = vmatprep.subr.mxu0 0.0
    %471 = vmatpush1.msra.mxu0 %v114
    %472 = vmatprep.subr.mxu0 0.0
    %473 = vmatpush1.msra.mxu0 %v115
    %474 = vmatprep.subr.mxu0 0.0
    %475 = vmatpush1.msra.mxu0 0.0
    %476 = vmatprep.subr.mxu0 0.0
    %477 = vmatpush1.msra.mxu0 0.0
    %478 = vmatprep.subr.mxu0 0.0
    %479 = vmatpush1.msra.mxu0 0.0
    %480 = vmatprep.subr.mxu0 0.0
    %481 = vmatpush1.msra.mxu0 0.0
    %482 = vmatprep.subr.mxu0 0.0
    %483 = vmatpush1.msra.mxu0 0.0
    %484 = vmatprep.subr.mxu0 0.0
    %485 = vmatpush1.msra.mxu0 0.0
    %486 = vmatprep.subr.mxu0 0.0
    %487 = vmatpush1.msra.mxu0 0.0
    %488 = vmatprep.subr.mxu0 0.0
    %489 = vmatpush1.msra.mxu0 0.0
    %490 = vmatprep.subr.mxu0 0.0
    %491 = vmatpush1.msra.mxu0 0.0
    %492 = vmatprep.subr.mxu0 0.0
    %493 = vmatpush1.msra.mxu0 0.0
    %494 = vmatprep.subr.mxu0 0.0
    %495 = vmatpush1.msra.mxu0 0.0
    %496 = vmatprep.subr.mxu0 0.0
    %497 = vmatpush1.msra.mxu0 0.0
    %498 = vmatprep.subr.mxu0 0.0
    %499 = vmatpush1.msra.mxu0 0.0
    %500 = vmatprep.subr.mxu0 0.0
    %501 = vmatpush1.msra.mxu0 0.0
    %502 = vmatprep.subr.mxu0 0.0
    %503 = vmatpush1.msra.mxu0 0.0
    %504 = vmatprep.subr.mxu0 0.0
    %505 = vmatpush1.msra.mxu0 0.0
    %506 = vmatprep.subr.mxu0 0.0
    %507 = vmatpush1.msra.mxu0 0.0
    %508 = vmatprep.subr.mxu0 0.0
    %509 = vmatpush1.msra.mxu0 0.0
    %510 = vmatprep.subr.mxu0 0.0
    %511 = vmatpush1.msra.mxu0 0.0
    %512 = vmatprep.subr.mxu0 0.0
    %513 = vmatpush1.msra.mxu0 0.0
    %514 = vmatprep.subr.mxu0 0.0
    %515 = vmatpush1.msra.mxu0 0.0
    %516 = vmatprep.subr.mxu0 0.0
    %517 = vmatpush1.msra.mxu0 0.0
    %518 = vmatprep.subr.mxu0 0.0
    %519 = vmatpush1.msra.mxu0 0.0
    %520 = vmatprep.subr.mxu0 0.0
    %521 = vmatpush1.msra.mxu0 0.0
    %522 = vmatprep.subr.mxu0 0.0
    %523 = vmatpush1.msra.mxu0 0.0
    %524 = vmatprep.subr.mxu0 0.0
    %525 = vmatpush1.msra.mxu0 0.0
    %526 = vmatprep.subr.mxu0 0.0
    %527 = vmatpush1.msra.mxu0 0.0
    %528 = vmatprep.subr.mxu0 0.0
    %529 = vmatpush1.msra.mxu0 0.0
    %530 = vmatprep.subr.mxu0 0.0
    %531 = vmatpush1.msra.mxu0 0.0
    %532 = vmatprep.subr.mxu0 0.0
    %533 = vmatpush1.msra.mxu0 0.0
    %534 = vmatprep.mubr.f32.mxu0 0.0
    %535 = vmatmul.mubr.f32.gmra.mrb[0].mxu0 %v468
    %v536 = vpop.f32.mrb[0].mxu0
    %v537 = vadd.f32 0.0, %v536
    %v538 = vpop.f32.mrb[0].mxu0
    %539 = vdwg.mxu0
    %v540 = vadd.f32 %v224, %v537
    %v541 = vxor.u32 %v540, 2147483648
    %v542 = vmul.f32 %v541, 1.442695
    %v543 = vpow.pop %v542
    %v544 = vadd.f32 %v543, 1.0
    %v545 = vrcp.pop %v544
    %v546 = vmul.f32 1.0, %v545
    %v547 = vtanh.pop %v540
    %v548 = vmul.f32 %v546, %v351
    %550 = vrot.lane.b32.xlu0 %v547, 96
    %v551 = vpop.permute.xlu0 %550
    %v553 = vmul.f32 %v546, %v551
    %555 = vrot.lane.b32.xlu0 %v553, 16
    %v556 = vpop.permute.xlu0 %555
    %v558 = vadd.f32 %v548, %v556
    %v559 = vtanh.pop %v558
    %561 = vrot.lane.b32.xlu0 %v559, 32
    %v562 = vpop.permute.xlu0 %561
    %v564 = vmul.f32 %v546, %v562
    %565 = vrot.lane.b32.xlu0 %v456, 16
    %v566 = vpop.permute.xlu0 %565
    %v567 = vsel %vm259, %v566, 0
    %569 = vmatprep.subr.mxu0 0.0
    %570 = vmatpush1.msra.mxu0 %v257
    %571 = vmatprep.subr.mxu0 0.0
    %572 = vmatpush1.msra.mxu0 %v258
    %573 = vmatprep.subr.mxu0 0.0
    %574 = vmatpush1.msra.mxu0 0.0
    %575 = vmatprep.subr.mxu0 0.0
    %576 = vmatpush1.msra.mxu0 0.0
    %577 = vmatprep.subr.mxu0 0.0
    %578 = vmatpush1.msra.mxu0 0.0
    %579 = vmatprep.subr.mxu0 0.0
    %580 = vmatpush1.msra.mxu0 0.0
    %581 = vmatprep.subr.mxu0 0.0
    %582 = vmatpush1.msra.mxu0 0.0
    %583 = vmatprep.subr.mxu0 0.0
    %584 = vmatpush1.msra.mxu0 0.0
    %585 = vmatprep.subr.mxu0 0.0
    %586 = vmatpush1.msra.mxu0 0.0
    %587 = vmatprep.subr.mxu0 0.0
    %588 = vmatpush1.msra.mxu0 0.0
    %589 = vmatprep.subr.mxu0 0.0
    %590 = vmatpush1.msra.mxu0 0.0
    %591 = vmatprep.subr.mxu0 0.0
    %592 = vmatpush1.msra.mxu0 0.0
    %593 = vmatprep.subr.mxu0 0.0
    %594 = vmatpush1.msra.mxu0 0.0
    %595 = vmatprep.subr.mxu0 0.0
    %596 = vmatpush1.msra.mxu0 0.0
    %597 = vmatprep.subr.mxu0 0.0
    %598 = vmatpush1.msra.mxu0 0.0
    %599 = vmatprep.subr.mxu0 0.0
    %600 = vmatpush1.msra.mxu0 0.0
    %601 = vmatprep.subr.mxu0 0.0
    %602 = vmatpush1.msra.mxu0 0.0
    %603 = vmatprep.subr.mxu0 0.0
    %604 = vmatpush1.msra.mxu0 0.0
    %605 = vmatprep.subr.mxu0 0.0
    %606 = vmatpush1.msra.mxu0 0.0
    %607 = vmatprep.subr.mxu0 0.0
    %608 = vmatpush1.msra.mxu0 0.0
    %609 = vmatprep.subr.mxu0 0.0
    %610 = vmatpush1.msra.mxu0 0.0
    %611 = vmatprep.subr.mxu0 0.0
    %612 = vmatpush1.msra.mxu0 0.0
    %613 = vmatprep.subr.mxu0 0.0
    %614 = vmatpush1.msra.mxu0 0.0
    %615 = vmatprep.subr.mxu0 0.0
    %616 = vmatpush1.msra.mxu0 0.0
    %617 = vmatprep.subr.mxu0 0.0
    %618 = vmatpush1.msra.mxu0 0.0
    %619 = vmatprep.subr.mxu0 0.0
    %620 = vmatpush1.msra.mxu0 0.0
    %621 = vmatprep.subr.mxu0 0.0
    %622 = vmatpush1.msra.mxu0 0.0
    %623 = vmatprep.subr.mxu0 0.0
    %624 = vmatpush1.msra.mxu0 0.0
    %625 = vmatprep.subr.mxu0 0.0
    %626 = vmatpush1.msra.mxu0 0.0
    %627 = vmatprep.subr.mxu0 0.0
    %628 = vmatpush1.msra.mxu0 0.0
    %629 = vmatprep.subr.mxu0 0.0
    %630 = vmatpush1.msra.mxu0 0.0
    %631 = vmatprep.subr.mxu0 0.0
    %632 = vmatpush1.msra.mxu0 0.0
    %633 = vmatprep.mubr.f32.mxu0 0.0
    %634 = vmatmul.mubr.f32.gmra.mrb[0].mxu0 %v567
    %v635 = vpop.f32.mrb[0].mxu0
    %v636 = vadd.f32 0.0, %v635
    %v637 = vpop.f32.mrb[0].mxu0
    %638 = vdwg.mxu0
    %640 = vrot.lane.b32.xlu0 %v636, 64
    %v641 = vpop.permute.xlu0 %640
    %v643 = vadd.f32 %v249, %v641
    %v644 = vxor.u32 %v643, 2147483648
    %v645 = vmul.f32 %v644, 1.442695
    %v646 = vpow.pop %v645
    %v647 = vadd.f32 %v646, 1.0
    %v648 = vrcp.pop %v647
    %v649 = vmul.f32 1.0, %v648
    %v650 = vtanh.pop %v643
    %v651 = vmul.f32 %v649, %v450
    %653 = vrot.lane.b32.xlu0 %v650, 96
    %v654 = vpop.permute.xlu0 %653
    %v656 = vmul.f32 %v649, %v654
    %658 = vrot.lane.b32.xlu0 %v656, 16
    %v659 = vpop.permute.xlu0 %658
    %v661 = vadd.f32 %v651, %v659
    %v662 = vtanh.pop %v661
    %664 = vrot.lane.b32.xlu0 %v662, 32
    %v665 = vpop.permute.xlu0 %664
    %v667 = vmul.f32 %v649, %v665
    %669 = vrot.lane.b32.xlu0 %v564, 80
    %v670 = vpop.permute.xlu0 %669
    %672 = vst.msk [vmem:[#allocation2 + $0x8] sm:$0xff] %vm259, %v670
    %674 = vrot.lane.b32.xlu0 %v667, 32
    %v675 = vpop.permute.xlu0 %674
    %677 = vst.msk [vmem:[#allocation2 + $0x30] sm:$0xff] %vm466, %v675
    %v678 = vsel %vm259, %v670, 0
    %680 = vmatprep.subr.mxu0 0.0
    %681 = vmatpush1.msra.mxu0 %v114
    %682 = vmatprep.subr.mxu0 0.0
    %683 = vmatpush1.msra.mxu0 %v115
    %684 = vmatprep.subr.mxu0 0.0
    %685 = vmatpush1.msra.mxu0 0.0
    %686 = vmatprep.subr.mxu0 0.0
    %687 = vmatpush1.msra.mxu0 0.0
    %688 = vmatprep.subr.mxu0 0.0
    %689 = vmatpush1.msra.mxu0 0.0
    %690 = vmatprep.subr.mxu0 0.0
    %691 = vmatpush1.msra.mxu0 0.0
    %692 = vmatprep.subr.mxu0 0.0
    %693 = vmatpush1.msra.mxu0 0.0
    %694 = vmatprep.subr.mxu0 0.0
    %695 = vmatpush1.msra.mxu0 0.0
    %696 = vmatprep.subr.mxu0 0.0
    %697 = vmatpush1.msra.mxu0 0.0
    %698 = vmatprep.subr.mxu0 0.0
    %699 = vmatpush1.msra.mxu0 0.0
    %700 = vmatprep.subr.mxu0 0.0
    %701 = vmatpush1.msra.mxu0 0.0
    %702 = vmatprep.subr.mxu0 0.0
    %703 = vmatpush1.msra.mxu0 0.0
    %704 = vmatprep.subr.mxu0 0.0
    %705 = vmatpush1.msra.mxu0 0.0
    %706 = vmatprep.subr.mxu0 0.0
    %707 = vmatpush1.msra.mxu0 0.0
    %708 = vmatprep.subr.mxu0 0.0
    %709 = vmatpush1.msra.mxu0 0.0
    %710 = vmatprep.subr.mxu0 0.0
    %711 = vmatpush1.msra.mxu0 0.0
    %712 = vmatprep.subr.mxu0 0.0
    %713 = vmatpush1.msra.mxu0 0.0
    %714 = vmatprep.subr.mxu0 0.0
    %715 = vmatpush1.msra.mxu0 0.0
    %716 = vmatprep.subr.mxu0 0.0
    %717 = vmatpush1.msra.mxu0 0.0
    %718 = vmatprep.subr.mxu0 0.0
    %719 = vmatpush1.msra.mxu0 0.0
    %720 = vmatprep.subr.mxu0 0.0
    %721 = vmatpush1.msra.mxu0 0.0
    %722 = vmatprep.subr.mxu0 0.0
    %723 = vmatpush1.msra.mxu0 0.0
    %724 = vmatprep.subr.mxu0 0.0
    %725 = vmatpush1.msra.mxu0 0.0
    %726 = vmatprep.subr.mxu0 0.0
    %727 = vmatpush1.msra.mxu0 0.0
    %728 = vmatprep.subr.mxu0 0.0
    %729 = vmatpush1.msra.mxu0 0.0
    %730 = vmatprep.subr.mxu0 0.0
    %731 = vmatpush1.msra.mxu0 0.0
    %732 = vmatprep.subr.mxu0 0.0
    %733 = vmatpush1.msra.mxu0 0.0
    %734 = vmatprep.subr.mxu0 0.0
    %735 = vmatpush1.msra.mxu0 0.0
    %736 = vmatprep.subr.mxu0 0.0
    %737 = vmatpush1.msra.mxu0 0.0
    %738 = vmatprep.subr.mxu0 0.0
    %739 = vmatpush1.msra.mxu0 0.0
    %740 = vmatprep.subr.mxu0 0.0
    %741 = vmatpush1.msra.mxu0 0.0
    %742 = vmatprep.subr.mxu0 0.0
    %743 = vmatpush1.msra.mxu0 0.0
    %744 = vmatprep.mubr.f32.mxu0 0.0
    %745 = vmatmul.mubr.f32.gmra.mrb[0].mxu0 %v678
    %v746 = vpop.f32.mrb[0].mxu0
    %v747 = vadd.f32 0.0, %v746
    %v748 = vpop.f32.mrb[0].mxu0
    %749 = vdwg.mxu0
    %v750 = vadd.f32 %v229, %v747
    %v751 = vxor.u32 %v750, 2147483648
    %v752 = vmul.f32 %v751, 1.442695
    %v753 = vpow.pop %v752
    %v754 = vadd.f32 %v753, 1.0
    %v755 = vrcp.pop %v754
    %v756 = vmul.f32 1.0, %v755
    %v757 = vtanh.pop %v750
    %v758 = vmul.f32 %v756, %v558
    %760 = vrot.lane.b32.xlu0 %v757, 96
    %v761 = vpop.permute.xlu0 %760
    %v763 = vmul.f32 %v756, %v761
    %765 = vrot.lane.b32.xlu0 %v763, 16
    %v766 = vpop.permute.xlu0 %765
    %v768 = vadd.f32 %v758, %v766
    %v769 = vtanh.pop %v768
    %771 = vrot.lane.b32.xlu0 %v769, 32
    %v772 = vpop.permute.xlu0 %771
    %v774 = vmul.f32 %v756, %v772
    %775 = vrot.lane.b32.xlu0 %v667, 16
    %v776 = vpop.permute.xlu0 %775
    %v777 = vsel %vm259, %v776, 0
    %779 = vmatprep.subr.mxu0 0.0
    %780 = vmatpush1.msra.mxu0 %v257
    %781 = vmatprep.subr.mxu0 0.0
    %782 = vmatpush1.msra.mxu0 %v258
    %783 = vmatprep.subr.mxu0 0.0
    %784 = vmatpush1.msra.mxu0 0.0
    %785 = vmatprep.subr.mxu0 0.0
    %786 = vmatpush1.msra.mxu0 0.0
    %787 = vmatprep.subr.mxu0 0.0
    %788 = vmatpush1.msra.mxu0 0.0
    %789 = vmatprep.subr.mxu0 0.0
    %790 = vmatpush1.msra.mxu0 0.0
    %791 = vmatprep.subr.mxu0 0.0
    %792 = vmatpush1.msra.mxu0 0.0
    %793 = vmatprep.subr.mxu0 0.0
    %794 = vmatpush1.msra.mxu0 0.0
    %795 = vmatprep.subr.mxu0 0.0
    %796 = vmatpush1.msra.mxu0 0.0
    %797 = vmatprep.subr.mxu0 0.0
    %798 = vmatpush1.msra.mxu0 0.0
    %799 = vmatprep.subr.mxu0 0.0
    %800 = vmatpush1.msra.mxu0 0.0
    %801 = vmatprep.subr.mxu0 0.0
    %802 = vmatpush1.msra.mxu0 0.0
    %803 = vmatprep.subr.mxu0 0.0
    %804 = vmatpush1.msra.mxu0 0.0
    %805 = vmatprep.subr.mxu0 0.0
    %806 = vmatpush1.msra.mxu0 0.0
    %807 = vmatprep.subr.mxu0 0.0
    %808 = vmatpush1.msra.mxu0 0.0
    %809 = vmatprep.subr.mxu0 0.0
    %810 = vmatpush1.msra.mxu0 0.0
    %811 = vmatprep.subr.mxu0 0.0
    %812 = vmatpush1.msra.mxu0 0.0
    %813 = vmatprep.subr.mxu0 0.0
    %814 = vmatpush1.msra.mxu0 0.0
    %815 = vmatprep.subr.mxu0 0.0
    %816 = vmatpush1.msra.mxu0 0.0
    %817 = vmatprep.subr.mxu0 0.0
    %818 = vmatpush1.msra.mxu0 0.0
    %819 = vmatprep.subr.mxu0 0.0
    %820 = vmatpush1.msra.mxu0 0.0
    %821 = vmatprep.subr.mxu0 0.0
    %822 = vmatpush1.msra.mxu0 0.0
    %823 = vmatprep.subr.mxu0 0.0
    %824 = vmatpush1.msra.mxu0 0.0
    %825 = vmatprep.subr.mxu0 0.0
    %826 = vmatpush1.msra.mxu0 0.0
    %827 = vmatprep.subr.mxu0 0.0
    %828 = vmatpush1.msra.mxu0 0.0
    %829 = vmatprep.subr.mxu0 0.0
    %830 = vmatpush1.msra.mxu0 0.0
    %831 = vmatprep.subr.mxu0 0.0
    %832 = vmatpush1.msra.mxu0 0.0
    %833 = vmatprep.subr.mxu0 0.0
    %834 = vmatpush1.msra.mxu0 0.0
    %835 = vmatprep.subr.mxu0 0.0
    %836 = vmatpush1.msra.mxu0 0.0
    %837 = vmatprep.subr.mxu0 0.0
    %838 = vmatpush1.msra.mxu0 0.0
    %839 = vmatprep.subr.mxu0 0.0
    %840 = vmatpush1.msra.mxu0 0.0
    %841 = vmatprep.subr.mxu0 0.0
    %842 = vmatpush1.msra.mxu0 0.0
    %843 = vmatprep.mubr.f32.mxu0 0.0
    %844 = vmatmul.mubr.f32.gmra.mrb[0].mxu0 %v777
    %v845 = vpop.f32.mrb[0].mxu0
    %v846 = vadd.f32 0.0, %v845
    %v847 = vpop.f32.mrb[0].mxu0
    %848 = vdwg.mxu0
    %850 = vrot.lane.b32.xlu0 %v846, 64
    %v851 = vpop.permute.xlu0 %850
    %v853 = vadd.f32 %v244, %v851
    %v854 = vxor.u32 %v853, 2147483648
    %v855 = vmul.f32 %v854, 1.442695
    %v856 = vpow.pop %v855
    %v857 = vadd.f32 %v856, 1.0
    %v858 = vrcp.pop %v857
    %v859 = vmul.f32 1.0, %v858
    %v860 = vtanh.pop %v853
    %v861 = vmul.f32 %v859, %v661
    %863 = vrot.lane.b32.xlu0 %v860, 96
    %v864 = vpop.permute.xlu0 %863
    %v866 = vmul.f32 %v859, %v864
    %868 = vrot.lane.b32.xlu0 %v866, 16
    %v869 = vpop.permute.xlu0 %868
    %v871 = vadd.f32 %v861, %v869
    %v872 = vtanh.pop %v871
    %874 = vrot.lane.b32.xlu0 %v872, 32
    %v875 = vpop.permute.xlu0 %874
    %v877 = vmul.f32 %v859, %v875
    %879 = vrot.lane.b32.xlu0 %v774, 80
    %v880 = vpop.permute.xlu0 %879
    %882 = vst.msk [vmem:[#allocation2 + $0x10] sm:$0xff] %vm259, %v880
    %884 = vrot.lane.b32.xlu0 %v877, 32
    %v885 = vpop.permute.xlu0 %884
    %887 = vst.msk [vmem:[#allocation2 + $0x28] sm:$0xff] %vm466, %v885
    %v888 = vsel %vm259, %v880, 0
    %890 = vmatprep.subr.mxu0 0.0
    %891 = vmatpush1.msra.mxu0 %v114
    %892 = vmatprep.subr.mxu0 0.0
    %893 = vmatpush1.msra.mxu0 %v115
    %894 = vmatprep.subr.mxu0 0.0
    %895 = vmatpush1.msra.mxu0 0.0
    %896 = vmatprep.subr.mxu0 0.0
    %897 = vmatpush1.msra.mxu0 0.0
    %898 = vmatprep.subr.mxu0 0.0
    %899 = vmatpush1.msra.mxu0 0.0
    %900 = vmatprep.subr.mxu0 0.0
    %901 = vmatpush1.msra.mxu0 0.0
    %902 = vmatprep.subr.mxu0 0.0
    %903 = vmatpush1.msra.mxu0 0.0
    %904 = vmatprep.subr.mxu0 0.0
    %905 = vmatpush1.msra.mxu0 0.0
    %906 = vmatprep.subr.mxu0 0.0
    %907 = vmatpush1.msra.mxu0 0.0
    %908 = vmatprep.subr.mxu0 0.0
    %909 = vmatpush1.msra.mxu0 0.0
    %910 = vmatprep.subr.mxu0 0.0
    %911 = vmatpush1.msra.mxu0 0.0
    %912 = vmatprep.subr.mxu0 0.0
    %913 = vmatpush1.msra.mxu0 0.0
    %914 = vmatprep.subr.mxu0 0.0
    %915 = vmatpush1.msra.mxu0 0.0
    %916 = vmatprep.subr.mxu0 0.0
    %917 = vmatpush1.msra.mxu0 0.0
    %918 = vmatprep.subr.mxu0 0.0
    %919 = vmatpush1.msra.mxu0 0.0
    %920 = vmatprep.subr.mxu0 0.0
    %921 = vmatpush1.msra.mxu0 0.0
    %922 = vmatprep.subr.mxu0 0.0
    %923 = vmatpush1.msra.mxu0 0.0
    %924 = vmatprep.subr.mxu0 0.0
    %925 = vmatpush1.msra.mxu0 0.0
    %926 = vmatprep.subr.mxu0 0.0
    %927 = vmatpush1.msra.mxu0 0.0
    %928 = vmatprep.subr.mxu0 0.0
    %929 = vmatpush1.msra.mxu0 0.0
    %930 = vmatprep.subr.mxu0 0.0
    %931 = vmatpush1.msra.mxu0 0.0
    %932 = vmatprep.subr.mxu0 0.0
    %933 = vmatpush1.msra.mxu0 0.0
    %934 = vmatprep.subr.mxu0 0.0
    %935 = vmatpush1.msra.mxu0 0.0
    %936 = vmatprep.subr.mxu0 0.0
    %937 = vmatpush1.msra.mxu0 0.0
    %938 = vmatprep.subr.mxu0 0.0
    %939 = vmatpush1.msra.mxu0 0.0
    %940 = vmatprep.subr.mxu0 0.0
    %941 = vmatpush1.msra.mxu0 0.0
    %942 = vmatprep.subr.mxu0 0.0
    %943 = vmatpush1.msra.mxu0 0.0
    %944 = vmatprep.subr.mxu0 0.0
    %945 = vmatpush1.msra.mxu0 0.0
    %946 = vmatprep.subr.mxu0 0.0
    %947 = vmatpush1.msra.mxu0 0.0
    %948 = vmatprep.subr.mxu0 0.0
    %949 = vmatpush1.msra.mxu0 0.0
    %950 = vmatprep.subr.mxu0 0.0
    %951 = vmatpush1.msra.mxu0 0.0
    %952 = vmatprep.subr.mxu0 0.0
    %953 = vmatpush1.msra.mxu0 0.0
    %954 = vmatprep.mubr.f32.mxu0 0.0
    %955 = vmatmul.mubr.f32.gmra.mrb[0].mxu0 %v888
    %v956 = vpop.f32.mrb[0].mxu0
    %v957 = vadd.f32 0.0, %v956
    %v958 = vpop.f32.mrb[0].mxu0
    %959 = vdwg.mxu0
    %v960 = vadd.f32 %v234, %v957
    %v961 = vxor.u32 %v960, 2147483648
    %v962 = vmul.f32 %v961, 1.442695
    %v963 = vpow.pop %v962
    %v964 = vadd.f32 %v963, 1.0
    %v965 = vrcp.pop %v964
    %v966 = vmul.f32 1.0, %v965
    %v967 = vtanh.pop %v960
    %v968 = vmul.f32 %v966, %v768
    %970 = vrot.lane.b32.xlu0 %v967, 96
    %v971 = vpop.permute.xlu0 %970
    %v973 = vmul.f32 %v966, %v971
    %975 = vrot.lane.b32.xlu0 %v973, 16
    %v976 = vpop.permute.xlu0 %975
    %v978 = vadd.f32 %v968, %v976
    %v979 = vtanh.pop %v978
    %981 = vrot.lane.b32.xlu0 %v979, 32
    %v982 = vpop.permute.xlu0 %981
    %v984 = vmul.f32 %v966, %v982
    %985 = vrot.lane.b32.xlu0 %v877, 16
    %v986 = vpop.permute.xlu0 %985
    %v987 = vsel %vm259, %v986, 0
    %989 = vmatprep.subr.mxu0 0.0
    %990 = vmatpush1.msra.mxu0 %v257
    %991 = vmatprep.subr.mxu0 0.0
    %992 = vmatpush1.msra.mxu0 %v258
    %993 = vmatprep.subr.mxu0 0.0
    %994 = vmatpush1.msra.mxu0 0.0
    %995 = vmatprep.subr.mxu0 0.0
    %996 = vmatpush1.msra.mxu0 0.0
    %997 = vmatprep.subr.mxu0 0.0
    %998 = vmatpush1.msra.mxu0 0.0
    %999 = vmatprep.subr.mxu0 0.0
    %1000 = vmatpush1.msra.mxu0 0.0
    %1001 = vmatprep.subr.mxu0 0.0
    %1002 = vmatpush1.msra.mxu0 0.0
    %1003 = vmatprep.subr.mxu0 0.0
    %1004 = vmatpush1.msra.mxu0 0.0
    %1005 = vmatprep.subr.mxu0 0.0
    %1006 = vmatpush1.msra.mxu0 0.0
    %1007 = vmatprep.subr.mxu0 0.0
    %1008 = vmatpush1.msra.mxu0 0.0
    %1009 = vmatprep.subr.mxu0 0.0
    %1010 = vmatpush1.msra.mxu0 0.0
    %1011 = vmatprep.subr.mxu0 0.0
    %1012 = vmatpush1.msra.mxu0 0.0
    %1013 = vmatprep.subr.mxu0 0.0
    %1014 = vmatpush1.msra.mxu0 0.0
    %1015 = vmatprep.subr.mxu0 0.0
    %1016 = vmatpush1.msra.mxu0 0.0
    %1017 = vmatprep.subr.mxu0 0.0
    %1018 = vmatpush1.msra.mxu0 0.0
    %1019 = vmatprep.subr.mxu0 0.0
    %1020 = vmatpush1.msra.mxu0 0.0
    %1021 = vmatprep.subr.mxu0 0.0
    %1022 = vmatpush1.msra.mxu0 0.0
    %1023 = vmatprep.subr.mxu0 0.0
    %1024 = vmatpush1.msra.mxu0 0.0
    %1025 = vmatprep.subr.mxu0 0.0
    %1026 = vmatpush1.msra.mxu0 0.0
    %1027 = vmatprep.subr.mxu0 0.0
    %1028 = vmatpush1.msra.mxu0 0.0
    %1029 = vmatprep.subr.mxu0 0.0
    %1030 = vmatpush1.msra.mxu0 0.0
    %1031 = vmatprep.subr.mxu0 0.0
    %1032 = vmatpush1.msra.mxu0 0.0
    %1033 = vmatprep.subr.mxu0 0.0
    %1034 = vmatpush1.msra.mxu0 0.0
    %1035 = vmatprep.subr.mxu0 0.0
    %1036 = vmatpush1.msra.mxu0 0.0
    %1037 = vmatprep.subr.mxu0 0.0
    %1038 = vmatpush1.msra.mxu0 0.0
    %1039 = vmatprep.subr.mxu0 0.0
    %1040 = vmatpush1.msra.mxu0 0.0
    %1041 = vmatprep.subr.mxu0 0.0
    %1042 = vmatpush1.msra.mxu0 0.0
    %1043 = vmatprep.subr.mxu0 0.0
    %1044 = vmatpush1.msra.mxu0 0.0
    %1045 = vmatprep.subr.mxu0 0.0
    %1046 = vmatpush1.msra.mxu0 0.0
    %1047 = vmatprep.subr.mxu0 0.0
    %1048 = vmatpush1.msra.mxu0 0.0
    %1049 = vmatprep.subr.mxu0 0.0
    %1050 = vmatpush1.msra.mxu0 0.0
    %1051 = vmatprep.subr.mxu0 0.0
    %1052 = vmatpush1.msra.mxu0 0.0
    %1053 = vmatprep.mubr.f32.mxu0 0.0
    %1054 = vmatmul.mubr.f32.gmra.mrb[0].mxu0 %v987
    %v1055 = vpop.f32.mrb[0].mxu0
    %v1056 = vadd.f32 0.0, %v1055
    %v1057 = vpop.f32.mrb[0].mxu0
    %1058 = vdwg.mxu0
    %1060 = vrot.lane.b32.xlu0 %v1056, 64
    %v1061 = vpop.permute.xlu0 %1060
    %v1063 = vadd.f32 %v239, %v1061
    %v1064 = vxor.u32 %v1063, 2147483648
    %v1065 = vmul.f32 %v1064, 1.442695
    %v1066 = vpow.pop %v1065
    %v1067 = vadd.f32 %v1066, 1.0
    %v1068 = vrcp.pop %v1067
    %v1069 = vmul.f32 1.0, %v1068
    %v1070 = vtanh.pop %v1063
    %v1071 = vmul.f32 %v1069, %v871
    %1073 = vrot.lane.b32.xlu0 %v1070, 96
    %v1074 = vpop.permute.xlu0 %1073
    %v1076 = vmul.f32 %v1069, %v1074
    %1078 = vrot.lane.b32.xlu0 %v1076, 16
    %v1079 = vpop.permute.xlu0 %1078
    %v1081 = vadd.f32 %v1071, %v1079
    %v1082 = vtanh.pop %v1081
    %1084 = vrot.lane.b32.xlu0 %v1082, 32
    %v1085 = vpop.permute.xlu0 %1084
    %v1087 = vmul.f32 %v1069, %v1085
    %1089 = vrot.lane.b32.xlu0 %v984, 80
    %v1090 = vpop.permute.xlu0 %1089
    %1092 = vst.msk [vmem:[#allocation2 + $0x18] sm:$0xff] %vm259, %v1090
    %1094 = vrot.lane.b32.xlu0 %v1087, 32
    %v1095 = vpop.permute.xlu0 %1094
    %1097 = vst.msk [vmem:[#allocation2 + $0x20] sm:$0xff] %vm466, %v1095
    %v1098 = vsel %vm259, %v1090, 0
    %1100 = vmatprep.subr.mxu0 0.0
    %1101 = vmatpush1.msra.mxu0 %v114
    %1102 = vmatprep.subr.mxu0 0.0
    %1103 = vmatpush1.msra.mxu0 %v115
    %1104 = vmatprep.subr.mxu0 0.0
    %1105 = vmatpush1.msra.mxu0 0.0
    %1106 = vmatprep.subr.mxu0 0.0
    %1107 = vmatpush1.msra.mxu0 0.0
    %1108 = vmatprep.subr.mxu0 0.0
    %1109 = vmatpush1.msra.mxu0 0.0
    %1110 = vmatprep.subr.mxu0 0.0
    %1111 = vmatpush1.msra.mxu0 0.0
    %1112 = vmatprep.subr.mxu0 0.0
    %1113 = vmatpush1.msra.mxu0 0.0
    %1114 = vmatprep.subr.mxu0 0.0
    %1115 = vmatpush1.msra.mxu0 0.0
    %1116 = vmatprep.subr.mxu0 0.0
    %1117 = vmatpush1.msra.mxu0 0.0
    %1118 = vmatprep.subr.mxu0 0.0
    %1119 = vmatpush1.msra.mxu0 0.0
    %1120 = vmatprep.subr.mxu0 0.0
    %1121 = vmatpush1.msra.mxu0 0.0
    %1122 = vmatprep.subr.mxu0 0.0
    %1123 = vmatpush1.msra.mxu0 0.0
    %1124 = vmatprep.subr.mxu0 0.0
    %1125 = vmatpush1.msra.mxu0 0.0
    %1126 = vmatprep.subr.mxu0 0.0
    %1127 = vmatpush1.msra.mxu0 0.0
    %1128 = vmatprep.subr.mxu0 0.0
    %1129 = vmatpush1.msra.mxu0 0.0
    %1130 = vmatprep.subr.mxu0 0.0
    %1131 = vmatpush1.msra.mxu0 0.0
    %1132 = vmatprep.subr.mxu0 0.0
    %1133 = vmatpush1.msra.mxu0 0.0
    %1134 = vmatprep.subr.mxu0 0.0
    %1135 = vmatpush1.msra.mxu0 0.0
    %1136 = vmatprep.subr.mxu0 0.0
    %1137 = vmatpush1.msra.mxu0 0.0
    %1138 = vmatprep.subr.mxu0 0.0
    %1139 = vmatpush1.msra.mxu0 0.0
    %1140 = vmatprep.subr.mxu0 0.0
    %1141 = vmatpush1.msra.mxu0 0.0
    %1142 = vmatprep.subr.mxu0 0.0
    %1143 = vmatpush1.msra.mxu0 0.0
    %1144 = vmatprep.subr.mxu0 0.0
    %1145 = vmatpush1.msra.mxu0 0.0
    %1146 = vmatprep.subr.mxu0 0.0
    %1147 = vmatpush1.msra.mxu0 0.0
    %1148 = vmatprep.subr.mxu0 0.0
    %1149 = vmatpush1.msra.mxu0 0.0
    %1150 = vmatprep.subr.mxu0 0.0
    %1151 = vmatpush1.msra.mxu0 0.0
    %1152 = vmatprep.subr.mxu0 0.0
    %1153 = vmatpush1.msra.mxu0 0.0
    %1154 = vmatprep.subr.mxu0 0.0
    %1155 = vmatpush1.msra.mxu0 0.0
    %1156 = vmatprep.subr.mxu0 0.0
    %1157 = vmatpush1.msra.mxu0 0.0
    %1158 = vmatprep.subr.mxu0 0.0
    %1159 = vmatpush1.msra.mxu0 0.0
    %1160 = vmatprep.subr.mxu0 0.0
    %1161 = vmatpush1.msra.mxu0 0.0
    %1162 = vmatprep.subr.mxu0 0.0
    %1163 = vmatpush1.msra.mxu0 0.0
    %1164 = vmatprep.mubr.f32.mxu0 0.0
    %1165 = vmatmul.mubr.f32.gmra.mrb[0].mxu0 %v1098
    %v1166 = vpop.f32.mrb[0].mxu0
    %v1167 = vadd.f32 0.0, %v1166
    %v1168 = vpop.f32.mrb[0].mxu0
    %1169 = vdwg.mxu0
    %v1170 = vadd.f32 %v239, %v1167
    %v1171 = vxor.u32 %v1170, 2147483648
    %v1172 = vmul.f32 %v1171, 1.442695
    %v1173 = vpow.pop %v1172
    %v1174 = vadd.f32 %v1173, 1.0
    %v1175 = vrcp.pop %v1174
    %v1176 = vmul.f32 1.0, %v1175
    %v1177 = vtanh.pop %v1170
    %v1178 = vmul.f32 %v1176, %v978
    %1180 = vrot.lane.b32.xlu0 %v1177, 96
    %v1181 = vpop.permute.xlu0 %1180
    %v1183 = vmul.f32 %v1176, %v1181
    %1185 = vrot.lane.b32.xlu0 %v1183, 16
    %v1186 = vpop.permute.xlu0 %1185
    %v1188 = vadd.f32 %v1178, %v1186
    %v1189 = vtanh.pop %v1188
    %1191 = vrot.lane.b32.xlu0 %v1189, 32
    %v1192 = vpop.permute.xlu0 %1191
    %v1194 = vmul.f32 %v1176, %v1192
    %1195 = vrot.lane.b32.xlu0 %v1087, 16
    %v1196 = vpop.permute.xlu0 %1195
    %v1197 = vsel %vm259, %v1196, 0
    %1199 = vmatprep.subr.mxu0 0.0
    %1200 = vmatpush1.msra.mxu0 %v257
    %1201 = vmatprep.subr.mxu0 0.0
    %1202 = vmatpush1.msra.mxu0 %v258
    %1203 = vmatprep.subr.mxu0 0.0
    %1204 = vmatpush1.msra.mxu0 0.0
    %1205 = vmatprep.subr.mxu0 0.0
    %1206 = vmatpush1.msra.mxu0 0.0
    %1207 = vmatprep.subr.mxu0 0.0
    %1208 = vmatpush1.msra.mxu0 0.0
    %1209 = vmatprep.subr.mxu0 0.0
    %1210 = vmatpush1.msra.mxu0 0.0
    %1211 = vmatprep.subr.mxu0 0.0
    %1212 = vmatpush1.msra.mxu0 0.0
    %1213 = vmatprep.subr.mxu0 0.0
    %1214 = vmatpush1.msra.mxu0 0.0
    %1215 = vmatprep.subr.mxu0 0.0
    %1216 = vmatpush1.msra.mxu0 0.0
    %1217 = vmatprep.subr.mxu0 0.0
    %1218 = vmatpush1.msra.mxu0 0.0
    %1219 = vmatprep.subr.mxu0 0.0
    %1220 = vmatpush1.msra.mxu0 0.0
    %1221 = vmatprep.subr.mxu0 0.0
    %1222 = vmatpush1.msra.mxu0 0.0
    %1223 = vmatprep.subr.mxu0 0.0
    %1224 = vmatpush1.msra.mxu0 0.0
    %1225 = vmatprep.subr.mxu0 0.0
    %1226 = vmatpush1.msra.mxu0 0.0
    %1227 = vmatprep.subr.mxu0 0.0
    %1228 = vmatpush1.msra.mxu0 0.0
    %1229 = vmatprep.subr.mxu0 0.0
    %1230 = vmatpush1.msra.mxu0 0.0
    %1231 = vmatprep.subr.mxu0 0.0
    %1232 = vmatpush1.msra.mxu0 0.0
    %1233 = vmatprep.subr.mxu0 0.0
    %1234 = vmatpush1.msra.mxu0 0.0
    %1235 = vmatprep.subr.mxu0 0.0
    %1236 = vmatpush1.msra.mxu0 0.0
    %1237 = vmatprep.subr.mxu0 0.0
    %1238 = vmatpush1.msra.mxu0 0.0
    %1239 = vmatprep.subr.mxu0 0.0
    %1240 = vmatpush1.msra.mxu0 0.0
    %1241 = vmatprep.subr.mxu0 0.0
    %1242 = vmatpush1.msra.mxu0 0.0
    %1243 = vmatprep.subr.mxu0 0.0
    %1244 = vmatpush1.msra.mxu0 0.0
    %1245 = vmatprep.subr.mxu0 0.0
    %1246 = vmatpush1.msra.mxu0 0.0
    %1247 = vmatprep.subr.mxu0 0.0
    %1248 = vmatpush1.msra.mxu0 0.0
    %1249 = vmatprep.subr.mxu0 0.0
    %1250 = vmatpush1.msra.mxu0 0.0
    %1251 = vmatprep.subr.mxu0 0.0
    %1252 = vmatpush1.msra.mxu0 0.0
    %1253 = vmatprep.subr.mxu0 0.0
    %1254 = vmatpush1.msra.mxu0 0.0
    %1255 = vmatprep.subr.mxu0 0.0
    %1256 = vmatpush1.msra.mxu0 0.0
    %1257 = vmatprep.subr.mxu0 0.0
    %1258 = vmatpush1.msra.mxu0 0.0
    %1259 = vmatprep.subr.mxu0 0.0
    %1260 = vmatpush1.msra.mxu0 0.0
    %1261 = vmatprep.subr.mxu0 0.0
    %1262 = vmatpush1.msra.mxu0 0.0
    %1263 = vmatprep.mubr.f32.mxu0 0.0
    %1264 = vmatmul.mubr.f32.gmra.mrb[0].mxu0 %v1197
    %v1265 = vpop.f32.mrb[0].mxu0
    %v1266 = vadd.f32 0.0, %v1265
    %v1267 = vpop.f32.mrb[0].mxu0
    %1268 = vdwg.mxu0
    %1270 = vrot.lane.b32.xlu0 %v1266, 64
    %v1271 = vpop.permute.xlu0 %1270
    %v1273 = vadd.f32 %v234, %v1271
    %v1274 = vxor.u32 %v1273, 2147483648
    %v1275 = vmul.f32 %v1274, 1.442695
    %v1276 = vpow.pop %v1275
    %v1277 = vadd.f32 %v1276, 1.0
    %v1278 = vrcp.pop %v1277
    %v1279 = vmul.f32 1.0, %v1278
    %v1280 = vtanh.pop %v1273
    %v1281 = vmul.f32 %v1279, %v1081
    %1283 = vrot.lane.b32.xlu0 %v1280, 96
    %v1284 = vpop.permute.xlu0 %1283
    %v1286 = vmul.f32 %v1279, %v1284
    %1288 = vrot.lane.b32.xlu0 %v1286, 16
    %v1289 = vpop.permute.xlu0 %1288
    %v1291 = vadd.f32 %v1281, %v1289
    %v1292 = vtanh.pop %v1291
    %1294 = vrot.lane.b32.xlu0 %v1292, 32
    %v1295 = vpop.permute.xlu0 %1294
    %v1297 = vmul.f32 %v1279, %v1295
    %1299 = vrot.lane.b32.xlu0 %v1194, 80
    %v1300 = vpop.permute.xlu0 %1299
    %1302 = vst.msk [vmem:[#allocation2 + $0x20] sm:$0xff] %vm259, %v1300
    %1304 = vrot.lane.b32.xlu0 %v1297, 32
    %v1305 = vpop.permute.xlu0 %1304
    %1307 = vst.msk [vmem:[#allocation2 + $0x18] sm:$0xff] %vm466, %v1305
    %v1308 = vsel %vm259, %v1300, 0
    %1310 = vmatprep.subr.mxu0 0.0
    %1311 = vmatpush1.msra.mxu0 %v114
    %1312 = vmatprep.subr.mxu0 0.0
    %1313 = vmatpush1.msra.mxu0 %v115
    %1314 = vmatprep.subr.mxu0 0.0
    %1315 = vmatpush1.msra.mxu0 0.0
    %1316 = vmatprep.subr.mxu0 0.0
    %1317 = vmatpush1.msra.mxu0 0.0
    %1318 = vmatprep.subr.mxu0 0.0
    %1319 = vmatpush1.msra.mxu0 0.0
    %1320 = vmatprep.subr.mxu0 0.0
    %1321 = vmatpush1.msra.mxu0 0.0
    %1322 = vmatprep.subr.mxu0 0.0
    %1323 = vmatpush1.msra.mxu0 0.0
    %1324 = vmatprep.subr.mxu0 0.0
    %1325 = vmatpush1.msra.mxu0 0.0
    %1326 = vmatprep.subr.mxu0 0.0
    %1327 = vmatpush1.msra.mxu0 0.0
    %1328 = vmatprep.subr.mxu0 0.0
    %1329 = vmatpush1.msra.mxu0 0.0
    %1330 = vmatprep.subr.mxu0 0.0
    %1331 = vmatpush1.msra.mxu0 0.0
    %1332 = vmatprep.subr.mxu0 0.0
    %1333 = vmatpush1.msra.mxu0 0.0
    %1334 = vmatprep.subr.mxu0 0.0
    %1335 = vmatpush1.msra.mxu0 0.0
    %1336 = vmatprep.subr.mxu0 0.0
    %1337 = vmatpush1.msra.mxu0 0.0
    %1338 = vmatprep.subr.mxu0 0.0
    %1339 = vmatpush1.msra.mxu0 0.0
    %1340 = vmatprep.subr.mxu0 0.0
    %1341 = vmatpush1.msra.mxu0 0.0
    %1342 = vmatprep.subr.mxu0 0.0
    %1343 = vmatpush1.msra.mxu0 0.0
    %1344 = vmatprep.subr.mxu0 0.0
    %1345 = vmatpush1.msra.mxu0 0.0
    %1346 = vmatprep.subr.mxu0 0.0
    %1347 = vmatpush1.msra.mxu0 0.0
    %1348 = vmatprep.subr.mxu0 0.0
    %1349 = vmatpush1.msra.mxu0 0.0
    %1350 = vmatprep.subr.mxu0 0.0
    %1351 = vmatpush1.msra.mxu0 0.0
    %1352 = vmatprep.subr.mxu0 0.0
    %1353 = vmatpush1.msra.mxu0 0.0
    %1354 = vmatprep.subr.mxu0 0.0
    %1355 = vmatpush1.msra.mxu0 0.0
    %1356 = vmatprep.subr.mxu0 0.0
    %1357 = vmatpush1.msra.mxu0 0.0
    %1358 = vmatprep.subr.mxu0 0.0
    %1359 = vmatpush1.msra.mxu0 0.0
    %1360 = vmatprep.subr.mxu0 0.0
    %1361 = vmatpush1.msra.mxu0 0.0
    %1362 = vmatprep.subr.mxu0 0.0
    %1363 = vmatpush1.msra.mxu0 0.0
    %1364 = vmatprep.subr.mxu0 0.0
    %1365 = vmatpush1.msra.mxu0 0.0
    %1366 = vmatprep.subr.mxu0 0.0
    %1367 = vmatpush1.msra.mxu0 0.0
    %1368 = vmatprep.subr.mxu0 0.0
    %1369 = vmatpush1.msra.mxu0 0.0
    %1370 = vmatprep.subr.mxu0 0.0
    %1371 = vmatpush1.msra.mxu0 0.0
    %1372 = vmatprep.subr.mxu0 0.0
    %1373 = vmatpush1.msra.mxu0 0.0
    %1374 = vmatprep.mubr.f32.mxu0 0.0
    %1375 = vmatmul.mubr.f32.gmra.mrb[0].mxu0 %v1308
    %v1376 = vpop.f32.mrb[0].mxu0
    %v1377 = vadd.f32 0.0, %v1376
    %v1378 = vpop.f32.mrb[0].mxu0
    %1379 = vdwg.mxu0
    %v1380 = vadd.f32 %v244, %v1377
    %v1381 = vxor.u32 %v1380, 2147483648
    %v1382 = vmul.f32 %v1381, 1.442695
    %v1383 = vpow.pop %v1382
    %v1384 = vadd.f32 %v1383, 1.0
    %v1385 = vrcp.pop %v1384
    %v1386 = vmul.f32 1.0, %v1385
    %v1387 = vtanh.pop %v1380
    %v1388 = vmul.f32 %v1386, %v1188
    %1390 = vrot.lane.b32.xlu0 %v1387, 96
    %v1391 = vpop.permute.xlu0 %1390
    %v1393 = vmul.f32 %v1386, %v1391
    %1395 = vrot.lane.b32.xlu0 %v1393, 16
    %v1396 = vpop.permute.xlu0 %1395
    %v1398 = vadd.f32 %v1388, %v1396
    %v1399 = vtanh.pop %v1398
    %1401 = vrot.lane.b32.xlu0 %v1399, 32
    %v1402 = vpop.permute.xlu0 %1401
    %v1404 = vmul.f32 %v1386, %v1402
    %1405 = vrot.lane.b32.xlu0 %v1297, 16
    %v1406 = vpop.permute.xlu0 %1405
    %v1407 = vsel %vm259, %v1406, 0
    %1409 = vmatprep.subr.mxu0 0.0
    %1410 = vmatpush1.msra.mxu0 %v257
    %1411 = vmatprep.subr.mxu0 0.0
    %1412 = vmatpush1.msra.mxu0 %v258
    %1413 = vmatprep.subr.mxu0 0.0
    %1414 = vmatpush1.msra.mxu0 0.0
    %1415 = vmatprep.subr.mxu0 0.0
    %1416 = vmatpush1.msra.mxu0 0.0
    %1417 = vmatprep.subr.mxu0 0.0
    %1418 = vmatpush1.msra.mxu0 0.0
    %1419 = vmatprep.subr.mxu0 0.0
    %1420 = vmatpush1.msra.mxu0 0.0
    %1421 = vmatprep.subr.mxu0 0.0
    %1422 = vmatpush1.msra.mxu0 0.0
    %1423 = vmatprep.subr.mxu0 0.0
    %1424 = vmatpush1.msra.mxu0 0.0
    %1425 = vmatprep.subr.mxu0 0.0
    %1426 = vmatpush1.msra.mxu0 0.0
    %1427 = vmatprep.subr.mxu0 0.0
    %1428 = vmatpush1.msra.mxu0 0.0
    %1429 = vmatprep.subr.mxu0 0.0
    %1430 = vmatpush1.msra.mxu0 0.0
    %1431 = vmatprep.subr.mxu0 0.0
    %1432 = vmatpush1.msra.mxu0 0.0
    %1433 = vmatprep.subr.mxu0 0.0
    %1434 = vmatpush1.msra.mxu0 0.0
    %1435 = vmatprep.subr.mxu0 0.0
    %1436 = vmatpush1.msra.mxu0 0.0
    %1437 = vmatprep.subr.mxu0 0.0
    %1438 = vmatpush1.msra.mxu0 0.0
    %1439 = vmatprep.subr.mxu0 0.0
    %1440 = vmatpush1.msra.mxu0 0.0
    %1441 = vmatprep.subr.mxu0 0.0
    %1442 = vmatpush1.msra.mxu0 0.0
    %1443 = vmatprep.subr.mxu0 0.0
    %1444 = vmatpush1.msra.mxu0 0.0
    %1445 = vmatprep.subr.mxu0 0.0
    %1446 = vmatpush1.msra.mxu0 0.0
    %1447 = vmatprep.subr.mxu0 0.0
    %1448 = vmatpush1.msra.mxu0 0.0
    %1449 = vmatprep.subr.mxu0 0.0
    %1450 = vmatpush1.msra.mxu0 0.0
    %1451 = vmatprep.subr.mxu0 0.0
    %1452 = vmatpush1.msra.mxu0 0.0
    %1453 = vmatprep.subr.mxu0 0.0
    %1454 = vmatpush1.msra.mxu0 0.0
    %1455 = vmatprep.subr.mxu0 0.0
    %1456 = vmatpush1.msra.mxu0 0.0
    %1457 = vmatprep.subr.mxu0 0.0
    %1458 = vmatpush1.msra.mxu0 0.0
    %1459 = vmatprep.subr.mxu0 0.0
    %1460 = vmatpush1.msra.mxu0 0.0
    %1461 = vmatprep.subr.mxu0 0.0
    %1462 = vmatpush1.msra.mxu0 0.0
    %1463 = vmatprep.subr.mxu0 0.0
    %1464 = vmatpush1.msra.mxu0 0.0
    %1465 = vmatprep.subr.mxu0 0.0
    %1466 = vmatpush1.msra.mxu0 0.0
    %1467 = vmatprep.subr.mxu0 0.0
    %1468 = vmatpush1.msra.mxu0 0.0
    %1469 = vmatprep.subr.mxu0 0.0
    %1470 = vmatpush1.msra.mxu0 0.0
    %1471 = vmatprep.subr.mxu0 0.0
    %1472 = vmatpush1.msra.mxu0 0.0
    %1473 = vmatprep.mubr.f32.mxu0 0.0
    %1474 = vmatmul.mubr.f32.gmra.mrb[0].mxu0 %v1407
    %v1475 = vpop.f32.mrb[0].mxu0
    %v1476 = vadd.f32 0.0, %v1475
    %v1477 = vpop.f32.mrb[0].mxu0
    %1478 = vdwg.mxu0
    %1480 = vrot.lane.b32.xlu0 %v1476, 64
    %v1481 = vpop.permute.xlu0 %1480
    %v1483 = vadd.f32 %v229, %v1481
    %v1484 = vxor.u32 %v1483, 2147483648
    %v1485 = vmul.f32 %v1484, 1.442695
    %v1486 = vpow.pop %v1485
    %v1487 = vadd.f32 %v1486, 1.0
    %v1488 = vrcp.pop %v1487
    %v1489 = vmul.f32 1.0, %v1488
    %v1490 = vtanh.pop %v1483
    %v1491 = vmul.f32 %v1489, %v1291
    %1493 = vrot.lane.b32.xlu0 %v1490, 96
    %v1494 = vpop.permute.xlu0 %1493
    %v1496 = vmul.f32 %v1489, %v1494
    %1498 = vrot.lane.b32.xlu0 %v1496, 16
    %v1499 = vpop.permute.xlu0 %1498
    %v1501 = vadd.f32 %v1491, %v1499
    %v1502 = vtanh.pop %v1501
    %1504 = vrot.lane.b32.xlu0 %v1502, 32
    %v1505 = vpop.permute.xlu0 %1504
    %v1507 = vmul.f32 %v1489, %v1505
    %1509 = vrot.lane.b32.xlu0 %v1404, 80
    %v1510 = vpop.permute.xlu0 %1509
    %1512 = vst.msk [vmem:[#allocation2 + $0x28] sm:$0xff] %vm259, %v1510
    %1514 = vrot.lane.b32.xlu0 %v1507, 32
    %v1515 = vpop.permute.xlu0 %1514
    %1517 = vst.msk [vmem:[#allocation2 + $0x10] sm:$0xff] %vm466, %v1515
    %v1518 = vsel %vm259, %v1510, 0
    %1520 = vmatprep.subr.mxu0 0.0
    %1521 = vmatpush1.msra.mxu0 %v114
    %1522 = vmatprep.subr.mxu0 0.0
    %1523 = vmatpush1.msra.mxu0 %v115
    %1524 = vmatprep.subr.mxu0 0.0
    %1525 = vmatpush1.msra.mxu0 0.0
    %1526 = vmatprep.subr.mxu0 0.0
    %1527 = vmatpush1.msra.mxu0 0.0
    %1528 = vmatprep.subr.mxu0 0.0
    %1529 = vmatpush1.msra.mxu0 0.0
    %1530 = vmatprep.subr.mxu0 0.0
    %1531 = vmatpush1.msra.mxu0 0.0
    %1532 = vmatprep.subr.mxu0 0.0
    %1533 = vmatpush1.msra.mxu0 0.0
    %1534 = vmatprep.subr.mxu0 0.0
    %1535 = vmatpush1.msra.mxu0 0.0
    %1536 = vmatprep.subr.mxu0 0.0
    %1537 = vmatpush1.msra.mxu0 0.0
    %1538 = vmatprep.subr.mxu0 0.0
    %1539 = vmatpush1.msra.mxu0 0.0
    %1540 = vmatprep.subr.mxu0 0.0
    %1541 = vmatpush1.msra.mxu0 0.0
    %1542 = vmatprep.subr.mxu0 0.0
    %1543 = vmatpush1.msra.mxu0 0.0
    %1544 = vmatprep.subr.mxu0 0.0
    %1545 = vmatpush1.msra.mxu0 0.0
    %1546 = vmatprep.subr.mxu0 0.0
    %1547 = vmatpush1.msra.mxu0 0.0
    %1548 = vmatprep.subr.mxu0 0.0
    %1549 = vmatpush1.msra.mxu0 0.0
    %1550 = vmatprep.subr.mxu0 0.0
    %1551 = vmatpush1.msra.mxu0 0.0
    %1552 = vmatprep.subr.mxu0 0.0
    %1553 = vmatpush1.msra.mxu0 0.0
    %1554 = vmatprep.subr.mxu0 0.0
    %1555 = vmatpush1.msra.mxu0 0.0
    %1556 = vmatprep.subr.mxu0 0.0
    %1557 = vmatpush1.msra.mxu0 0.0
    %1558 = vmatprep.subr.mxu0 0.0
    %1559 = vmatpush1.msra.mxu0 0.0
    %1560 = vmatprep.subr.mxu0 0.0
    %1561 = vmatpush1.msra.mxu0 0.0
    %1562 = vmatprep.subr.mxu0 0.0
    %1563 = vmatpush1.msra.mxu0 0.0
    %1564 = vmatprep.subr.mxu0 0.0
    %1565 = vmatpush1.msra.mxu0 0.0
    %1566 = vmatprep.subr.mxu0 0.0
    %1567 = vmatpush1.msra.mxu0 0.0
    %1568 = vmatprep.subr.mxu0 0.0
    %1569 = vmatpush1.msra.mxu0 0.0
    %1570 = vmatprep.subr.mxu0 0.0
    %1571 = vmatpush1.msra.mxu0 0.0
    %1572 = vmatprep.subr.mxu0 0.0
    %1573 = vmatpush1.msra.mxu0 0.0
    %1574 = vmatprep.subr.mxu0 0.0
    %1575 = vmatpush1.msra.mxu0 0.0
    %1576 = vmatprep.subr.mxu0 0.0
    %1577 = vmatpush1.msra.mxu0 0.0
    %1578 = vmatprep.subr.mxu0 0.0
    %1579 = vmatpush1.msra.mxu0 0.0
    %1580 = vmatprep.subr.mxu0 0.0
    %1581 = vmatpush1.msra.mxu0 0.0
    %1582 = vmatprep.subr.mxu0 0.0
    %1583 = vmatpush1.msra.mxu0 0.0
    %1584 = vmatprep.mubr.f32.mxu0 0.0
    %1585 = vmatmul.mubr.f32.gmra.mrb[0].mxu0 %v1518
    %v1586 = vpop.f32.mrb[0].mxu0
    %v1587 = vadd.f32 0.0, %v1586
    %v1588 = vpop.f32.mrb[0].mxu0
    %1589 = vdwg.mxu0
    %v1590 = vadd.f32 %v249, %v1587
    %v1591 = vxor.u32 %v1590, 2147483648
    %v1592 = vmul.f32 %v1591, 1.442695
    %v1593 = vpow.pop %v1592
    %v1594 = vadd.f32 %v1593, 1.0
    %v1595 = vrcp.pop %v1594
    %v1596 = vmul.f32 1.0, %v1595
    %v1597 = vtanh.pop %v1590
    %v1598 = vmul.f32 %v1596, %v1398
    %1600 = vrot.lane.b32.xlu0 %v1597, 96
    %v1601 = vpop.permute.xlu0 %1600
    %v1603 = vmul.f32 %v1596, %v1601
    %1605 = vrot.lane.b32.xlu0 %v1603, 16
    %v1606 = vpop.permute.xlu0 %1605
    %v1608 = vadd.f32 %v1598, %v1606
    %v1609 = vtanh.pop %v1608
    %1611 = vrot.lane.b32.xlu0 %v1609, 32
    %v1612 = vpop.permute.xlu0 %1611
    %v1614 = vmul.f32 %v1596, %v1612
    %1615 = vrot.lane.b32.xlu0 %v1507, 16
    %v1616 = vpop.permute.xlu0 %1615
    %v1617 = vsel %vm259, %v1616, 0
    %1619 = vmatprep.subr.mxu0 0.0
    %1620 = vmatpush1.msra.mxu0 %v257
    %1621 = vmatprep.subr.mxu0 0.0
    %1622 = vmatpush1.msra.mxu0 %v258
    %1623 = vmatprep.subr.mxu0 0.0
    %1624 = vmatpush1.msra.mxu0 0.0
    %1625 = vmatprep.subr.mxu0 0.0
    %1626 = vmatpush1.msra.mxu0 0.0
    %1627 = vmatprep.subr.mxu0 0.0
    %1628 = vmatpush1.msra.mxu0 0.0
    %1629 = vmatprep.subr.mxu0 0.0
    %1630 = vmatpush1.msra.mxu0 0.0
    %1631 = vmatprep.subr.mxu0 0.0
    %1632 = vmatpush1.msra.mxu0 0.0
    %1633 = vmatprep.subr.mxu0 0.0
    %1634 = vmatpush1.msra.mxu0 0.0
    %1635 = vmatprep.subr.mxu0 0.0
    %1636 = vmatpush1.msra.mxu0 0.0
    %1637 = vmatprep.subr.mxu0 0.0
    %1638 = vmatpush1.msra.mxu0 0.0
    %1639 = vmatprep.subr.mxu0 0.0
    %1640 = vmatpush1.msra.mxu0 0.0
    %1641 = vmatprep.subr.mxu0 0.0
    %1642 = vmatpush1.msra.mxu0 0.0
    %1643 = vmatprep.subr.mxu0 0.0
    %1644 = vmatpush1.msra.mxu0 0.0
    %1645 = vmatprep.subr.mxu0 0.0
    %1646 = vmatpush1.msra.mxu0 0.0
    %1647 = vmatprep.subr.mxu0 0.0
    %1648 = vmatpush1.msra.mxu0 0.0
    %1649 = vmatprep.subr.mxu0 0.0
    %1650 = vmatpush1.msra.mxu0 0.0
    %1651 = vmatprep.subr.mxu0 0.0
    %1652 = vmatpush1.msra.mxu0 0.0
    %1653 = vmatprep.subr.mxu0 0.0
    %1654 = vmatpush1.msra.mxu0 0.0
    %1655 = vmatprep.subr.mxu0 0.0
    %1656 = vmatpush1.msra.mxu0 0.0
    %1657 = vmatprep.subr.mxu0 0.0
    %1658 = vmatpush1.msra.mxu0 0.0
    %1659 = vmatprep.subr.mxu0 0.0
    %1660 = vmatpush1.msra.mxu0 0.0
    %1661 = vmatprep.subr.mxu0 0.0
    %1662 = vmatpush1.msra.mxu0 0.0
    %1663 = vmatprep.subr.mxu0 0.0
    %1664 = vmatpush1.msra.mxu0 0.0
    %1665 = vmatprep.subr.mxu0 0.0
    %1666 = vmatpush1.msra.mxu0 0.0
    %1667 = vmatprep.subr.mxu0 0.0
    %1668 = vmatpush1.msra.mxu0 0.0
    %1669 = vmatprep.subr.mxu0 0.0
    %1670 = vmatpush1.msra.mxu0 0.0
    %1671 = vmatprep.subr.mxu0 0.0
    %1672 = vmatpush1.msra.mxu0 0.0
    %1673 = vmatprep.subr.mxu0 0.0
    %1674 = vmatpush1.msra.mxu0 0.0
    %1675 = vmatprep.subr.mxu0 0.0
    %1676 = vmatpush1.msra.mxu0 0.0
    %1677 = vmatprep.subr.mxu0 0.0
    %1678 = vmatpush1.msra.mxu0 0.0
    %1679 = vmatprep.subr.mxu0 0.0
    %1680 = vmatpush1.msra.mxu0 0.0
    %1681 = vmatprep.subr.mxu0 0.0
    %1682 = vmatpush1.msra.mxu0 0.0
    %1683 = vmatprep.mubr.f32.mxu0 0.0
    %1684 = vmatmul.mubr.f32.gmra.mrb[0].mxu0 %v1617
    %v1685 = vpop.f32.mrb[0].mxu0
    %v1686 = vadd.f32 0.0, %v1685
    %v1687 = vpop.f32.mrb[0].mxu0
    %1688 = vdwg.mxu0
    %1690 = vrot.lane.b32.xlu0 %v1686, 64
    %v1691 = vpop.permute.xlu0 %1690
    %v1693 = vadd.f32 %v224, %v1691
    %v1694 = vxor.u32 %v1693, 2147483648
    %v1695 = vmul.f32 %v1694, 1.442695
    %v1696 = vpow.pop %v1695
    %v1697 = vadd.f32 %v1696, 1.0
    %v1698 = vrcp.pop %v1697
    %v1699 = vmul.f32 1.0, %v1698
    %v1700 = vtanh.pop %v1693
    %v1701 = vmul.f32 %v1699, %v1501
    %1703 = vrot.lane.b32.xlu0 %v1700, 96
    %v1704 = vpop.permute.xlu0 %1703
    %v1706 = vmul.f32 %v1699, %v1704
    %1708 = vrot.lane.b32.xlu0 %v1706, 16
    %v1709 = vpop.permute.xlu0 %1708
    %v1711 = vadd.f32 %v1701, %v1709
    %v1712 = vtanh.pop %v1711
    %1714 = vrot.lane.b32.xlu0 %v1712, 32
    %v1715 = vpop.permute.xlu0 %1714
    %v1717 = vmul.f32 %v1699, %v1715
    %1719 = vrot.lane.b32.xlu0 %v1614, 80
    %v1720 = vpop.permute.xlu0 %1719
    %1722 = vst.msk [vmem:[#allocation2 + $0x30] sm:$0xff] %vm259, %v1720
    %1724 = vrot.lane.b32.xlu0 %v1717, 32
    %v1725 = vpop.permute.xlu0 %1724
    %1727 = vst.msk [vmem:[#allocation2 + $0x8] sm:$0xff] %vm466, %v1725
    %v1728 = vsel %vm259, %v1720, 0
    %1730 = vmatprep.subr.mxu0 0.0
    %1731 = vmatpush1.msra.mxu0 %v114
    %1732 = vmatprep.subr.mxu0 0.0
    %1733 = vmatpush1.msra.mxu0 %v115
    %1734 = vmatprep.subr.mxu0 0.0
    %1735 = vmatpush1.msra.mxu0 0.0
    %1736 = vmatprep.subr.mxu0 0.0
    %1737 = vmatpush1.msra.mxu0 0.0
    %1738 = vmatprep.subr.mxu0 0.0
    %1739 = vmatpush1.msra.mxu0 0.0
    %1740 = vmatprep.subr.mxu0 0.0
    %1741 = vmatpush1.msra.mxu0 0.0
    %1742 = vmatprep.subr.mxu0 0.0
    %1743 = vmatpush1.msra.mxu0 0.0
    %1744 = vmatprep.subr.mxu0 0.0
    %1745 = vmatpush1.msra.mxu0 0.0
    %1746 = vmatprep.subr.mxu0 0.0
    %1747 = vmatpush1.msra.mxu0 0.0
    %1748 = vmatprep.subr.mxu0 0.0
    %1749 = vmatpush1.msra.mxu0 0.0
    %1750 = vmatprep.subr.mxu0 0.0
    %1751 = vmatpush1.msra.mxu0 0.0
    %1752 = vmatprep.subr.mxu0 0.0
    %1753 = vmatpush1.msra.mxu0 0.0
    %1754 = vmatprep.subr.mxu0 0.0
    %1755 = vmatpush1.msra.mxu0 0.0
    %1756 = vmatprep.subr.mxu0 0.0
    %1757 = vmatpush1.msra.mxu0 0.0
    %1758 = vmatprep.subr.mxu0 0.0
    %1759 = vmatpush1.msra.mxu0 0.0
    %1760 = vmatprep.subr.mxu0 0.0
    %1761 = vmatpush1.msra.mxu0 0.0
    %1762 = vmatprep.subr.mxu0 0.0
    %1763 = vmatpush1.msra.mxu0 0.0
    %1764 = vmatprep.subr.mxu0 0.0
    %1765 = vmatpush1.msra.mxu0 0.0
    %1766 = vmatprep.subr.mxu0 0.0
    %1767 = vmatpush1.msra.mxu0 0.0
    %1768 = vmatprep.subr.mxu0 0.0
    %1769 = vmatpush1.msra.mxu0 0.0
    %1770 = vmatprep.subr.mxu0 0.0
    %1771 = vmatpush1.msra.mxu0 0.0
    %1772 = vmatprep.subr.mxu0 0.0
    %1773 = vmatpush1.msra.mxu0 0.0
    %1774 = vmatprep.subr.mxu0 0.0
    %1775 = vmatpush1.msra.mxu0 0.0
    %1776 = vmatprep.subr.mxu0 0.0
    %1777 = vmatpush1.msra.mxu0 0.0
    %1778 = vmatprep.subr.mxu0 0.0
    %1779 = vmatpush1.msra.mxu0 0.0
    %1780 = vmatprep.subr.mxu0 0.0
    %1781 = vmatpush1.msra.mxu0 0.0
    %1782 = vmatprep.subr.mxu0 0.0
    %1783 = vmatpush1.msra.mxu0 0.0
    %1784 = vmatprep.subr.mxu0 0.0
    %1785 = vmatpush1.msra.mxu0 0.0
    %1786 = vmatprep.subr.mxu0 0.0
    %1787 = vmatpush1.msra.mxu0 0.0
    %1788 = vmatprep.subr.mxu0 0.0
    %1789 = vmatpush1.msra.mxu0 0.0
    %1790 = vmatprep.subr.mxu0 0.0
    %1791 = vmatpush1.msra.mxu0 0.0
    %1792 = vmatprep.subr.mxu0 0.0
    %1793 = vmatpush1.msra.mxu0 0.0
    %1794 = vmatprep.mubr.f32.mxu0 0.0
    %1795 = vmatmul.mubr.f32.gmra.mrb[0].mxu0 %v1728
    %v1796 = vpop.f32.mrb[0].mxu0
    %v1797 = vadd.f32 0.0, %v1796
    %v1798 = vpop.f32.mrb[0].mxu0
    %1799 = vdwg.mxu0
    %v1800 = vadd.f32 %v254, %v1797
    %v1801 = vxor.u32 %v1800, 2147483648
    %v1802 = vmul.f32 %v1801, 1.442695
    %v1803 = vpow.pop %v1802
    %v1804 = vadd.f32 %v1803, 1.0
    %v1805 = vrcp.pop %v1804
    %v1806 = vmul.f32 1.0, %v1805
    %v1807 = vtanh.pop %v1800
    %v1808 = vmul.f32 %v1806, %v1608
    %1810 = vrot.lane.b32.xlu0 %v1807, 96
    %v1811 = vpop.permute.xlu0 %1810
    %v1813 = vmul.f32 %v1806, %v1811
    %1815 = vrot.lane.b32.xlu0 %v1813, 16
    %v1816 = vpop.permute.xlu0 %1815
    %v1818 = vadd.f32 %v1808, %v1816
    %v1819 = vtanh.pop %v1818
    %1821 = vrot.lane.b32.xlu0 %v1819, 32
    %v1822 = vpop.permute.xlu0 %1821
    %v1824 = vmul.f32 %v1806, %v1822
    %1825 = vrot.lane.b32.xlu0 %v1717, 16
    %v1826 = vpop.permute.xlu0 %1825
    %v1827 = vsel %vm259, %v1826, 0
    %1829 = vmatprep.subr.mxu0 0.0
    %1830 = vmatpush1.msra.mxu0 %v257
    %1831 = vmatprep.subr.mxu0 0.0
    %1832 = vmatpush1.msra.mxu0 %v258
    %1833 = vmatprep.subr.mxu0 0.0
    %1834 = vmatpush1.msra.mxu0 0.0
    %1835 = vmatprep.subr.mxu0 0.0
    %1836 = vmatpush1.msra.mxu0 0.0
    %1837 = vmatprep.subr.mxu0 0.0
    %1838 = vmatpush1.msra.mxu0 0.0
    %1839 = vmatprep.subr.mxu0 0.0
    %1840 = vmatpush1.msra.mxu0 0.0
    %1841 = vmatprep.subr.mxu0 0.0
    %1842 = vmatpush1.msra.mxu0 0.0
    %1843 = vmatprep.subr.mxu0 0.0
    %1844 = vmatpush1.msra.mxu0 0.0
    %1845 = vmatprep.subr.mxu0 0.0
    %1846 = vmatpush1.msra.mxu0 0.0
    %1847 = vmatprep.subr.mxu0 0.0
    %1848 = vmatpush1.msra.mxu0 0.0
    %1849 = vmatprep.subr.mxu0 0.0
    %1850 = vmatpush1.msra.mxu0 0.0
    %1851 = vmatprep.subr.mxu0 0.0
    %1852 = vmatpush1.msra.mxu0 0.0
    %1853 = vmatprep.subr.mxu0 0.0
    %1854 = vmatpush1.msra.mxu0 0.0
    %1855 = vmatprep.subr.mxu0 0.0
    %1856 = vmatpush1.msra.mxu0 0.0
    %1857 = vmatprep.subr.mxu0 0.0
    %1858 = vmatpush1.msra.mxu0 0.0
    %1859 = vmatprep.subr.mxu0 0.0
    %1860 = vmatpush1.msra.mxu0 0.0
    %1861 = vmatprep.subr.mxu0 0.0
    %1862 = vmatpush1.msra.mxu0 0.0
    %1863 = vmatprep.subr.mxu0 0.0
    %1864 = vmatpush1.msra.mxu0 0.0
    %1865 = vmatprep.subr.mxu0 0.0
    %1866 = vmatpush1.msra.mxu0 0.0
    %1867 = vmatprep.subr.mxu0 0.0
    %1868 = vmatpush1.msra.mxu0 0.0
    %1869 = vmatprep.subr.mxu0 0.0
    %1870 = vmatpush1.msra.mxu0 0.0
    %1871 = vmatprep.subr.mxu0 0.0
    %1872 = vmatpush1.msra.mxu0 0.0
    %1873 = vmatprep.subr.mxu0 0.0
    %1874 = vmatpush1.msra.mxu0 0.0
    %1875 = vmatprep.subr.mxu0 0.0
    %1876 = vmatpush1.msra.mxu0 0.0
    %1877 = vmatprep.subr.mxu0 0.0
    %1878 = vmatpush1.msra.mxu0 0.0
    %1879 = vmatprep.subr.mxu0 0.0
    %1880 = vmatpush1.msra.mxu0 0.0
    %1881 = vmatprep.subr.mxu0 0.0
    %1882 = vmatpush1.msra.mxu0 0.0
    %1883 = vmatprep.subr.mxu0 0.0
    %1884 = vmatpush1.msra.mxu0 0.0
    %1885 = vmatprep.subr.mxu0 0.0
    %1886 = vmatpush1.msra.mxu0 0.0
    %1887 = vmatprep.subr.mxu0 0.0
    %1888 = vmatpush1.msra.mxu0 0.0
    %1889 = vmatprep.subr.mxu0 0.0
    %1890 = vmatpush1.msra.mxu0 0.0
    %1891 = vmatprep.subr.mxu0 0.0
    %1892 = vmatpush1.msra.mxu0 0.0
    %1893 = vmatprep.mubr.f32.mxu0 0.0
    %1894 = vmatmul.mubr.f32.gmra.mrb[0].mxu0 %v1827
    %v1895 = vpop.f32.mrb[0].mxu0
    %v1896 = vadd.f32 0.0, %v1895
    %v1897 = vpop.f32.mrb[0].mxu0
    %1898 = vdwg.mxu0
    %1900 = vrot.lane.b32.xlu0 %v1896, 64
    %v1901 = vpop.permute.xlu0 %1900
    %v1903 = vadd.f32 %v219, %v1901
    %v1904 = vxor.u32 %v1903, 2147483648
    %v1905 = vmul.f32 %v1904, 1.442695
    %v1906 = vpow.pop %v1905
    %v1907 = vadd.f32 %v1906, 1.0
    %v1908 = vrcp.pop %v1907
    %v1909 = vmul.f32 1.0, %v1908
    %v1910 = vtanh.pop %v1903
    %v1911 = vmul.f32 %v1909, %v1711
    %1913 = vrot.lane.b32.xlu0 %v1910, 96
    %v1914 = vpop.permute.xlu0 %1913
    %v1916 = vmul.f32 %v1909, %v1914
    %1918 = vrot.lane.b32.xlu0 %v1916, 16
    %v1919 = vpop.permute.xlu0 %1918
    %v1921 = vadd.f32 %v1911, %v1919
    %v1922 = vtanh.pop %v1921
    %1924 = vrot.lane.b32.xlu0 %v1922, 32
    %v1925 = vpop.permute.xlu0 %1924
    %v1927 = vmul.f32 %v1909, %v1925
    %1929 = vrot.lane.b32.xlu0 %v1824, 80
    %v1930 = vpop.permute.xlu0 %1929
    %1932 = vst.msk [vmem:[#allocation2 + $0x38] sm:$0xff] %vm259, %v1930
    %1934 = vrot.lane.b32.xlu0 %v1927, 32
    %v1935 = vpop.permute.xlu0 %1934
    %1937 = vst.msk [vmem:[#allocation2] sm:$0xff] %vm466, %v1935
    %v1938 = vld [vmem:[#allocation2] sm:$0xff]
    %v1939 = vld [vmem:[#allocation2 + $0x8] sm:$0xff]
    %v1940 = vld [vmem:[#allocation2 + $0x10] sm:$0xff]
    %v1941 = vld [vmem:[#allocation2 + $0x18] sm:$0xff]
    %v1942 = vld [vmem:[#allocation2 + $0x20] sm:$0xff]
    %v1943 = vld [vmem:[#allocation2 + $0x28] sm:$0xff]
    %v1944 = vld [vmem:[#allocation2 + $0x30] sm:$0xff]
    %v1945 = vld [vmem:[#allocation2 + $0x38] sm:$0xff]
    %v1946 = vld [vmem:[%s6] sm:$0xff]
    %v1947 = vld [vmem:[%s6 + $0x8] sm:$0xff]
    %v1948 = vld [vmem:[#allocation8] sm:$0xff]
    %v1949 = vld [vmem:[#allocation8 + $0x8] sm:$0xff]
    %v1950 = vld [vmem:[#allocation8 + $0x10] sm:$0xff]
    %v1951 = vld [vmem:[#allocation8 + $0x18] sm:$0xff]
    %v1952 = vld [vmem:[%s8] sm:$0x1]
    %v1954 = vlaneseq
    %v1955 = vshrl.u32 %v1954, 7
    %v1956 = vsub.s32 0, %v1955
    %v1957 = vrot.slane %v1952, %v1956
    %v1960 = vsel %vm127, %v1938, 0
    %v1963 = vsel %vm127, %v1939, 0
    %v1966 = vsel %vm127, %v1940, 0
    %v1969 = vsel %vm127, %v1941, 0
    %v1972 = vsel %vm127, %v1942, 0
    %v1975 = vsel %vm127, %v1943, 0
    %v1978 = vsel %vm127, %v1944, 0
    %v1981 = vsel %vm127, %v1945, 0
    %1983 = vmatprep.subr.mxu0 0.0
    %1984 = vmatpush1.msra.mxu0 %v1948
    %1985 = vmatprep.subr.mxu0 0.0
    %1986 = vmatpush1.msra.mxu0 %v1949
    %1987 = vmatprep.subr.mxu0 0.0
    %1988 = vmatpush1.msra.mxu0 %v1950
    %1989 = vmatprep.subr.mxu0 0.0
    %1990 = vmatpush1.msra.mxu0 %v1951
    %1991 = vmatprep.subr.mxu0 0.0
    %1992 = vmatpush1.msra.mxu0 0.0
    %1993 = vmatprep.subr.mxu0 0.0
    %1994 = vmatpush1.msra.mxu0 0.0
    %1995 = vmatprep.subr.mxu0 0.0
    %1996 = vmatpush1.msra.mxu0 0.0
    %1997 = vmatprep.subr.mxu0 0.0
    %1998 = vmatpush1.msra.mxu0 0.0
    %1999 = vmatprep.subr.mxu0 0.0
    %2000 = vmatpush1.msra.mxu0 0.0
    %2001 = vmatprep.subr.mxu0 0.0
    %2002 = vmatpush1.msra.mxu0 0.0
    %2003 = vmatprep.subr.mxu0 0.0
    %2004 = vmatpush1.msra.mxu0 0.0
    %2005 = vmatprep.subr.mxu0 0.0
    %2006 = vmatpush1.msra.mxu0 0.0
    %2007 = vmatprep.subr.mxu0 0.0
    %2008 = vmatpush1.msra.mxu0 0.0
    %2009 = vmatprep.subr.mxu0 0.0
    %2010 = vmatpush1.msra.mxu0 0.0
    %2011 = vmatprep.subr.mxu0 0.0
    %2012 = vmatpush1.msra.mxu0 0.0
    %2013 = vmatprep.subr.mxu0 0.0
    %2014 = vmatpush1.msra.mxu0 0.0
    %2015 = vmatprep.subr.mxu0 0.0
    %2016 = vmatpush1.msra.mxu0 0.0
    %2017 = vmatprep.subr.mxu0 0.0
    %2018 = vmatpush1.msra.mxu0 0.0
    %2019 = vmatprep.subr.mxu0 0.0
    %2020 = vmatpush1.msra.mxu0 0.0
    %2021 = vmatprep.subr.mxu0 0.0
    %2022 = vmatpush1.msra.mxu0 0.0
    %2023 = vmatprep.subr.mxu0 0.0
    %2024 = vmatpush1.msra.mxu0 0.0
    %2025 = vmatprep.subr.mxu0 0.0
    %2026 = vmatpush1.msra.mxu0 0.0
    %2027 = vmatprep.subr.mxu0 0.0
    %2028 = vmatpush1.msra.mxu0 0.0
    %2029 = vmatprep.subr.mxu0 0.0
    %2030 = vmatpush1.msra.mxu0 0.0
    %2031 = vmatprep.subr.mxu0 0.0
    %2032 = vmatpush1.msra.mxu0 0.0
    %2033 = vmatprep.subr.mxu0 0.0
    %2034 = vmatpush1.msra.mxu0 0.0
    %2035 = vmatprep.subr.mxu0 0.0
    %2036 = vmatpush1.msra.mxu0 0.0
    %2037 = vmatprep.subr.mxu0 0.0
    %2038 = vmatpush1.msra.mxu0 0.0
    %2039 = vmatprep.subr.mxu0 0.0
    %2040 = vmatpush1.msra.mxu0 0.0
    %2041 = vmatprep.subr.mxu0 0.0
    %2042 = vmatpush1.msra.mxu0 0.0
    %2043 = vmatprep.subr.mxu0 0.0
    %2044 = vmatpush1.msra.mxu0 0.0
    %2045 = vmatprep.subr.mxu0 0.0
    %2046 = vmatpush1.msra.mxu0 0.0
    %2047 = vmatprep.mubr.f32.mxu0 0.0
    %2048 = vmatmul.mubr.f32.gmra.mrb[0].mxu0 %v1960
    %v2049 = vpop.f32.mrb[0].mxu0
    %v2050 = vadd.f32 %v1957, %v2049
    %v2051 = vpop.f32.mrb[0].mxu0
    %2052 = vmatprep.mubr.f32.mxu0 0.0
    %2053 = vmatmul.mubr.f32.gmra.mrb[0].mxu0 %v1963
    %v2054 = vpop.f32.mrb[0].mxu0
    %v2055 = vadd.f32 %v1957, %v2054
    %v2056 = vpop.f32.mrb[0].mxu0
    %2057 = vmatprep.mubr.f32.mxu0 0.0
    %2058 = vmatmul.mubr.f32.gmra.mrb[0].mxu0 %v1966
    %v2059 = vpop.f32.mrb[0].mxu0
    %v2060 = vadd.f32 %v1957, %v2059
    %v2061 = vpop.f32.mrb[0].mxu0
    %2062 = vmatprep.mubr.f32.mxu0 0.0
    %2063 = vmatmul.mubr.f32.gmra.mrb[0].mxu0 %v1969
    %v2064 = vpop.f32.mrb[0].mxu0
    %v2065 = vadd.f32 %v1957, %v2064
    %v2066 = vpop.f32.mrb[0].mxu0
    %2067 = vmatprep.mubr.f32.mxu0 0.0
    %2068 = vmatmul.mubr.f32.gmra.mrb[0].mxu0 %v1972
    %v2069 = vpop.f32.mrb[0].mxu0
    %v2070 = vadd.f32 %v1957, %v2069
    %v2071 = vpop.f32.mrb[0].mxu0
    %2072 = vmatprep.mubr.f32.mxu0 0.0
    %2073 = vmatmul.mubr.f32.gmra.mrb[0].mxu0 %v1975
    %v2074 = vpop.f32.mrb[0].mxu0
    %v2075 = vadd.f32 %v1957, %v2074
    %v2076 = vpop.f32.mrb[0].mxu0
    %2077 = vmatprep.mubr.f32.mxu0 0.0
    %2078 = vmatmul.mubr.f32.gmra.mrb[0].mxu0 %v1978
    %v2079 = vpop.f32.mrb[0].mxu0
    %v2080 = vadd.f32 %v1957, %v2079
    %v2081 = vpop.f32.mrb[0].mxu0
    %2082 = vmatprep.mubr.f32.mxu0 0.0
    %2083 = vmatmul.mubr.f32.gmra.mrb[0].mxu0 %v1981
    %v2084 = vpop.f32.mrb[0].mxu0
    %v2085 = vadd.f32 %v1957, %v2084
    %v2086 = vpop.f32.mrb[0].mxu0
    %2087 = vdwg.mxu0
    %2088 = vmatprep.subr.mxu0 0.0
    %2089 = vmatpush1.msra.mxu0 %v1946
    %2090 = vmatprep.subr.mxu0 0.0
    %2091 = vmatpush1.msra.mxu0 %v1947
    %2092 = vmatprep.subr.mxu0 0.0
    %2093 = vmatpush1.msra.mxu0 0.0
    %2094 = vmatprep.subr.mxu0 0.0
    %2095 = vmatpush1.msra.mxu0 0.0
    %2096 = vmatprep.subr.mxu0 0.0
    %2097 = vmatpush1.msra.mxu0 0.0
    %2098 = vmatprep.subr.mxu0 0.0
    %2099 = vmatpush1.msra.mxu0 0.0
    %2100 = vmatprep.subr.mxu0 0.0
    %2101 = vmatpush1.msra.mxu0 0.0
    %2102 = vmatprep.subr.mxu0 0.0
    %2103 = vmatpush1.msra.mxu0 0.0
    %2104 = vmatprep.subr.mxu0 0.0
    %2105 = vmatpush1.msra.mxu0 0.0
    %2106 = vmatprep.subr.mxu0 0.0
    %2107 = vmatpush1.msra.mxu0 0.0
    %2108 = vmatprep.subr.mxu0 0.0
    %2109 = vmatpush1.msra.mxu0 0.0
    %2110 = vmatprep.subr.mxu0 0.0
    %2111 = vmatpush1.msra.mxu0 0.0
    %2112 = vmatprep.subr.mxu0 0.0
    %2113 = vmatpush1.msra.mxu0 0.0
    %2114 = vmatprep.subr.mxu0 0.0
    %2115 = vmatpush1.msra.mxu0 0.0
    %2116 = vmatprep.subr.mxu0 0.0
    %2117 = vmatpush1.msra.mxu0 0.0
    %2118 = vmatprep.subr.mxu0 0.0
    %2119 = vmatpush1.msra.mxu0 0.0
    %2120 = vmatprep.subr.mxu0 0.0
    %2121 = vmatpush1.msra.mxu0 0.0
    %2122 = vmatprep.subr.mxu0 0.0
    %2123 = vmatpush1.msra.mxu0 0.0
    %2124 = vmatprep.subr.mxu0 0.0
    %2125 = vmatpush1.msra.mxu0 0.0
    %2126 = vmatprep.subr.mxu0 0.0
    %2127 = vmatpush1.msra.mxu0 0.0
    %2128 = vmatprep.subr.mxu0 0.0
    %2129 = vmatpush1.msra.mxu0 0.0
    %2130 = vmatprep.subr.mxu0 0.0
    %2131 = vmatpush1.msra.mxu0 0.0
    %2132 = vmatprep.subr.mxu0 0.0
    %2133 = vmatpush1.msra.mxu0 0.0
    %2134 = vmatprep.subr.mxu0 0.0
    %2135 = vmatpush1.msra.mxu0 0.0
    %2136 = vmatprep.subr.mxu0 0.0
    %2137 = vmatpush1.msra.mxu0 0.0
    %2138 = vmatprep.subr.mxu0 0.0
    %2139 = vmatpush1.msra.mxu0 0.0
    %2140 = vmatprep.subr.mxu0 0.0
    %2141 = vmatpush1.msra.mxu0 0.0
    %2142 = vmatprep.subr.mxu0 0.0
    %2143 = vmatpush1.msra.mxu0 0.0
    %2144 = vmatprep.subr.mxu0 0.0
    %2145 = vmatpush1.msra.mxu0 0.0
    %2146 = vmatprep.subr.mxu0 0.0
    %2147 = vmatpush1.msra.mxu0 0.0
    %2148 = vmatprep.subr.mxu0 0.0
    %2149 = vmatpush1.msra.mxu0 0.0
    %2150 = vmatprep.subr.mxu0 0.0
    %2151 = vmatpush1.msra.mxu0 0.0
    %2152 = vmatprep.mubr.f32.mxu0 0.0
    %2153 = vmatmul.mubr.f32.gmra.mrb[0].mxu0 %v261
    %v2154 = vpop.f32.mrb[0].mxu0
    %v2155 = vadd.f32 0.0, %v2154
    %v2156 = vpop.f32.mrb[0].mxu0
    %2157 = vdwg.mxu0
    %v2158 = vadd.f32 %v2050, %v2155
    %v2159 = vxor.u32 %v2158, 2147483648
    %v2160 = vmul.f32 %v2159, 1.442695
    %v2161 = vpow.pop %v2160
    %v2162 = vadd.f32 %v2161, 1.0
    %v2163 = vrcp.pop %v2162
    %v2164 = vmul.f32 1.0, %v2163
    %v2165 = vtanh.pop %v2158
    %v2166 = vmul.f32 %v2164, 0.0
    %2168 = vrot.lane.b32.xlu0 %v2165, 96
    %v2169 = vpop.permute.xlu0 %2168
    %v2171 = vmul.f32 %v2164, %v2169
    %2173 = vrot.lane.b32.xlu0 %v2171, 16
    %v2174 = vpop.permute.xlu0 %2173
    %v2176 = vadd.f32 %v2166, %v2174
    %v2177 = vtanh.pop %v2176
    %2179 = vrot.lane.b32.xlu0 %v2177, 32
    %v2180 = vpop.permute.xlu0 %2179
    %v2182 = vmul.f32 %v2164, %v2180
    %2184 = vrot.lane.b32.xlu0 %v2182, 80
    %v2185 = vpop.permute.xlu0 %2184
    %v2186 = vsel %vm259, %v2185, 0
    %2188 = vmatprep.subr.mxu0 0.0
    %2189 = vmatpush1.msra.mxu0 %v1946
    %2190 = vmatprep.subr.mxu0 0.0
    %2191 = vmatpush1.msra.mxu0 %v1947
    %2192 = vmatprep.subr.mxu0 0.0
    %2193 = vmatpush1.msra.mxu0 0.0
    %2194 = vmatprep.subr.mxu0 0.0
    %2195 = vmatpush1.msra.mxu0 0.0
    %2196 = vmatprep.subr.mxu0 0.0
    %2197 = vmatpush1.msra.mxu0 0.0
    %2198 = vmatprep.subr.mxu0 0.0
    %2199 = vmatpush1.msra.mxu0 0.0
    %2200 = vmatprep.subr.mxu0 0.0
    %2201 = vmatpush1.msra.mxu0 0.0
    %2202 = vmatprep.subr.mxu0 0.0
    %2203 = vmatpush1.msra.mxu0 0.0
    %2204 = vmatprep.subr.mxu0 0.0
    %2205 = vmatpush1.msra.mxu0 0.0
    %2206 = vmatprep.subr.mxu0 0.0
    %2207 = vmatpush1.msra.mxu0 0.0
    %2208 = vmatprep.subr.mxu0 0.0
    %2209 = vmatpush1.msra.mxu0 0.0
    %2210 = vmatprep.subr.mxu0 0.0
    %2211 = vmatpush1.msra.mxu0 0.0
    %2212 = vmatprep.subr.mxu0 0.0
    %2213 = vmatpush1.msra.mxu0 0.0
    %2214 = vmatprep.subr.mxu0 0.0
    %2215 = vmatpush1.msra.mxu0 0.0
    %2216 = vmatprep.subr.mxu0 0.0
    %2217 = vmatpush1.msra.mxu0 0.0
    %2218 = vmatprep.subr.mxu0 0.0
    %2219 = vmatpush1.msra.mxu0 0.0
    %2220 = vmatprep.subr.mxu0 0.0
    %2221 = vmatpush1.msra.mxu0 0.0
    %2222 = vmatprep.subr.mxu0 0.0
    %2223 = vmatpush1.msra.mxu0 0.0
    %2224 = vmatprep.subr.mxu0 0.0
    %2225 = vmatpush1.msra.mxu0 0.0
    %2226 = vmatprep.subr.mxu0 0.0
    %2227 = vmatpush1.msra.mxu0 0.0
    %2228 = vmatprep.subr.mxu0 0.0
    %2229 = vmatpush1.msra.mxu0 0.0
    %2230 = vmatprep.subr.mxu0 0.0
    %2231 = vmatpush1.msra.mxu0 0.0
    %2232 = vmatprep.subr.mxu0 0.0
    %2233 = vmatpush1.msra.mxu0 0.0
    %2234 = vmatprep.subr.mxu0 0.0
    %2235 = vmatpush1.msra.mxu0 0.0
    %2236 = vmatprep.subr.mxu0 0.0
    %2237 = vmatpush1.msra.mxu0 0.0
    %2238 = vmatprep.subr.mxu0 0.0
    %2239 = vmatpush1.msra.mxu0 0.0
    %2240 = vmatprep.subr.mxu0 0.0
    %2241 = vmatpush1.msra.mxu0 0.0
    %2242 = vmatprep.subr.mxu0 0.0
    %2243 = vmatpush1.msra.mxu0 0.0
    %2244 = vmatprep.subr.mxu0 0.0
    %2245 = vmatpush1.msra.mxu0 0.0
    %2246 = vmatprep.subr.mxu0 0.0
    %2247 = vmatpush1.msra.mxu0 0.0
    %2248 = vmatprep.subr.mxu0 0.0
    %2249 = vmatpush1.msra.mxu0 0.0
    %2250 = vmatprep.subr.mxu0 0.0
    %2251 = vmatpush1.msra.mxu0 0.0
    %2252 = vmatprep.mubr.f32.mxu0 0.0
    %2253 = vmatmul.mubr.f32.gmra.mrb[0].mxu0 %v2186
    %v2254 = vpop.f32.mrb[0].mxu0
    %v2255 = vadd.f32 0.0, %v2254
    %v2256 = vpop.f32.mrb[0].mxu0
    %2257 = vdwg.mxu0
    %v2258 = vadd.f32 %v2055, %v2255
    %v2259 = vxor.u32 %v2258, 2147483648
    %v2260 = vmul.f32 %v2259, 1.442695
    %v2261 = vpow.pop %v2260
    %v2262 = vadd.f32 %v2261, 1.0
    %v2263 = vrcp.pop %v2262
    %v2264 = vmul.f32 1.0, %v2263
    %v2265 = vtanh.pop %v2258
    %v2266 = vmul.f32 %v2264, %v2176
    %2268 = vrot.lane.b32.xlu0 %v2265, 96
    %v2269 = vpop.permute.xlu0 %2268
    %v2271 = vmul.f32 %v2264, %v2269
    %2273 = vrot.lane.b32.xlu0 %v2271, 16
    %v2274 = vpop.permute.xlu0 %2273
    %v2276 = vadd.f32 %v2266, %v2274
    %v2277 = vtanh.pop %v2276
    %2279 = vrot.lane.b32.xlu0 %v2277, 32
    %v2280 = vpop.permute.xlu0 %2279
    %v2282 = vmul.f32 %v2264, %v2280
    %2284 = vrot.lane.b32.xlu0 %v2282, 80
    %v2285 = vpop.permute.xlu0 %2284
    %v2286 = vsel %vm259, %v2285, 0
    %2288 = vmatprep.subr.mxu0 0.0
    %2289 = vmatpush1.msra.mxu0 %v1946
    %2290 = vmatprep.subr.mxu0 0.0
    %2291 = vmatpush1.msra.mxu0 %v1947
    %2292 = vmatprep.subr.mxu0 0.0
    %2293 = vmatpush1.msra.mxu0 0.0
    %2294 = vmatprep.subr.mxu0 0.0
    %2295 = vmatpush1.msra.mxu0 0.0
    %2296 = vmatprep.subr.mxu0 0.0
    %2297 = vmatpush1.msra.mxu0 0.0
    %2298 = vmatprep.subr.mxu0 0.0
    %2299 = vmatpush1.msra.mxu0 0.0
    %2300 = vmatprep.subr.mxu0 0.0
    %2301 = vmatpush1.msra.mxu0 0.0
    %2302 = vmatprep.subr.mxu0 0.0
    %2303 = vmatpush1.msra.mxu0 0.0
    %2304 = vmatprep.subr.mxu0 0.0
    %2305 = vmatpush1.msra.mxu0 0.0
    %2306 = vmatprep.subr.mxu0 0.0
    %2307 = vmatpush1.msra.mxu0 0.0
    %2308 = vmatprep.subr.mxu0 0.0
    %2309 = vmatpush1.msra.mxu0 0.0
    %2310 = vmatprep.subr.mxu0 0.0
    %2311 = vmatpush1.msra.mxu0 0.0
    %2312 = vmatprep.subr.mxu0 0.0
    %2313 = vmatpush1.msra.mxu0 0.0
    %2314 = vmatprep.subr.mxu0 0.0
    %2315 = vmatpush1.msra.mxu0 0.0
    %2316 = vmatprep.subr.mxu0 0.0
    %2317 = vmatpush1.msra.mxu0 0.0
    %2318 = vmatprep.subr.mxu0 0.0
    %2319 = vmatpush1.msra.mxu0 0.0
    %2320 = vmatprep.subr.mxu0 0.0
    %2321 = vmatpush1.msra.mxu0 0.0
    %2322 = vmatprep.subr.mxu0 0.0
    %2323 = vmatpush1.msra.mxu0 0.0
    %2324 = vmatprep.subr.mxu0 0.0
    %2325 = vmatpush1.msra.mxu0 0.0
    %2326 = vmatprep.subr.mxu0 0.0
    %2327 = vmatpush1.msra.mxu0 0.0
    %2328 = vmatprep.subr.mxu0 0.0
    %2329 = vmatpush1.msra.mxu0 0.0
    %2330 = vmatprep.subr.mxu0 0.0
    %2331 = vmatpush1.msra.mxu0 0.0
    %2332 = vmatprep.subr.mxu0 0.0
    %2333 = vmatpush1.msra.mxu0 0.0
    %2334 = vmatprep.subr.mxu0 0.0
    %2335 = vmatpush1.msra.mxu0 0.0
    %2336 = vmatprep.subr.mxu0 0.0
    %2337 = vmatpush1.msra.mxu0 0.0
    %2338 = vmatprep.subr.mxu0 0.0
    %2339 = vmatpush1.msra.mxu0 0.0
    %2340 = vmatprep.subr.mxu0 0.0
    %2341 = vmatpush1.msra.mxu0 0.0
    %2342 = vmatprep.subr.mxu0 0.0
    %2343 = vmatpush1.msra.mxu0 0.0
    %2344 = vmatprep.subr.mxu0 0.0
    %2345 = vmatpush1.msra.mxu0 0.0
    %2346 = vmatprep.subr.mxu0 0.0
    %2347 = vmatpush1.msra.mxu0 0.0
    %2348 = vmatprep.subr.mxu0 0.0
    %2349 = vmatpush1.msra.mxu0 0.0
    %2350 = vmatprep.subr.mxu0 0.0
    %2351 = vmatpush1.msra.mxu0 0.0
    %2352 = vmatprep.mubr.f32.mxu0 0.0
    %2353 = vmatmul.mubr.f32.gmra.mrb[0].mxu0 %v2286
    %v2354 = vpop.f32.mrb[0].mxu0
    %v2355 = vadd.f32 0.0, %v2354
    %v2356 = vpop.f32.mrb[0].mxu0
    %2357 = vdwg.mxu0
    %v2358 = vadd.f32 %v2060, %v2355
    %v2359 = vxor.u32 %v2358, 2147483648
    %v2360 = vmul.f32 %v2359, 1.442695
    %v2361 = vpow.pop %v2360
    %v2362 = vadd.f32 %v2361, 1.0
    %v2363 = vrcp.pop %v2362
    %v2364 = vmul.f32 1.0, %v2363
    %v2365 = vtanh.pop %v2358
    %v2366 = vmul.f32 %v2364, %v2276
    %2368 = vrot.lane.b32.xlu0 %v2365, 96
    %v2369 = vpop.permute.xlu0 %2368
    %v2371 = vmul.f32 %v2364, %v2369
    %2373 = vrot.lane.b32.xlu0 %v2371, 16
    %v2374 = vpop.permute.xlu0 %2373
    %v2376 = vadd.f32 %v2366, %v2374
    %v2377 = vtanh.pop %v2376
    %2379 = vrot.lane.b32.xlu0 %v2377, 32
    %v2380 = vpop.permute.xlu0 %2379
    %v2382 = vmul.f32 %v2364, %v2380
    %2384 = vrot.lane.b32.xlu0 %v2382, 80
    %v2385 = vpop.permute.xlu0 %2384
    %v2386 = vsel %vm259, %v2385, 0
    %2388 = vmatprep.subr.mxu0 0.0
    %2389 = vmatpush1.msra.mxu0 %v1946
    %2390 = vmatprep.subr.mxu0 0.0
    %2391 = vmatpush1.msra.mxu0 %v1947
    %2392 = vmatprep.subr.mxu0 0.0
    %2393 = vmatpush1.msra.mxu0 0.0
    %2394 = vmatprep.subr.mxu0 0.0
    %2395 = vmatpush1.msra.mxu0 0.0
    %2396 = vmatprep.subr.mxu0 0.0
    %2397 = vmatpush1.msra.mxu0 0.0
    %2398 = vmatprep.subr.mxu0 0.0
    %2399 = vmatpush1.msra.mxu0 0.0
    %2400 = vmatprep.subr.mxu0 0.0
    %2401 = vmatpush1.msra.mxu0 0.0
    %2402 = vmatprep.subr.mxu0 0.0
    %2403 = vmatpush1.msra.mxu0 0.0
    %2404 = vmatprep.subr.mxu0 0.0
    %2405 = vmatpush1.msra.mxu0 0.0
    %2406 = vmatprep.subr.mxu0 0.0
    %2407 = vmatpush1.msra.mxu0 0.0
    %2408 = vmatprep.subr.mxu0 0.0
    %2409 = vmatpush1.msra.mxu0 0.0
    %2410 = vmatprep.subr.mxu0 0.0
    %2411 = vmatpush1.msra.mxu0 0.0
    %2412 = vmatprep.subr.mxu0 0.0
    %2413 = vmatpush1.msra.mxu0 0.0
    %2414 = vmatprep.subr.mxu0 0.0
    %2415 = vmatpush1.msra.mxu0 0.0
    %2416 = vmatprep.subr.mxu0 0.0
    %2417 = vmatpush1.msra.mxu0 0.0
    %2418 = vmatprep.subr.mxu0 0.0
    %2419 = vmatpush1.msra.mxu0 0.0
    %2420 = vmatprep.subr.mxu0 0.0
    %2421 = vmatpush1.msra.mxu0 0.0
    %2422 = vmatprep.subr.mxu0 0.0
    %2423 = vmatpush1.msra.mxu0 0.0
    %2424 = vmatprep.subr.mxu0 0.0
    %2425 = vmatpush1.msra.mxu0 0.0
    %2426 = vmatprep.subr.mxu0 0.0
    %2427 = vmatpush1.msra.mxu0 0.0
    %2428 = vmatprep.subr.mxu0 0.0
    %2429 = vmatpush1.msra.mxu0 0.0
    %2430 = vmatprep.subr.mxu0 0.0
    %2431 = vmatpush1.msra.mxu0 0.0
    %2432 = vmatprep.subr.mxu0 0.0
    %2433 = vmatpush1.msra.mxu0 0.0
    %2434 = vmatprep.subr.mxu0 0.0
    %2435 = vmatpush1.msra.mxu0 0.0
    %2436 = vmatprep.subr.mxu0 0.0
    %2437 = vmatpush1.msra.mxu0 0.0
    %2438 = vmatprep.subr.mxu0 0.0
    %2439 = vmatpush1.msra.mxu0 0.0
    %2440 = vmatprep.subr.mxu0 0.0
    %2441 = vmatpush1.msra.mxu0 0.0
    %2442 = vmatprep.subr.mxu0 0.0
    %2443 = vmatpush1.msra.mxu0 0.0
    %2444 = vmatprep.subr.mxu0 0.0
    %2445 = vmatpush1.msra.mxu0 0.0
    %2446 = vmatprep.subr.mxu0 0.0
    %2447 = vmatpush1.msra.mxu0 0.0
    %2448 = vmatprep.subr.mxu0 0.0
    %2449 = vmatpush1.msra.mxu0 0.0
    %2450 = vmatprep.subr.mxu0 0.0
    %2451 = vmatpush1.msra.mxu0 0.0
    %2452 = vmatprep.mubr.f32.mxu0 0.0
    %2453 = vmatmul.mubr.f32.gmra.mrb[0].mxu0 %v2386
    %v2454 = vpop.f32.mrb[0].mxu0
    %v2455 = vadd.f32 0.0, %v2454
    %v2456 = vpop.f32.mrb[0].mxu0
    %2457 = vdwg.mxu0
    %v2458 = vadd.f32 %v2065, %v2455
    %v2459 = vxor.u32 %v2458, 2147483648
    %v2460 = vmul.f32 %v2459, 1.442695
    %v2461 = vpow.pop %v2460
    %v2462 = vadd.f32 %v2461, 1.0
    %v2463 = vrcp.pop %v2462
    %v2464 = vmul.f32 1.0, %v2463
    %v2465 = vtanh.pop %v2458
    %v2466 = vmul.f32 %v2464, %v2376
    %2468 = vrot.lane.b32.xlu0 %v2465, 96
    %v2469 = vpop.permute.xlu0 %2468
    %v2471 = vmul.f32 %v2464, %v2469
    %2473 = vrot.lane.b32.xlu0 %v2471, 16
    %v2474 = vpop.permute.xlu0 %2473
    %v2476 = vadd.f32 %v2466, %v2474
    %v2477 = vtanh.pop %v2476
    %2479 = vrot.lane.b32.xlu0 %v2477, 32
    %v2480 = vpop.permute.xlu0 %2479
    %v2482 = vmul.f32 %v2464, %v2480
    %2484 = vrot.lane.b32.xlu0 %v2482, 80
    %v2485 = vpop.permute.xlu0 %2484
    %v2486 = vsel %vm259, %v2485, 0
    %2488 = vmatprep.subr.mxu0 0.0
    %2489 = vmatpush1.msra.mxu0 %v1946
    %2490 = vmatprep.subr.mxu0 0.0
    %2491 = vmatpush1.msra.mxu0 %v1947
    %2492 = vmatprep.subr.mxu0 0.0
    %2493 = vmatpush1.msra.mxu0 0.0
    %2494 = vmatprep.subr.mxu0 0.0
    %2495 = vmatpush1.msra.mxu0 0.0
    %2496 = vmatprep.subr.mxu0 0.0
    %2497 = vmatpush1.msra.mxu0 0.0
    %2498 = vmatprep.subr.mxu0 0.0
    %2499 = vmatpush1.msra.mxu0 0.0
    %2500 = vmatprep.subr.mxu0 0.0
    %2501 = vmatpush1.msra.mxu0 0.0
    %2502 = vmatprep.subr.mxu0 0.0
    %2503 = vmatpush1.msra.mxu0 0.0
    %2504 = vmatprep.subr.mxu0 0.0
    %2505 = vmatpush1.msra.mxu0 0.0
    %2506 = vmatprep.subr.mxu0 0.0
    %2507 = vmatpush1.msra.mxu0 0.0
    %2508 = vmatprep.subr.mxu0 0.0
    %2509 = vmatpush1.msra.mxu0 0.0
    %2510 = vmatprep.subr.mxu0 0.0
    %2511 = vmatpush1.msra.mxu0 0.0
    %2512 = vmatprep.subr.mxu0 0.0
    %2513 = vmatpush1.msra.mxu0 0.0
    %2514 = vmatprep.subr.mxu0 0.0
    %2515 = vmatpush1.msra.mxu0 0.0
    %2516 = vmatprep.subr.mxu0 0.0
    %2517 = vmatpush1.msra.mxu0 0.0
    %2518 = vmatprep.subr.mxu0 0.0
    %2519 = vmatpush1.msra.mxu0 0.0
    %2520 = vmatprep.subr.mxu0 0.0
    %2521 = vmatpush1.msra.mxu0 0.0
    %2522 = vmatprep.subr.mxu0 0.0
    %2523 = vmatpush1.msra.mxu0 0.0
    %2524 = vmatprep.subr.mxu0 0.0
    %2525 = vmatpush1.msra.mxu0 0.0
    %2526 = vmatprep.subr.mxu0 0.0
    %2527 = vmatpush1.msra.mxu0 0.0
    %2528 = vmatprep.subr.mxu0 0.0
    %2529 = vmatpush1.msra.mxu0 0.0
    %2530 = vmatprep.subr.mxu0 0.0
    %2531 = vmatpush1.msra.mxu0 0.0
    %2532 = vmatprep.subr.mxu0 0.0
    %2533 = vmatpush1.msra.mxu0 0.0
    %2534 = vmatprep.subr.mxu0 0.0
    %2535 = vmatpush1.msra.mxu0 0.0
    %2536 = vmatprep.subr.mxu0 0.0
    %2537 = vmatpush1.msra.mxu0 0.0
    %2538 = vmatprep.subr.mxu0 0.0
    %2539 = vmatpush1.msra.mxu0 0.0
    %2540 = vmatprep.subr.mxu0 0.0
    %2541 = vmatpush1.msra.mxu0 0.0
    %2542 = vmatprep.subr.mxu0 0.0
    %2543 = vmatpush1.msra.mxu0 0.0
    %2544 = vmatprep.subr.mxu0 0.0
    %2545 = vmatpush1.msra.mxu0 0.0
    %2546 = vmatprep.subr.mxu0 0.0
    %2547 = vmatpush1.msra.mxu0 0.0
    %2548 = vmatprep.subr.mxu0 0.0
    %2549 = vmatpush1.msra.mxu0 0.0
    %2550 = vmatprep.subr.mxu0 0.0
    %2551 = vmatpush1.msra.mxu0 0.0
    %2552 = vmatprep.mubr.f32.mxu0 0.0
    %2553 = vmatmul.mubr.f32.gmra.mrb[0].mxu0 %v2486
    %v2554 = vpop.f32.mrb[0].mxu0
    %v2555 = vadd.f32 0.0, %v2554
    %v2556 = vpop.f32.mrb[0].mxu0
    %2557 = vdwg.mxu0
    %v2558 = vadd.f32 %v2070, %v2555
    %v2559 = vxor.u32 %v2558, 2147483648
    %v2560 = vmul.f32 %v2559, 1.442695
    %v2561 = vpow.pop %v2560
    %v2562 = vadd.f32 %v2561, 1.0
    %v2563 = vrcp.pop %v2562
    %v2564 = vmul.f32 1.0, %v2563
    %v2565 = vtanh.pop %v2558
    %v2566 = vmul.f32 %v2564, %v2476
    %2568 = vrot.lane.b32.xlu0 %v2565, 96
    %v2569 = vpop.permute.xlu0 %2568
    %v2571 = vmul.f32 %v2564, %v2569
    %2573 = vrot.lane.b32.xlu0 %v2571, 16
    %v2574 = vpop.permute.xlu0 %2573
    %v2576 = vadd.f32 %v2566, %v2574
    %v2577 = vtanh.pop %v2576
    %2579 = vrot.lane.b32.xlu0 %v2577, 32
    %v2580 = vpop.permute.xlu0 %2579
    %v2582 = vmul.f32 %v2564, %v2580
    %2584 = vrot.lane.b32.xlu0 %v2582, 80
    %v2585 = vpop.permute.xlu0 %2584
    %v2586 = vsel %vm259, %v2585, 0
    %2588 = vmatprep.subr.mxu0 0.0
    %2589 = vmatpush1.msra.mxu0 %v1946
    %2590 = vmatprep.subr.mxu0 0.0
    %2591 = vmatpush1.msra.mxu0 %v1947
    %2592 = vmatprep.subr.mxu0 0.0
    %2593 = vmatpush1.msra.mxu0 0.0
    %2594 = vmatprep.subr.mxu0 0.0
    %2595 = vmatpush1.msra.mxu0 0.0
    %2596 = vmatprep.subr.mxu0 0.0
    %2597 = vmatpush1.msra.mxu0 0.0
    %2598 = vmatprep.subr.mxu0 0.0
    %2599 = vmatpush1.msra.mxu0 0.0
    %2600 = vmatprep.subr.mxu0 0.0
    %2601 = vmatpush1.msra.mxu0 0.0
    %2602 = vmatprep.subr.mxu0 0.0
    %2603 = vmatpush1.msra.mxu0 0.0
    %2604 = vmatprep.subr.mxu0 0.0
    %2605 = vmatpush1.msra.mxu0 0.0
    %2606 = vmatprep.subr.mxu0 0.0
    %2607 = vmatpush1.msra.mxu0 0.0
    %2608 = vmatprep.subr.mxu0 0.0
    %2609 = vmatpush1.msra.mxu0 0.0
    %2610 = vmatprep.subr.mxu0 0.0
    %2611 = vmatpush1.msra.mxu0 0.0
    %2612 = vmatprep.subr.mxu0 0.0
    %2613 = vmatpush1.msra.mxu0 0.0
    %2614 = vmatprep.subr.mxu0 0.0
    %2615 = vmatpush1.msra.mxu0 0.0
    %2616 = vmatprep.subr.mxu0 0.0
    %2617 = vmatpush1.msra.mxu0 0.0
    %2618 = vmatprep.subr.mxu0 0.0
    %2619 = vmatpush1.msra.mxu0 0.0
    %2620 = vmatprep.subr.mxu0 0.0
    %2621 = vmatpush1.msra.mxu0 0.0
    %2622 = vmatprep.subr.mxu0 0.0
    %2623 = vmatpush1.msra.mxu0 0.0
    %2624 = vmatprep.subr.mxu0 0.0
    %2625 = vmatpush1.msra.mxu0 0.0
    %2626 = vmatprep.subr.mxu0 0.0
    %2627 = vmatpush1.msra.mxu0 0.0
    %2628 = vmatprep.subr.mxu0 0.0
    %2629 = vmatpush1.msra.mxu0 0.0
    %2630 = vmatprep.subr.mxu0 0.0
    %2631 = vmatpush1.msra.mxu0 0.0
    %2632 = vmatprep.subr.mxu0 0.0
    %2633 = vmatpush1.msra.mxu0 0.0
    %2634 = vmatprep.subr.mxu0 0.0
    %2635 = vmatpush1.msra.mxu0 0.0
    %2636 = vmatprep.subr.mxu0 0.0
    %2637 = vmatpush1.msra.mxu0 0.0
    %2638 = vmatprep.subr.mxu0 0.0
    %2639 = vmatpush1.msra.mxu0 0.0
    %2640 = vmatprep.subr.mxu0 0.0
    %2641 = vmatpush1.msra.mxu0 0.0
    %2642 = vmatprep.subr.mxu0 0.0
    %2643 = vmatpush1.msra.mxu0 0.0
    %2644 = vmatprep.subr.mxu0 0.0
    %2645 = vmatpush1.msra.mxu0 0.0
    %2646 = vmatprep.subr.mxu0 0.0
    %2647 = vmatpush1.msra.mxu0 0.0
    %2648 = vmatprep.subr.mxu0 0.0
    %2649 = vmatpush1.msra.mxu0 0.0
    %2650 = vmatprep.subr.mxu0 0.0
    %2651 = vmatpush1.msra.mxu0 0.0
    %2652 = vmatprep.mubr.f32.mxu0 0.0
    %2653 = vmatmul.mubr.f32.gmra.mrb[0].mxu0 %v2586
    %v2654 = vpop.f32.mrb[0].mxu0
    %v2655 = vadd.f32 0.0, %v2654
    %v2656 = vpop.f32.mrb[0].mxu0
    %2657 = vdwg.mxu0
    %v2658 = vadd.f32 %v2075, %v2655
    %v2659 = vxor.u32 %v2658, 2147483648
    %v2660 = vmul.f32 %v2659, 1.442695
    %v2661 = vpow.pop %v2660
    %v2662 = vadd.f32 %v2661, 1.0
    %v2663 = vrcp.pop %v2662
    %v2664 = vmul.f32 1.0, %v2663
    %v2665 = vtanh.pop %v2658
    %v2666 = vmul.f32 %v2664, %v2576
    %2668 = vrot.lane.b32.xlu0 %v2665, 96
    %v2669 = vpop.permute.xlu0 %2668
    %v2671 = vmul.f32 %v2664, %v2669
    %2673 = vrot.lane.b32.xlu0 %v2671, 16
    %v2674 = vpop.permute.xlu0 %2673
    %v2676 = vadd.f32 %v2666, %v2674
    %v2677 = vtanh.pop %v2676
    %2679 = vrot.lane.b32.xlu0 %v2677, 32
    %v2680 = vpop.permute.xlu0 %2679
    %v2682 = vmul.f32 %v2664, %v2680
    %2684 = vrot.lane.b32.xlu0 %v2682, 80
    %v2685 = vpop.permute.xlu0 %2684
    %v2686 = vsel %vm259, %v2685, 0
    %2688 = vmatprep.subr.mxu0 0.0
    %2689 = vmatpush1.msra.mxu0 %v1946
    %2690 = vmatprep.subr.mxu0 0.0
    %2691 = vmatpush1.msra.mxu0 %v1947
    %2692 = vmatprep.subr.mxu0 0.0
    %2693 = vmatpush1.msra.mxu0 0.0
    %2694 = vmatprep.subr.mxu0 0.0
    %2695 = vmatpush1.msra.mxu0 0.0
    %2696 = vmatprep.subr.mxu0 0.0
    %2697 = vmatpush1.msra.mxu0 0.0
    %2698 = vmatprep.subr.mxu0 0.0
    %2699 = vmatpush1.msra.mxu0 0.0
    %2700 = vmatprep.subr.mxu0 0.0
    %2701 = vmatpush1.msra.mxu0 0.0
    %2702 = vmatprep.subr.mxu0 0.0
    %2703 = vmatpush1.msra.mxu0 0.0
    %2704 = vmatprep.subr.mxu0 0.0
    %2705 = vmatpush1.msra.mxu0 0.0
    %2706 = vmatprep.subr.mxu0 0.0
    %2707 = vmatpush1.msra.mxu0 0.0
    %2708 = vmatprep.subr.mxu0 0.0
    %2709 = vmatpush1.msra.mxu0 0.0
    %2710 = vmatprep.subr.mxu0 0.0
    %2711 = vmatpush1.msra.mxu0 0.0
    %2712 = vmatprep.subr.mxu0 0.0
    %2713 = vmatpush1.msra.mxu0 0.0
    %2714 = vmatprep.subr.mxu0 0.0
    %2715 = vmatpush1.msra.mxu0 0.0
    %2716 = vmatprep.subr.mxu0 0.0
    %2717 = vmatpush1.msra.mxu0 0.0
    %2718 = vmatprep.subr.mxu0 0.0
    %2719 = vmatpush1.msra.mxu0 0.0
    %2720 = vmatprep.subr.mxu0 0.0
    %2721 = vmatpush1.msra.mxu0 0.0
    %2722 = vmatprep.subr.mxu0 0.0
    %2723 = vmatpush1.msra.mxu0 0.0
    %2724 = vmatprep.subr.mxu0 0.0
    %2725 = vmatpush1.msra.mxu0 0.0
    %2726 = vmatprep.subr.mxu0 0.0
    %2727 = vmatpush1.msra.mxu0 0.0
    %2728 = vmatprep.subr.mxu0 0.0
    %2729 = vmatpush1.msra.mxu0 0.0
    %2730 = vmatprep.subr.mxu0 0.0
    %2731 = vmatpush1.msra.mxu0 0.0
    %2732 = vmatprep.subr.mxu0 0.0
    %2733 = vmatpush1.msra.mxu0 0.0
    %2734 = vmatprep.subr.mxu0 0.0
    %2735 = vmatpush1.msra.mxu0 0.0
    %2736 = vmatprep.subr.mxu0 0.0
    %2737 = vmatpush1.msra.mxu0 0.0
    %2738 = vmatprep.subr.mxu0 0.0
    %2739 = vmatpush1.msra.mxu0 0.0
    %2740 = vmatprep.subr.mxu0 0.0
    %2741 = vmatpush1.msra.mxu0 0.0
    %2742 = vmatprep.subr.mxu0 0.0
    %2743 = vmatpush1.msra.mxu0 0.0
    %2744 = vmatprep.subr.mxu0 0.0
    %2745 = vmatpush1.msra.mxu0 0.0
    %2746 = vmatprep.subr.mxu0 0.0
    %2747 = vmatpush1.msra.mxu0 0.0
    %2748 = vmatprep.subr.mxu0 0.0
    %2749 = vmatpush1.msra.mxu0 0.0
    %2750 = vmatprep.subr.mxu0 0.0
    %2751 = vmatpush1.msra.mxu0 0.0
    %2752 = vmatprep.mubr.f32.mxu0 0.0
    %2753 = vmatmul.mubr.f32.gmra.mrb[0].mxu0 %v2686
    %v2754 = vpop.f32.mrb[0].mxu0
    %v2755 = vadd.f32 0.0, %v2754
    %v2756 = vpop.f32.mrb[0].mxu0
    %2757 = vdwg.mxu0
    %v2758 = vadd.f32 %v2080, %v2755
    %v2759 = vxor.u32 %v2758, 2147483648
    %v2760 = vmul.f32 %v2759, 1.442695
    %v2761 = vpow.pop %v2760
    %v2762 = vadd.f32 %v2761, 1.0
    %v2763 = vrcp.pop %v2762
    %v2764 = vmul.f32 1.0, %v2763
    %v2765 = vtanh.pop %v2758
    %v2766 = vmul.f32 %v2764, %v2676
    %2768 = vrot.lane.b32.xlu0 %v2765, 96
    %v2769 = vpop.permute.xlu0 %2768
    %v2771 = vmul.f32 %v2764, %v2769
    %2773 = vrot.lane.b32.xlu0 %v2771, 16
    %v2774 = vpop.permute.xlu0 %2773
    %v2776 = vadd.f32 %v2766, %v2774
    %v2777 = vtanh.pop %v2776
    %2779 = vrot.lane.b32.xlu0 %v2777, 32
    %v2780 = vpop.permute.xlu0 %2779
    %v2782 = vmul.f32 %v2764, %v2780
    %2784 = vrot.lane.b32.xlu0 %v2782, 80
    %v2785 = vpop.permute.xlu0 %2784
    %v2786 = vsel %vm259, %v2785, 0
    %2788 = vmatprep.subr.mxu0 0.0
    %2789 = vmatpush1.msra.mxu0 %v1946
    %2790 = vmatprep.subr.mxu0 0.0
    %2791 = vmatpush1.msra.mxu0 %v1947
    %2792 = vmatprep.subr.mxu0 0.0
    %2793 = vmatpush1.msra.mxu0 0.0
    %2794 = vmatprep.subr.mxu0 0.0
    %2795 = vmatpush1.msra.mxu0 0.0
    %2796 = vmatprep.subr.mxu0 0.0
    %2797 = vmatpush1.msra.mxu0 0.0
    %2798 = vmatprep.subr.mxu0 0.0
    %2799 = vmatpush1.msra.mxu0 0.0
    %2800 = vmatprep.subr.mxu0 0.0
    %2801 = vmatpush1.msra.mxu0 0.0
    %2802 = vmatprep.subr.mxu0 0.0
    %2803 = vmatpush1.msra.mxu0 0.0
    %2804 = vmatprep.subr.mxu0 0.0
    %2805 = vmatpush1.msra.mxu0 0.0
    %2806 = vmatprep.subr.mxu0 0.0
    %2807 = vmatpush1.msra.mxu0 0.0
    %2808 = vmatprep.subr.mxu0 0.0
    %2809 = vmatpush1.msra.mxu0 0.0
    %2810 = vmatprep.subr.mxu0 0.0
    %2811 = vmatpush1.msra.mxu0 0.0
    %2812 = vmatprep.subr.mxu0 0.0
    %2813 = vmatpush1.msra.mxu0 0.0
    %2814 = vmatprep.subr.mxu0 0.0
    %2815 = vmatpush1.msra.mxu0 0.0
    %2816 = vmatprep.subr.mxu0 0.0
    %2817 = vmatpush1.msra.mxu0 0.0
    %2818 = vmatprep.subr.mxu0 0.0
    %2819 = vmatpush1.msra.mxu0 0.0
    %2820 = vmatprep.subr.mxu0 0.0
    %2821 = vmatpush1.msra.mxu0 0.0
    %2822 = vmatprep.subr.mxu0 0.0
    %2823 = vmatpush1.msra.mxu0 0.0
    %2824 = vmatprep.subr.mxu0 0.0
    %2825 = vmatpush1.msra.mxu0 0.0
    %2826 = vmatprep.subr.mxu0 0.0
    %2827 = vmatpush1.msra.mxu0 0.0
    %2828 = vmatprep.subr.mxu0 0.0
    %2829 = vmatpush1.msra.mxu0 0.0
    %2830 = vmatprep.subr.mxu0 0.0
    %2831 = vmatpush1.msra.mxu0 0.0
    %2832 = vmatprep.subr.mxu0 0.0
    %2833 = vmatpush1.msra.mxu0 0.0
    %2834 = vmatprep.subr.mxu0 0.0
    %2835 = vmatpush1.msra.mxu0 0.0
    %2836 = vmatprep.subr.mxu0 0.0
    %2837 = vmatpush1.msra.mxu0 0.0
    %2838 = vmatprep.subr.mxu0 0.0
    %2839 = vmatpush1.msra.mxu0 0.0
    %2840 = vmatprep.subr.mxu0 0.0
    %2841 = vmatpush1.msra.mxu0 0.0
    %2842 = vmatprep.subr.mxu0 0.0
    %2843 = vmatpush1.msra.mxu0 0.0
    %2844 = vmatprep.subr.mxu0 0.0
    %2845 = vmatpush1.msra.mxu0 0.0
    %2846 = vmatprep.subr.mxu0 0.0
    %2847 = vmatpush1.msra.mxu0 0.0
    %2848 = vmatprep.subr.mxu0 0.0
    %2849 = vmatpush1.msra.mxu0 0.0
    %2850 = vmatprep.subr.mxu0 0.0
    %2851 = vmatpush1.msra.mxu0 0.0
    %2852 = vmatprep.mubr.f32.mxu0 0.0
    %2853 = vmatmul.mubr.f32.gmra.mrb[0].mxu0 %v2786
    %v2854 = vpop.f32.mrb[0].mxu0
    %v2855 = vadd.f32 0.0, %v2854
    %v2856 = vpop.f32.mrb[0].mxu0
    %2857 = vdwg.mxu0
    %v2858 = vadd.f32 %v2085, %v2855
    %v2859 = vxor.u32 %v2858, 2147483648
    %v2860 = vmul.f32 %v2859, 1.442695
    %v2861 = vpow.pop %v2860
    %v2862 = vadd.f32 %v2861, 1.0
    %v2863 = vrcp.pop %v2862
    %v2864 = vmul.f32 1.0, %v2863
    %v2865 = vtanh.pop %v2858
    %v2866 = vmul.f32 %v2864, %v2776
    %2868 = vrot.lane.b32.xlu0 %v2865, 96
    %v2869 = vpop.permute.xlu0 %2868
    %v2871 = vmul.f32 %v2864, %v2869
    %2873 = vrot.lane.b32.xlu0 %v2871, 16
    %v2874 = vpop.permute.xlu0 %2873
    %v2876 = vadd.f32 %v2866, %v2874
    %v2877 = vtanh.pop %v2876
    %2879 = vrot.lane.b32.xlu0 %v2877, 32
    %v2880 = vpop.permute.xlu0 %2879
    %v2882 = vmul.f32 %v2864, %v2880
    %v2883 = vxor.u32 %v2085, 2147483648
    %v2884 = vmul.f32 %v2883, 1.442695
    %v2885 = vpow.pop %v2884
    %v2886 = vadd.f32 %v2885, 1.0
    %v2887 = vrcp.pop %v2886
    %v2888 = vmul.f32 1.0, %v2887
    %v2889 = vtanh.pop %v2085
    %2891 = vrot.lane.b32.xlu0 %v2889, 96
    %v2892 = vpop.permute.xlu0 %2891
    %v2894 = vmul.f32 %v2888, %v2892
    %v2895 = vtanh.pop %v2894
    %2897 = vrot.lane.b32.xlu0 %v2895, 48
    %v2898 = vpop.permute.xlu0 %2897
    %v2900 = vmul.f32 %v2888, %v2898
    %v2901 = vld [vmem:[%s9] sm:$0xff]
    %v2902 = vld [vmem:[%s9 + $0x8] sm:$0xff]
    %v2903 = vld [vmem:[%s9 + $0x10] sm:$0xff]
    %v2904 = vld [vmem:[%s9 + $0x18] sm:$0xff]
    %2906 = vrot.lane.b32.xlu0 %v2900, 16
    %v2907 = vpop.permute.xlu0 %2906
    %v2908 = vsel %vm259, %v2907, 0
    %2910 = vmatprep.subr.mxu0 0.0
    %2911 = vmatpush1.msra.mxu0 %v2903
    %2912 = vmatprep.subr.mxu0 0.0
    %2913 = vmatpush1.msra.mxu0 %v2904
    %2914 = vmatprep.subr.mxu0 0.0
    %2915 = vmatpush1.msra.mxu0 0.0
    %2916 = vmatprep.subr.mxu0 0.0
    %2917 = vmatpush1.msra.mxu0 0.0
    %2918 = vmatprep.subr.mxu0 0.0
    %2919 = vmatpush1.msra.mxu0 0.0
    %2920 = vmatprep.subr.mxu0 0.0
    %2921 = vmatpush1.msra.mxu0 0.0
    %2922 = vmatprep.subr.mxu0 0.0
    %2923 = vmatpush1.msra.mxu0 0.0
    %2924 = vmatprep.subr.mxu0 0.0
    %2925 = vmatpush1.msra.mxu0 0.0
    %2926 = vmatprep.subr.mxu0 0.0
    %2927 = vmatpush1.msra.mxu0 0.0
    %2928 = vmatprep.subr.mxu0 0.0
    %2929 = vmatpush1.msra.mxu0 0.0
    %2930 = vmatprep.subr.mxu0 0.0
    %2931 = vmatpush1.msra.mxu0 0.0
    %2932 = vmatprep.subr.mxu0 0.0
    %2933 = vmatpush1.msra.mxu0 0.0
    %2934 = vmatprep.subr.mxu0 0.0
    %2935 = vmatpush1.msra.mxu0 0.0
    %2936 = vmatprep.subr.mxu0 0.0
    %2937 = vmatpush1.msra.mxu0 0.0
    %2938 = vmatprep.subr.mxu0 0.0
    %2939 = vmatpush1.msra.mxu0 0.0
    %2940 = vmatprep.subr.mxu0 0.0
    %2941 = vmatpush1.msra.mxu0 0.0
    %2942 = vmatprep.subr.mxu0 0.0
    %2943 = vmatpush1.msra.mxu0 0.0
    %2944 = vmatprep.subr.mxu0 0.0
    %2945 = vmatpush1.msra.mxu0 0.0
    %2946 = vmatprep.subr.mxu0 0.0
    %2947 = vmatpush1.msra.mxu0 0.0
    %2948 = vmatprep.subr.mxu0 0.0
    %2949 = vmatpush1.msra.mxu0 0.0
    %2950 = vmatprep.subr.mxu0 0.0
    %2951 = vmatpush1.msra.mxu0 0.0
    %2952 = vmatprep.subr.mxu0 0.0
    %2953 = vmatpush1.msra.mxu0 0.0
    %2954 = vmatprep.subr.mxu0 0.0
    %2955 = vmatpush1.msra.mxu0 0.0
    %2956 = vmatprep.subr.mxu0 0.0
    %2957 = vmatpush1.msra.mxu0 0.0
    %2958 = vmatprep.subr.mxu0 0.0
    %2959 = vmatpush1.msra.mxu0 0.0
    %2960 = vmatprep.subr.mxu0 0.0
    %2961 = vmatpush1.msra.mxu0 0.0
    %2962 = vmatprep.subr.mxu0 0.0
    %2963 = vmatpush1.msra.mxu0 0.0
    %2964 = vmatprep.subr.mxu0 0.0
    %2965 = vmatpush1.msra.mxu0 0.0
    %2966 = vmatprep.subr.mxu0 0.0
    %2967 = vmatpush1.msra.mxu0 0.0
    %2968 = vmatprep.subr.mxu0 0.0
    %2969 = vmatpush1.msra.mxu0 0.0
    %2970 = vmatprep.subr.mxu0 0.0
    %2971 = vmatpush1.msra.mxu0 0.0
    %2972 = vmatprep.subr.mxu0 0.0
    %2973 = vmatpush1.msra.mxu0 0.0
    %2974 = vmatprep.mubr.f32.mxu0 0.0
    %2975 = vmatmul.mubr.f32.gmra.mrb[0].mxu0 %v2908
    %v2976 = vpop.f32.mrb[0].mxu0
    %v2977 = vadd.f32 0.0, %v2976
    %v2978 = vpop.f32.mrb[0].mxu0
    %2979 = vdwg.mxu0
    %2981 = vrot.lane.b32.xlu0 %v2882, 80
    %v2982 = vpop.permute.xlu0 %2981
    %v2983 = vsel %vm259, %v2982, 0
    %2985 = vmatprep.subr.mxu0 0.0
    %2986 = vmatpush1.msra.mxu0 %v2901
    %2987 = vmatprep.subr.mxu0 0.0
    %2988 = vmatpush1.msra.mxu0 %v2902
    %2989 = vmatprep.subr.mxu0 0.0
    %2990 = vmatpush1.msra.mxu0 0.0
    %2991 = vmatprep.subr.mxu0 0.0
    %2992 = vmatpush1.msra.mxu0 0.0
    %2993 = vmatprep.subr.mxu0 0.0
    %2994 = vmatpush1.msra.mxu0 0.0
    %2995 = vmatprep.subr.mxu0 0.0
    %2996 = vmatpush1.msra.mxu0 0.0
    %2997 = vmatprep.subr.mxu0 0.0
    %2998 = vmatpush1.msra.mxu0 0.0
    %2999 = vmatprep.subr.mxu0 0.0
    %3000 = vmatpush1.msra.mxu0 0.0
    %3001 = vmatprep.subr.mxu0 0.0
    %3002 = vmatpush1.msra.mxu0 0.0
    %3003 = vmatprep.subr.mxu0 0.0
    %3004 = vmatpush1.msra.mxu0 0.0
    %3005 = vmatprep.subr.mxu0 0.0
    %3006 = vmatpush1.msra.mxu0 0.0
    %3007 = vmatprep.subr.mxu0 0.0
    %3008 = vmatpush1.msra.mxu0 0.0
    %3009 = vmatprep.subr.mxu0 0.0
    %3010 = vmatpush1.msra.mxu0 0.0
    %3011 = vmatprep.subr.mxu0 0.0
    %3012 = vmatpush1.msra.mxu0 0.0
    %3013 = vmatprep.subr.mxu0 0.0
    %3014 = vmatpush1.msra.mxu0 0.0
    %3015 = vmatprep.subr.mxu0 0.0
    %3016 = vmatpush1.msra.mxu0 0.0
    %3017 = vmatprep.subr.mxu0 0.0
    %3018 = vmatpush1.msra.mxu0 0.0
    %3019 = vmatprep.subr.mxu0 0.0
    %3020 = vmatpush1.msra.mxu0 0.0
    %3021 = vmatprep.subr.mxu0 0.0
    %3022 = vmatpush1.msra.mxu0 0.0
    %3023 = vmatprep.subr.mxu0 0.0
    %3024 = vmatpush1.msra.mxu0 0.0
    %3025 = vmatprep.subr.mxu0 0.0
    %3026 = vmatpush1.msra.mxu0 0.0
    %3027 = vmatprep.subr.mxu0 0.0
    %3028 = vmatpush1.msra.mxu0 0.0
    %3029 = vmatprep.subr.mxu0 0.0
    %3030 = vmatpush1.msra.mxu0 0.0
    %3031 = vmatprep.subr.mxu0 0.0
    %3032 = vmatpush1.msra.mxu0 0.0
    %3033 = vmatprep.subr.mxu0 0.0
    %3034 = vmatpush1.msra.mxu0 0.0
    %3035 = vmatprep.subr.mxu0 0.0
    %3036 = vmatpush1.msra.mxu0 0.0
    %3037 = vmatprep.subr.mxu0 0.0
    %3038 = vmatpush1.msra.mxu0 0.0
    %3039 = vmatprep.subr.mxu0 0.0
    %3040 = vmatpush1.msra.mxu0 0.0
    %3041 = vmatprep.subr.mxu0 0.0
    %3042 = vmatpush1.msra.mxu0 0.0
    %3043 = vmatprep.subr.mxu0 0.0
    %3044 = vmatpush1.msra.mxu0 0.0
    %3045 = vmatprep.subr.mxu0 0.0
    %3046 = vmatpush1.msra.mxu0 0.0
    %3047 = vmatprep.subr.mxu0 0.0
    %3048 = vmatpush1.msra.mxu0 0.0
    %3049 = vmatprep.mubr.f32.mxu0 0.0
    %3050 = vmatmul.mubr.f32.gmra.mrb[0].mxu0 %v2983
    %v3051 = vpop.f32.mrb[0].mxu0
    %v3052 = vadd.f32 %v2977, %v3051
    %v3053 = vpop.f32.mrb[0].mxu0
    %3054 = vdwg.mxu0
    %v3055 = vld [vmem:[%s10] sm:$0x1]
    %v3057 = vlaneseq
    %v3058 = vshrl.u32 %v3057, 7
    %v3059 = vsub.s32 0, %v3058
    %v3060 = vrot.slane %v3055, %v3059
    %v3062 = vadd.f32 %v3052, %v3060
    %vm3063 = vcmask 31744
    %3064 = vst.msk [vmem:[%s11] sm:$0xff] %vm3063, %v3062
    // Predicated region
    $region66: #{tpu_custom_call.1} parent=1 // pred_check
      _
    $region67: #{tpu_custom_call.1} parent=1 // pred_check_branch
      %3066 = sbr.rel (0) target = $region69
    $region68: #{tpu_custom_call.1} parent=1 // pred_region
      _
    $region69: #{tpu_custom_call.1} parent=1 // pred_fallthru
      _
    // Predicated region
    $region70: #{tpu_custom_call.1} parent=1 // pred_check
      _
    $region71: #{tpu_custom_call.1} parent=1 // pred_check_branch
      %3068 = sbr.rel (0) target = $region73
    $region72: #{tpu_custom_call.1} parent=1 // pred_region
      _
    $region73: #{tpu_custom_call.1} parent=1 // pred_fallthru
      _
    %3069 = vsyncpa [#allocation4], 1
    %3070 = vsyncpa [#allocation6], 1
    %3071 = vsyncpa [#allocation9], 1

</llo_original>
